<compile_context>
chip_gen: v7x
topology: tpu7x:2x2x1
jax: 0.10.0
libtpu: 0.0.40
codegen_flags: <defaults>
</compile_context>

<pallas_src>
import numpy as np
import jax
import jax.numpy as jnp
from jax.experimental import pallas as pl
from jax.experimental.pallas import tpu as pltpu

# ----------------------------- configuration --------------------------------
BTOT = 256                       # total batch (grid-tiled)
N_VALUES = 16                    # reconstruction_loss.n_values (== encoder input width)
N_CLASSES = 4                    # reconstruction_loss.n_classes (categorical head)
INTERMEDIATE = (32, 8)
H1 = INTERMEDIATE[0]             # encoder hidden
LATENT = INTERMEDIATE[-1]        # latent size
H2 = INTERMEDIATE[0]             # decoder hidden (reversed(intermediate)[-1])
LAST = N_VALUES * N_CLASSES      # categorical last_layer_size
EPS = 1e-8

# input slab lane layout (BTOT, 128) f32
L_XF = 0                         # lanes  0:16  x as float
L_XI = N_VALUES                  # lanes 16:32  x as class labels (exact small ints)
L_NOISE = 2 * N_VALUES           # lanes 32:40  rsample epsilon

# output slab lane layout (BTOT, 128) f32
L_MU = 0                         # lanes  0:8
L_SCALE = LATENT                 # lanes  8:16
L_Z = 2 * LATENT                 # lanes 16:24
L_RECON = 3 * LATENT             # lanes 24:40  argmax class index as f32 (exact)

# bf16 weight slab rows (all sections 16-row aligned, all cols zero-padded to 128)
R_WE0 = 0          # (128,128): rows 0:16  = we0 (16x32), rest zero (K padded to 128)
R_WE1 = 128        # (128,128): rows 0:32  = we1 (32x16), rest zero
R_WD0 = 256        # ( 16,128): rows 0:8   = wd0 (8x32),  rest zero (K padded to 16)
R_WD1 = 272        # (128,128): rows 0:32  = wd1 grouped (32x64), rest zero
W_ROWS = 400


def _pick_tile():
    # single-TC chips (v5e / v6e): one 256-row tile; multi-TC (v7x/v5p/v4): 2x128 parallel
    try:
        kind = jax.devices()[0].device_kind.lower()
    except Exception:
        return 128
    if any(t in kind for t in ("v5e", "v5 lite", "v5lite", "v6e", "v6 lite", "v6lite")):
        return 256
    return 128


TILE = _pick_tile()
assert BTOT % TILE == 0, "loss normalization assumes every grid tile is full"


# ------------------------------ Pallas kernel --------------------------------
def vae_kernel(xin_ref, w_ref, b_ref, msz_ref, loss_ref):
    xin = xin_ref[...]                                   # (TILE,128) f32: [xf|xi|noise|0]
    xin16 = xin.astype(jnp.bfloat16)

    # ---- encoder layer 0: Linear + SiLU (Dropout is identity in eval mode) ----
    # we0 is K-padded to 128 rows (rows 16: are zero), so the full 128-lane input
    # slab is a valid MXU LHS (xi/noise lanes hit zero rows) and h is lane-dense.
    we0 = w_ref[R_WE0:R_WE0 + 128, :]                    # bf16 (128,128)
    be0 = b_ref[0:1, :]                                  # f32 (1,128), lanes>=H1 zero
    h = jnp.dot(xin16, we0, preferred_element_type=jnp.float32) + be0
    h = h * (1.0 / (1.0 + jnp.exp(-h)))                  # SiLU; silu(0)=0 keeps pads zero

    # ---- encoder head: Linear(H1, 2*LATENT) ----
    we1 = w_ref[R_WE1:R_WE1 + 128, :]
    be1 = b_ref[1:2, :]
    e = jnp.dot(h.astype(jnp.bfloat16), we1, preferred_element_type=jnp.float32) + be1

    mu = e[:, L_MU:L_MU + LATENT]
    logvar = e[:, LATENT:2 * LATENT]
    # numerically-stable softplus + eps
    scale = jnp.log(1.0 + jnp.exp(-jnp.abs(logvar))) + jnp.maximum(logvar, 0.0) + EPS

    # ---- reparameterization: MVN(mu, diag(scale)).rsample() = mu + scale*eps ----
    noise = xin[:, L_NOISE:L_NOISE + LATENT]
    z = mu + scale * noise

    # ---- decoder layer 0: Linear + SiLU; K padded to 16 (pad lanes hit zero rows) ----
    zk = jnp.concatenate([z, jnp.zeros_like(z)], axis=-1)          # (TILE,16)
    wd0 = w_ref[R_WD0:R_WD0 + 16, :]                               # bf16 (16,128)
    bd0 = b_ref[2:3, :]
    hd = jnp.dot(zk.astype(jnp.bfloat16), wd0, preferred_element_type=jnp.float32) + bd0
    hd = hd * (1.0 / (1.0 + jnp.exp(-hd)))

    # ---- decoder head: ONE fused matmul, class-grouped columns (col = c*NV + v) ----
    wd1 = w_ref[R_WD1:R_WD1 + 128, :]                              # bf16 (128,128)
    bd1 = b_ref[3:4, :]
    logits_all = jnp.dot(hd.astype(jnp.bfloat16), wd1,
                         preferred_element_type=jnp.float32) + bd1  # lanes 0:64 valid

    # ---- fused online argmax + cross-entropy (each class slice consumed once) ----
    tgt = xin[:, L_XI:L_XI + N_VALUES]                   # class labels as f32 (exact)
    best = logits_all[:, 0:N_VALUES]
    best_idx_f = jnp.zeros_like(best)
    sumexp = jnp.ones_like(best)                         # exp(l0 - running_max) = 1
    tgt_logit = jnp.where(tgt == 0.0, best, 0.0)
    for c in range(1, N_CLASSES):
        lc = logits_all[:, c * N_VALUES:(c + 1) * N_VALUES]
        d = lc - best
        ed = jnp.exp(-jnp.abs(d))                        # = exp(min - max), one exp/class
        upd = d > 0.0                                    # strict '>': first max wins
        sumexp = jnp.where(upd, sumexp * ed + 1.0, sumexp + ed)
        best_idx_f = jnp.where(upd, jnp.float32(c), best_idx_f)
        best = jnp.where(upd, lc, best)
        tgt_logit = tgt_logit + jnp.where(tgt == jnp.float32(c), lc, 0.0)
    ce_el = (best + jnp.log(sumexp)) - tgt_logit         # (TILE, N_VALUES)

    # TODO(synk): GenerativeLoss is abstract in the reference; use the standard
    # VAE choice KL(N(mu, diag(scale^2)) || N(0, I)), mean over batch (done outside).
    var = scale * scale
    kl_el = 0.5 * (var + mu * mu - 1.0 - jnp.log(var))   # (TILE, LATENT)

    ce_sum = jnp.sum(ce_el)
    kl_sum = jnp.sum(kl_el)

    # ---- lane-dense per-row output slab: [mu|scale|z|recon(f32)|0-pad] (TILE,128) ----
    msz_ref[...] = jnp.zeros(msz_ref.shape, jnp.float32)
    msz_ref[:, L_MU:L_MU + LATENT] = mu
    msz_ref[:, L_SCALE:L_SCALE + LATENT] = scale
    msz_ref[:, L_Z:L_Z + LATENT] = z
    msz_ref[:, L_RECON:L_RECON + N_VALUES] = best_idx_f

    # ---- per-tile partial sums as one full (8,128) lane-dense slab ----
    sub = jax.lax.broadcasted_iota(jnp.int32, (8, 128), 0)
    lane = jax.lax.broadcasted_iota(jnp.int32, (8, 128), 1)
    slab = jnp.where((sub == 0) & (lane == 0), ce_sum, 0.0)
    slab = jnp.where((sub == 0) & (lane == 1), kl_sum, slab)
    loss_ref[...] = slab


# ------------------------------ wrapper / glue --------------------------------
_FLOPS = 2 * BTOT * (N_VALUES * H1 + H1 * 2 * LATENT + LATENT * H2 + H2 * LAST)
_TRANS = BTOT * (H1 + 2 * LATENT + H2 + LATENT + N_VALUES * (N_CLASSES - 1) + N_VALUES)
_BYTES = (2 * BTOT * 128 * 4            # input slab + output slab
          + W_ROWS * 128 * 2            # bf16 weights
          + 8 * 128 * 4                 # f32 biases
          + (BTOT // TILE) * 8 * 128 * 4)


@jax.jit
def vae_forward(xin, wslab, bslab):
    num_tiles = BTOT // TILE
    msz, lparts = pl.pallas_call(
        vae_kernel,
        grid=(num_tiles,),
        in_specs=[
            pl.BlockSpec((TILE, 128), lambda i: (i, 0)),        # [xf|xi|noise] slab
            pl.BlockSpec((W_ROWS, 128), lambda i: (0, 0)),      # bf16 weights (resident)
            pl.BlockSpec((8, 128), lambda i: (0, 0)),           # f32 biases (resident)
        ],
        out_specs=(
            pl.BlockSpec((TILE, 128), lambda i: (i, 0)),        # [mu|scale|z|recon]
            pl.BlockSpec((8, 128), lambda i: (i, 0)),           # per-tile CE/KL sums
        ),
        out_shape=(
            jax.ShapeDtypeStruct((BTOT, 128), jnp.float32),
            jax.ShapeDtypeStruct((num_tiles * 8, 128), jnp.float32),
        ),
        compiler_params=pltpu.CompilerParams(
            dimension_semantics=("parallel",)),                 # multi-TC: both cores
        cost_estimate=pl.CostEstimate(
            flops=_FLOPS, transcendentals=_TRANS, bytes_accessed=_BYTES),
    )(xin, wslab, bslab)

    mu = msz[:, L_MU:L_MU + LATENT]
    scale = msz[:, L_SCALE:L_SCALE + LATENT]
    z = msz[:, L_Z:L_Z + LATENT]
    x_recon = msz[:, L_RECON:L_RECON + N_VALUES].astype(jnp.int32)
    # trivial finalization of the two reductions (num_tiles partial sums each)
    ce = jnp.sum(lparts[:, 0]) / float(BTOT * N_VALUES)
    kl = jnp.sum(lparts[:, 1]) / float(BTOT)
    return mu, scale, z, x_recon, ce, kl, ce + kl


# ------------------------------ host-side packing ------------------------------
def pack_inputs(xf, xi, noise):
    s = jnp.zeros((BTOT, 128), jnp.float32)
    s = s.at[:, L_XF:L_XF + N_VALUES].set(xf)
    s = s.at[:, L_XI:L_XI + N_VALUES].set(xi.astype(jnp.float32))
    s = s.at[:, L_NOISE:L_NOISE + LATENT].set(noise)
    return s


def pack_weights(we0, we1, wd0, wd1g):
    w = np.zeros((W_ROWS, 128), np.float32)
    w[R_WE0:R_WE0 + N_VALUES, :H1] = np.asarray(we0)
    w[R_WE1:R_WE1 + H1, :2 * LATENT] = np.asarray(we1)
    w[R_WD0:R_WD0 + LATENT, :H2] = np.asarray(wd0)
    w[R_WD1:R_WD1 + H2, :LAST] = np.asarray(wd1g)
    return jnp.asarray(w).astype(jnp.bfloat16)


def pack_biases(be0, be1, bd0, bd1g):
    b = np.zeros((8, 128), np.float32)
    b[0, :H1] = np.asarray(be0).reshape(-1)
    b[1, :2 * LATENT] = np.asarray(be1).reshape(-1)
    b[2, :H2] = np.asarray(bd0).reshape(-1)
    b[3, :LAST] = np.asarray(bd1g).reshape(-1)
    return jnp.asarray(b)


def init_linear(key, fan_in, fan_out):
    # PyTorch nn.Linear default init: U(-1/sqrt(fan_in), 1/sqrt(fan_in))
    k = 1.0 / np.sqrt(fan_in)
    kw, kb = jax.random.split(key)
    w = jax.random.uniform(kw, (fan_in, fan_out), jnp.float32, -k, k)
    b = jax.random.uniform(kb, (1, fan_out), jnp.float32, -k, k)
    return w, b


# ------------------------------ pure-JAX reference ------------------------------
def _dot_bf16(a, b):
    return jnp.dot(a.astype(jnp.bfloat16), b.astype(jnp.bfloat16),
                   preferred_element_type=jnp.float32)


def reference(xf, xi, noise, raw):
    # pure-JAX mirror of the PyTorch module (same bf16 MXU-operand casts, f32 biases)
    we0, be0, we1, be1, wd0, bd0, wd1, bd1 = raw
    sig = lambda v: 1.0 / (1.0 + jnp.exp(-v))
    h = _dot_bf16(xf, we0) + be0
    h = h * sig(h)
    e = _dot_bf16(h, we1) + be1
    mu, logvar = e[:, :LATENT], e[:, LATENT:]
    scale = jnp.log(1.0 + jnp.exp(-jnp.abs(logvar))) + jnp.maximum(logvar, 0.0) + EPS
    z = mu + scale * noise
    hd = _dot_bf16(z, wd0) + bd0
    hd = hd * sig(hd)
    recon = _dot_bf16(hd, wd1) + bd1
    logits = recon.reshape(BTOT, N_VALUES, N_CLASSES)
    x_recon = jnp.argmax(logits, axis=-1).astype(jnp.int32)
    lse = jax.scipy.special.logsumexp(logits, axis=-1)
    tl = jnp.take_along_axis(logits, xi[..., None], axis=-1)[..., 0]
    ce = jnp.mean(lse - tl)
    var = scale * scale
    kl = jnp.mean(0.5 * jnp.sum(var + mu * mu - 1.0 - jnp.log(var), axis=-1))
    return mu, scale, z, x_recon, ce, kl, ce + kl


if __name__ == "__main__":
    root = jax.random.PRNGKey(0)
    k_x, k_n, k_e0, k_e1, k_d0, k_d1 = jax.random.split(root, 6)

    # deterministic inputs: integer class labels per value; float copy feeds the MLP
    xi = jax.random.randint(k_x, (BTOT, N_VALUES), 0, N_CLASSES, dtype=jnp.int32)
    xf = xi.astype(jnp.float32)
    noise = jax.random.normal(k_n, (BTOT, LATENT), jnp.float32)   # rsample's epsilon

    # encoder: Linear(16,32)+SiLU ; Linear(32, 2*8)
    we0, be0 = init_linear(k_e0, N_VALUES, H1)
    we1, be1 = init_linear(k_e1, H1, 2 * LATENT)
    # decoder: Linear(8,32)+SiLU ; Linear(32, 64)
    wd0, bd0 = init_linear(k_d0, LATENT, H2)
    wd1, bd1 = init_linear(k_d1, H2, LAST)

    # class-grouped decoder-head columns: new col c*N_VALUES+v  <-  old col v*N_CLASSES+c
    perm = np.arange(LAST).reshape(N_VALUES, N_CLASSES).T.reshape(-1)
    wd1g = np.asarray(wd1)[:, perm]
    bd1g = np.asarray(bd1)[:, perm]

    xin = pack_inputs(xf, xi, noise)
    wslab = pack_weights(we0, we1, wd0, wd1g)
    bslab = pack_biases(be0, be1, bd0, bd1g)

    outs = jax.block_until_ready(vae_forward(xin, wslab, bslab))
    mu_k, sc_k, z_k, rec_k, lr_k, lg_k, lt_k = outs

    # pure-JAX reference check
    mu_r, sc_r, z_r, rec_r, lr_r, lg_r, lt_r = reference(
        xf, xi, noise, (we0, be0, we1, be1, wd0, bd0, wd1, bd1))

    np.testing.assert_allclose(np.array(mu_k), np.array(mu_r), rtol=2e-3, atol=2e-4)
    np.testing.assert_allclose(np.array(sc_k), np.array(sc_r), rtol=2e-3, atol=2e-4)
    np.testing.assert_allclose(np.array(z_k), np.array(z_r), rtol=2e-3, atol=2e-4)
    # argmax: tolerate rare ULP-level tie flips between Pallas and XLA lowerings
    match = float(np.mean(np.array(rec_k) == np.array(rec_r)))
    assert match >= 0.999, f"reconstruction argmax mismatch rate {1.0 - match:.5f}"
    np.testing.assert_allclose(float(lr_k), float(lr_r), rtol=2e-3, atol=2e-4)
    np.testing.assert_allclose(float(lg_k), float(lg_r), rtol=2e-3, atol=2e-4)
    np.testing.assert_allclose(float(lt_k), float(lt_r), rtol=2e-3, atol=2e-4)

    print("KERNEL_OK")
</pallas_src>

<mosaic_0001>
module attributes {stable_mosaic.version = 11 : i64} {
  func.func @vae_kernel(%arg0: i32, %arg1: memref<128x128xf32, #tpu.memory_space<vmem>>, %arg2: memref<400x128xbf16, #tpu.memory_space<vmem>>, %arg3: memref<8x128xf32, #tpu.memory_space<vmem>>, %arg4: memref<128x128xf32, #tpu.memory_space<vmem>>, %arg5: memref<8x128xf32, #tpu.memory_space<vmem>>) attributes {dimension_semantics = [#tpu.dimension_semantics<parallel>], iteration_bounds = array<i64: 2>, scalar_prefetch = 0 : i64, scratch_operands = 0 : i64, tpu.core_type = #tpu.core_type<tc>, window_params = [{transform_indices = @transform_0, window_bounds = array<i64: 128, 128>}, {pipeline_mode = #tpu.pipeline_mode<synchronous>, transform_indices = @transform_1, window_bounds = array<i64: 400, 128>}, {pipeline_mode = #tpu.pipeline_mode<synchronous>, transform_indices = @transform_2, window_bounds = array<i64: 8, 128>}, {transform_indices = @transform_3, window_bounds = array<i64: 128, 128>}, {transform_indices = @transform_4, window_bounds = array<i64: 8, 128>}]} {
    %c0 = arith.constant 0 : index
    %c0_0 = arith.constant 0 : index
    %0 = vector.load %arg1[%c0, %c0_0] : memref<128x128xf32, #tpu.memory_space<vmem>>, vector<128x128xf32>
    %1 = arith.truncf %0 : vector<128x128xf32> to vector<128x128xbf16>
    %c0_1 = arith.constant 0 : index
    %c0_2 = arith.constant 0 : index
    %2 = vector.load %arg2[%c0_1, %c0_2] : memref<400x128xbf16, #tpu.memory_space<vmem>>, vector<128x128xbf16>
    %c0_3 = arith.constant 0 : index
    %c0_4 = arith.constant 0 : index
    %3 = vector.load %arg3[%c0_3, %c0_4] : memref<8x128xf32, #tpu.memory_space<vmem>>, vector<1x128xf32>
    %cst = arith.constant dense<0.000000e+00> : vector<128x128xf32>
    %4 = tpu.matmul %1, %2, %cst {dimension_numbers = #tpu.dot_dimension_numbers<[1], [0], [0], [1], [0, 0, 1, 1], [], []>} : vector<128x128xbf16>, vector<128x128xbf16>, vector<128x128xf32> -> vector<128x128xf32>
    %5 = vector.broadcast %3 : vector<1x128xf32> to vector<128x128xf32>
    %6 = arith.addf %4, %5 : vector<128x128xf32>
    %cst_5 = arith.constant 0.000000e+00 : f32
    %7 = vector.broadcast %cst_5 : f32 to vector<128x128xf32>
    %8 = arith.subf %7, %6 : vector<128x128xf32>
    %9 = math.exp %8 : vector<128x128xf32>
    %cst_6 = arith.constant 1.000000e+00 : f32
    %10 = vector.broadcast %cst_6 : f32 to vector<128x128xf32>
    %11 = arith.addf %10, %9 : vector<128x128xf32>
    %cst_7 = arith.constant 1.000000e+00 : f32
    %12 = vector.broadcast %cst_7 : f32 to vector<128x128xf32>
    %13 = arith.divf %12, %11 : vector<128x128xf32>
    %14 = arith.mulf %6, %13 : vector<128x128xf32>
    %c128 = arith.constant 128 : index
    %c0_8 = arith.constant 0 : index
    %15 = vector.load %arg2[%c128, %c0_8] : memref<400x128xbf16, #tpu.memory_space<vmem>>, vector<128x128xbf16>
    %c1 = arith.constant 1 : index
    %c0_9 = arith.constant 0 : index
    %16 = vector.load %arg3[%c1, %c0_9] : memref<8x128xf32, #tpu.memory_space<vmem>>, vector<1x128xf32>
    %17 = arith.truncf %14 : vector<128x128xf32> to vector<128x128xbf16>
    %cst_10 = arith.constant dense<0.000000e+00> : vector<128x128xf32>
    %18 = tpu.matmul %17, %15, %cst_10 {dimension_numbers = #tpu.dot_dimension_numbers<[1], [0], [0], [1], [0, 0, 1, 1], [], []>} : vector<128x128xbf16>, vector<128x128xbf16>, vector<128x128xf32> -> vector<128x128xf32>
    %19 = vector.broadcast %16 : vector<1x128xf32> to vector<128x128xf32>
    %20 = arith.addf %18, %19 : vector<128x128xf32>
    %21 = vector.extract_strided_slice %20 {offsets = [0, 0], sizes = [128, 8], strides = [1, 1]} : vector<128x128xf32> to vector<128x8xf32>
    %22 = vector.extract_strided_slice %20 {offsets = [0, 8], sizes = [128, 8], strides = [1, 1]} : vector<128x128xf32> to vector<128x8xf32>
    %23 = math.absf %22 : vector<128x8xf32>
    %cst_11 = arith.constant 0.000000e+00 : f32
    %24 = vector.broadcast %cst_11 : f32 to vector<128x8xf32>
    %25 = arith.subf %24, %23 : vector<128x8xf32>
    %26 = math.exp %25 : vector<128x8xf32>
    %cst_12 = arith.constant 1.000000e+00 : f32
    %27 = vector.broadcast %cst_12 : f32 to vector<128x8xf32>
    %28 = arith.addf %27, %26 : vector<128x8xf32>
    %29 = math.log %28 : vector<128x8xf32>
    %cst_13 = arith.constant 0.000000e+00 : f32
    %30 = vector.broadcast %cst_13 : f32 to vector<128x8xf32>
    %31 = arith.maximumf %22, %30 : vector<128x8xf32>
    %32 = arith.addf %29, %31 : vector<128x8xf32>
    %cst_14 = arith.constant 9.99999993E-9 : f32
    %33 = vector.broadcast %cst_14 : f32 to vector<128x8xf32>
    %34 = arith.addf %32, %33 : vector<128x8xf32>
    %35 = vector.extract_strided_slice %0 {offsets = [0, 32], sizes = [128, 8], strides = [1, 1]} : vector<128x128xf32> to vector<128x8xf32>
    %36 = arith.mulf %34, %35 : vector<128x8xf32>
    %37 = arith.addf %21, %36 : vector<128x8xf32>
    %cst_15 = arith.constant 0.000000e+00 : f32
    %38 = vector.broadcast %cst_15 : f32 to vector<128x8xf32>
    %39 = tpu.concatenate %37, %38 in 1 : vector<128x8xf32>, vector<128x8xf32> -> vector<128x16xf32>
    %c256 = arith.constant 256 : index
    %c0_16 = arith.constant 0 : index
    %40 = vector.load %arg2[%c256, %c0_16] : memref<400x128xbf16, #tpu.memory_space<vmem>>, vector<16x128xbf16>
    %c2 = arith.constant 2 : index
    %c0_17 = arith.constant 0 : index
    %41 = vector.load %arg3[%c2, %c0_17] : memref<8x128xf32, #tpu.memory_space<vmem>>, vector<1x128xf32>
    %42 = arith.truncf %39 : vector<128x16xf32> to vector<128x16xbf16>
    %cst_18 = arith.constant dense<0.000000e+00> : vector<128x128xf32>
    %43 = tpu.matmul %42, %40, %cst_18 {dimension_numbers = #tpu.dot_dimension_numbers<[1], [0], [0], [1], [0, 0, 1, 1], [], []>} : vector<128x16xbf16>, vector<16x128xbf16>, vector<128x128xf32> -> vector<128x128xf32>
    %44 = vector.broadcast %41 : vector<1x128xf32> to vector<128x128xf32>
    %45 = arith.addf %43, %44 : vector<128x128xf32>
    %cst_19 = arith.constant 0.000000e+00 : f32
    %46 = vector.broadcast %cst_19 : f32 to vector<128x128xf32>
    %47 = arith.subf %46, %45 : vector<128x128xf32>
    %48 = math.exp %47 : vector<128x128xf32>
    %cst_20 = arith.constant 1.000000e+00 : f32
    %49 = vector.broadcast %cst_20 : f32 to vector<128x128xf32>
    %50 = arith.addf %49, %48 : vector<128x128xf32>
    %cst_21 = arith.constant 1.000000e+00 : f32
    %51 = vector.broadcast %cst_21 : f32 to vector<128x128xf32>
    %52 = arith.divf %51, %50 : vector<128x128xf32>
    %53 = arith.mulf %45, %52 : vector<128x128xf32>
    %c272 = arith.constant 272 : index
    %c0_22 = arith.constant 0 : index
    %54 = vector.load %arg2[%c272, %c0_22] : memref<400x128xbf16, #tpu.memory_space<vmem>>, vector<128x128xbf16>
    %c3 = arith.constant 3 : index
    %c0_23 = arith.constant 0 : index
    %55 = vector.load %arg3[%c3, %c0_23] : memref<8x128xf32, #tpu.memory_space<vmem>>, vector<1x128xf32>
    %56 = arith.truncf %53 : vector<128x128xf32> to vector<128x128xbf16>
    %cst_24 = arith.constant dense<0.000000e+00> : vector<128x128xf32>
    %57 = tpu.matmul %56, %54, %cst_24 {dimension_numbers = #tpu.dot_dimension_numbers<[1], [0], [0], [1], [0, 0, 1, 1], [], []>} : vector<128x128xbf16>, vector<128x128xbf16>, vector<128x128xf32> -> vector<128x128xf32>
    %58 = vector.broadcast %55 : vector<1x128xf32> to vector<128x128xf32>
    %59 = arith.addf %57, %58 : vector<128x128xf32>
    %60 = vector.extract_strided_slice %0 {offsets = [0, 16], sizes = [128, 16], strides = [1, 1]} : vector<128x128xf32> to vector<128x16xf32>
    %61 = vector.extract_strided_slice %59 {offsets = [0, 0], sizes = [128, 16], strides = [1, 1]} : vector<128x128xf32> to vector<128x16xf32>
    %cst_25 = arith.constant 0.000000e+00 : f32
    %62 = vector.broadcast %cst_25 : f32 to vector<128x16xf32>
    %cst_26 = arith.constant 1.000000e+00 : f32
    %63 = vector.broadcast %cst_26 : f32 to vector<128x16xf32>
    %cst_27 = arith.constant 0.000000e+00 : f32
    %64 = vector.broadcast %cst_27 : f32 to vector<128x16xf32>
    %65 = arith.cmpf oeq, %60, %64 : vector<128x16xf32>
    %cst_28 = arith.constant 0.000000e+00 : f32
    %66 = vector.broadcast %cst_28 : f32 to vector<128x16xf32>
    %67 = arith.select %65, %61, %66 : vector<128x16xi1>, vector<128x16xf32>
    %68 = vector.extract_strided_slice %59 {offsets = [0, 16], sizes = [128, 16], strides = [1, 1]} : vector<128x128xf32> to vector<128x16xf32>
    %69 = arith.subf %68, %61 : vector<128x16xf32>
    %70 = math.absf %69 : vector<128x16xf32>
    %cst_29 = arith.constant 0.000000e+00 : f32
    %71 = vector.broadcast %cst_29 : f32 to vector<128x16xf32>
    %72 = arith.subf %71, %70 : vector<128x16xf32>
    %73 = math.exp %72 : vector<128x16xf32>
    %cst_30 = arith.constant 0.000000e+00 : f32
    %74 = vector.broadcast %cst_30 : f32 to vector<128x16xf32>
    %75 = arith.cmpf ogt, %69, %74 : vector<128x16xf32>
    %76 = arith.mulf %63, %73 : vector<128x16xf32>
    %cst_31 = arith.constant 1.000000e+00 : f32
    %77 = vector.broadcast %cst_31 : f32 to vector<128x16xf32>
    %78 = arith.addf %76, %77 : vector<128x16xf32>
    %79 = arith.addf %63, %73 : vector<128x16xf32>
    %80 = arith.select %75, %78, %79 : vector<128x16xi1>, vector<128x16xf32>
    %cst_32 = arith.constant 1.000000e+00 : f32
    %81 = vector.broadcast %cst_32 : f32 to vector<128x16xf32>
    %82 = arith.select %75, %81, %62 : vector<128x16xi1>, vector<128x16xf32>
    %83 = arith.select %75, %68, %61 : vector<128x16xi1>, vector<128x16xf32>
    %cst_33 = arith.constant 1.000000e+00 : f32
    %84 = vector.broadcast %cst_33 : f32 to vector<128x16xf32>
    %85 = arith.cmpf oeq, %60, %84 : vector<128x16xf32>
    %cst_34 = arith.constant 0.000000e+00 : f32
    %86 = vector.broadcast %cst_34 : f32 to vector<128x16xf32>
    %87 = arith.select %85, %68, %86 : vector<128x16xi1>, vector<128x16xf32>
    %88 = arith.addf %67, %87 : vector<128x16xf32>
    %89 = vector.extract_strided_slice %59 {offsets = [0, 32], sizes = [128, 16], strides = [1, 1]} : vector<128x128xf32> to vector<128x16xf32>
    %90 = arith.subf %89, %83 : vector<128x16xf32>
    %91 = math.absf %90 : vector<128x16xf32>
    %cst_35 = arith.constant 0.000000e+00 : f32
    %92 = vector.broadcast %cst_35 : f32 to vector<128x16xf32>
    %93 = arith.subf %92, %91 : vector<128x16xf32>
    %94 = math.exp %93 : vector<128x16xf32>
    %cst_36 = arith.constant 0.000000e+00 : f32
    %95 = vector.broadcast %cst_36 : f32 to vector<128x16xf32>
    %96 = arith.cmpf ogt, %90, %95 : vector<128x16xf32>
    %97 = arith.mulf %80, %94 : vector<128x16xf32>
    %cst_37 = arith.constant 1.000000e+00 : f32
    %98 = vector.broadcast %cst_37 : f32 to vector<128x16xf32>
    %99 = arith.addf %97, %98 : vector<128x16xf32>
    %100 = arith.addf %80, %94 : vector<128x16xf32>
    %101 = arith.select %96, %99, %100 : vector<128x16xi1>, vector<128x16xf32>
    %cst_38 = arith.constant 2.000000e+00 : f32
    %102 = vector.broadcast %cst_38 : f32 to vector<128x16xf32>
    %103 = arith.select %96, %102, %82 : vector<128x16xi1>, vector<128x16xf32>
    %104 = arith.select %96, %89, %83 : vector<128x16xi1>, vector<128x16xf32>
    %cst_39 = arith.constant 2.000000e+00 : f32
    %105 = vector.broadcast %cst_39 : f32 to vector<128x16xf32>
    %106 = arith.cmpf oeq, %60, %105 : vector<128x16xf32>
    %cst_40 = arith.constant 0.000000e+00 : f32
    %107 = vector.broadcast %cst_40 : f32 to vector<128x16xf32>
    %108 = arith.select %106, %89, %107 : vector<128x16xi1>, vector<128x16xf32>
    %109 = arith.addf %88, %108 : vector<128x16xf32>
    %110 = vector.extract_strided_slice %59 {offsets = [0, 48], sizes = [128, 16], strides = [1, 1]} : vector<128x128xf32> to vector<128x16xf32>
    %111 = arith.subf %110, %104 : vector<128x16xf32>
    %112 = math.absf %111 : vector<128x16xf32>
    %cst_41 = arith.constant 0.000000e+00 : f32
    %113 = vector.broadcast %cst_41 : f32 to vector<128x16xf32>
    %114 = arith.subf %113, %112 : vector<128x16xf32>
    %115 = math.exp %114 : vector<128x16xf32>
    %cst_42 = arith.constant 0.000000e+00 : f32
    %116 = vector.broadcast %cst_42 : f32 to vector<128x16xf32>
    %117 = arith.cmpf ogt, %111, %116 : vector<128x16xf32>
    %118 = arith.mulf %101, %115 : vector<128x16xf32>
    %cst_43 = arith.constant 1.000000e+00 : f32
    %119 = vector.broadcast %cst_43 : f32 to vector<128x16xf32>
    %120 = arith.addf %118, %119 : vector<128x16xf32>
    %121 = arith.addf %101, %115 : vector<128x16xf32>
    %122 = arith.select %117, %120, %121 : vector<128x16xi1>, vector<128x16xf32>
    %cst_44 = arith.constant 3.000000e+00 : f32
    %123 = vector.broadcast %cst_44 : f32 to vector<128x16xf32>
    %124 = arith.select %117, %123, %103 : vector<128x16xi1>, vector<128x16xf32>
    %125 = arith.select %117, %110, %104 : vector<128x16xi1>, vector<128x16xf32>
    %cst_45 = arith.constant 3.000000e+00 : f32
    %126 = vector.broadcast %cst_45 : f32 to vector<128x16xf32>
    %127 = arith.cmpf oeq, %60, %126 : vector<128x16xf32>
    %cst_46 = arith.constant 0.000000e+00 : f32
    %128 = vector.broadcast %cst_46 : f32 to vector<128x16xf32>
    %129 = arith.select %127, %110, %128 : vector<128x16xi1>, vector<128x16xf32>
    %130 = arith.addf %109, %129 : vector<128x16xf32>
    %131 = math.log %122 : vector<128x16xf32>
    %132 = arith.addf %125, %131 : vector<128x16xf32>
    %133 = arith.subf %132, %130 : vector<128x16xf32>
    %134 = arith.mulf %34, %34 : vector<128x8xf32>
    %135 = arith.mulf %21, %21 : vector<128x8xf32>
    %136 = arith.addf %134, %135 : vector<128x8xf32>
    %cst_47 = arith.constant 1.000000e+00 : f32
    %137 = vector.broadcast %cst_47 : f32 to vector<128x8xf32>
    %138 = arith.subf %136, %137 : vector<128x8xf32>
    %139 = math.log %134 : vector<128x8xf32>
    %140 = arith.subf %138, %139 : vector<128x8xf32>
    %cst_48 = arith.constant 5.000000e-01 : f32
    %141 = vector.broadcast %cst_48 : f32 to vector<128x8xf32>
    %142 = arith.mulf %141, %140 : vector<128x8xf32>
    %143 = vector.shape_cast %133 : vector<128x16xf32> to vector<1x128x16xf32>
    %cst_49 = arith.constant dense<0.000000e+00> : vector<1xf32>
    %144 = vector.multi_reduction <add>, %143, %cst_49 [1, 2] : vector<1x128x16xf32> to vector<1xf32>
    %145 = vector.shape_cast %144 : vector<1xf32> to vector<1x1x1xf32>
    %146 = vector.extract %145[0, 0, 0] : f32 from vector<1x1x1xf32>
    %147 = vector.shape_cast %142 : vector<128x8xf32> to vector<1x128x8xf32>
    %cst_50 = arith.constant dense<0.000000e+00> : vector<1xf32>
    %148 = vector.multi_reduction <add>, %147, %cst_50 [1, 2] : vector<1x128x8xf32> to vector<1xf32>
    %149 = vector.shape_cast %148 : vector<1xf32> to vector<1x1x1xf32>
    %150 = vector.extract %149[0, 0, 0] : f32 from vector<1x1x1xf32>
    %cst_51 = arith.constant 0.000000e+00 : f32
    %151 = vector.broadcast %cst_51 : f32 to vector<128x128xf32>
    %c0_52 = arith.constant 0 : index
    %c0_53 = arith.constant 0 : index
    %152 = vector.load %arg4[%c0_52, %c0_53] : memref<128x128xf32, #tpu.memory_space<vmem>>, vector<128x128xf32>
    tpu.vector_store %arg4[%c0_52, %c0_53], %151 {strides = array<i32>} : memref<128x128xf32, #tpu.memory_space<vmem>>, vector<128x128xf32>,
    %c0_54 = arith.constant 0 : index
    %c0_55 = arith.constant 0 : index
    %153 = vector.load %arg4[%c0_54, %c0_55] : memref<128x128xf32, #tpu.memory_space<vmem>>, vector<128x8xf32>
    tpu.vector_store %arg4[%c0_54, %c0_55], %21 {strides = array<i32>} : memref<128x128xf32, #tpu.memory_space<vmem>>, vector<128x8xf32>,
    %c0_56 = arith.constant 0 : index
    %c8 = arith.constant 8 : index
    %154 = vector.load %arg4[%c0_56, %c8] : memref<128x128xf32, #tpu.memory_space<vmem>>, vector<128x8xf32>
    tpu.vector_store %arg4[%c0_56, %c8], %34 {strides = array<i32>} : memref<128x128xf32, #tpu.memory_space<vmem>>, vector<128x8xf32>,
    %c0_57 = arith.constant 0 : index
    %c16 = arith.constant 16 : index
    %155 = vector.load %arg4[%c0_57, %c16] : memref<128x128xf32, #tpu.memory_space<vmem>>, vector<128x8xf32>
    tpu.vector_store %arg4[%c0_57, %c16], %37 {strides = array<i32>} : memref<128x128xf32, #tpu.memory_space<vmem>>, vector<128x8xf32>,
    %c0_58 = arith.constant 0 : index
    %c24 = arith.constant 24 : index
    %156 = vector.load %arg4[%c0_58, %c24] : memref<128x128xf32, #tpu.memory_space<vmem>>, vector<128x16xf32>
    tpu.vector_store %arg4[%c0_58, %c24], %124 {strides = array<i32>} : memref<128x128xf32, #tpu.memory_space<vmem>>, vector<128x16xf32>,
    %157 = tpu.iota {dimensions = array<i32: 0>} : vector<8x128xi32>
    %158 = tpu.iota {dimensions = array<i32: 1>} : vector<8x128xi32>
    %c0_i32 = arith.constant 0 : i32
    %159 = vector.broadcast %c0_i32 : i32 to vector<8x128xi32>
    %160 = arith.cmpi eq, %157, %159 : vector<8x128xi32>
    %c0_i32_59 = arith.constant 0 : i32
    %161 = vector.broadcast %c0_i32_59 : i32 to vector<8x128xi32>
    %162 = arith.cmpi eq, %158, %161 : vector<8x128xi32>
    %163 = arith.andi %160, %162 : vector<8x128xi1>
    %cst_60 = arith.constant 0.000000e+00 : f32
    %164 = vector.broadcast %146 : f32 to vector<8x128xf32>
    %165 = vector.broadcast %cst_60 : f32 to vector<8x128xf32>
    %166 = arith.select %163, %164, %165 : vector<8x128xi1>, vector<8x128xf32>
    %c0_i32_61 = arith.constant 0 : i32
    %167 = vector.broadcast %c0_i32_61 : i32 to vector<8x128xi32>
    %168 = arith.cmpi eq, %157, %167 : vector<8x128xi32>
    %c1_i32 = arith.constant 1 : i32
    %169 = vector.broadcast %c1_i32 : i32 to vector<8x128xi32>
    %170 = arith.cmpi eq, %158, %169 : vector<8x128xi32>
    %171 = arith.andi %168, %170 : vector<8x128xi1>
    %172 = vector.broadcast %150 : f32 to vector<8x128xf32>
    %173 = arith.select %171, %172, %166 : vector<8x128xi1>, vector<8x128xf32>
    %c0_62 = arith.constant 0 : index
    %c0_63 = arith.constant 0 : index
    %174 = vector.load %arg5[%c0_62, %c0_63] : memref<8x128xf32, #tpu.memory_space<vmem>>, vector<8x128xf32>
    tpu.vector_store %arg5[%c0_62, %c0_63], %173 {strides = array<i32>} : memref<8x128xf32, #tpu.memory_space<vmem>>, vector<8x128xf32>,
    return
  }
  func.func @transform_0(%arg0: i32) -> (i32, i32) {
    %c0_i32 = arith.constant 0 : i32
    %c0_i32_0 = arith.constant 0 : i32
    return %arg0, %c0_i32 : i32, i32
  }
  func.func @transform_1(%arg0: i32) -> (i32, i32) {
    %c0_i32 = arith.constant 0 : i32
    %c0_i32_0 = arith.constant 0 : i32
    %c0_i32_1 = arith.constant 0 : i32
    return %c0_i32, %c0_i32_0 : i32, i32
  }
  func.func @transform_2(%arg0: i32) -> (i32, i32) {
    %c0_i32 = arith.constant 0 : i32
    %c0_i32_0 = arith.constant 0 : i32
    %c0_i32_1 = arith.constant 0 : i32
    return %c0_i32, %c0_i32_0 : i32, i32
  }
  func.func @transform_3(%arg0: i32) -> (i32, i32) {
    %c0_i32 = arith.constant 0 : i32
    %c0_i32_0 = arith.constant 0 : i32
    return %arg0, %c0_i32 : i32, i32
  }
  func.func @transform_4(%arg0: i32) -> (i32, i32) {
    %c0_i32 = arith.constant 0 : i32
    %c0_i32_0 = arith.constant 0 : i32
    return %arg0, %c0_i32 : i32, i32
  }
}

</mosaic_0001>

<llo_original>
// kernel: vae_forward.1
$region0: #{vae_forward.1}
  #allocation0 [shape = 'u32[]', space=smem, size = 0x4, offset = 0x4, fixed_abs, tag = 'smem constant byte address 0x4 - core index']
  #allocation1 [shape = 'u32[144,128]{1,0:T(1,128)}', space=vmem, size = 0x12000, scoped, tag = 'internal scratch']
  %s0 = inlined_call_operand.hbm [shape: f32[256,128], index: 0, kind: input, shape index: {}]
  %s1 = inlined_call_operand.hbm [shape: bf16[400,128], index: 1, kind: input, shape index: {}]
  %s2 = inlined_call_operand.hbm [shape: f32[8,128], index: 2, kind: input, shape index: {}]
  %s3 = inlined_call_operand.vmem [shape: f32[256,128], index: 3, kind: output, shape index: {0}]
  %s4 = inlined_call_operand.vmem [shape: f32[16,128], index: 4, kind: output, shape index: {1}]
  %5 = xla_tuple %s3, %s4
  %s6 = sld [smem:[#allocation0]]
  $region65: #{vae_forward.1} parent=0
    _
  %s8 = ssub.s32 1, %s6
  %s9 = scalar_select 0, %s8, %s6
  $region1: #{vae_forward.1} parent=0
    #allocation2 [shape = 'u8[131072]{0}', space=vmem, size = 0x20000, scoped, tag = 'input window, operand 0']
    #allocation3 [shape = 's32[2]{0}', space=sflag, size = 0x8, scoped, tag = 'scoped memory for vae_forward.1']
    #allocation4 [shape = 'u8[102400]{0}', space=vmem, size = 0x19000, scoped, tag = 'input window, operand 1, single buffered']
    #allocation5 [shape = 's32[1]{0}', space=sflag, size = 0x4, scoped, tag = 'scoped memory for vae_forward.1']
    #allocation6 [shape = 'u8[4096]{0}', space=vmem, size = 0x1000, scoped, tag = 'input window, operand 2, single buffered']
    %10 = vsyncpa [#allocation3], 0
    %s11 = scalar_lea.sflag [#allocation3], 1
    %12 = vsyncpa %s11, 0
    %13 = vsyncpa [#allocation5], 0
    loop: start=0, step=1, limit=4
    $region2: #{vae_forward.1} parent=1 // loop_pre_header
      _
    $region3: #{vae_forward.1} parent=1 // loop_header
      %s15 = sphi 0, %s19
      %p16 = scmp.ge.s32.totalorder %s15, 4
      %s25 = sphi 0, %s27
      %s28 = sphi 0, %s25
      %s29 = sphi 0, %s28
      %s45 = sphi 0, %s29
      %s49 = sphi 0, %s49
      %s51 = sphi 0, %s49
      %s52 = sphi 0, %s51
      %s66 = sphi 0, %s52
      %s70 = sphi 0, %s70
      %s72 = sphi 0, %s70
      %s73 = sphi 0, %s72
      %s87 = sphi 0, %s73
      %s93 = sphi 0, %s95
      %s96 = sphi 0, %s93
      %s97 = sphi 0, %s96
      %s113 = sphi 0, %s97
      %s119 = sphi 0, %s121
      %s122 = sphi 0, %s119
      %s123 = sphi 0, %s122
      %s139 = sphi 0, %s123
    $region4: #{vae_forward.1} parent=1 // loop_header_branch
      %18 = sbr.rel (%p16) target = $region8
    $region5: #{vae_forward.1} parent=1 // loop_body
      %s20 = ssub.s32 %s15, 1
      %s21 = ssub.s32 %s15, 2
      %s22 = sadd.s32 %s15, 1
      %s23 = ssub.s32 %s15, %s22
      %p24 = scmp.eq.s32.totalorder %s23, 0
      %s26 = sadd.s32 %s25, 1
      %s27 = scalar_select %p24, %s25, %s26
      %p30 = pneg %p24
      %p31 = scmp.eq.s32.totalorder %s15, 1
      %p32 = por %p30, %p31
      %p33 = scmp.ne.s32.totalorder %s25, %s28
      %p34 = scmp.eq.s32.totalorder %s15, 0
      %p35 = por %p33, %p34
      %p36 = scmp.ne.s32.totalorder %s25, %s28
      %p37 = scmp.eq.s32.totalorder %s20, 1
      %p38 = por %p36, %p37
      %p39 = scmp.ne.s32.totalorder %s28, %s29
      %p40 = scmp.eq.s32.totalorder %s20, 0
      %p41 = por %p39, %p40
      %p42 = scmp.ne.s32.totalorder %s28, %s29
      %p43 = scmp.eq.s32.totalorder %s21, 1
      %p44 = por %p42, %p43
      %p46 = scmp.ne.s32.totalorder %s29, %s45
      %p47 = scmp.eq.s32.totalorder %s21, 0
      %p48 = por %p46, %p47
      %s50 = sadd.s32 %s49, 1
      %p53 = scmp.eq.s32.totalorder %s15, 1
      %p54 = scmp.ne.s32.totalorder %s49, %s51
      %p55 = scmp.eq.s32.totalorder %s15, 0
      %p56 = por %p54, %p55
      %p57 = scmp.ne.s32.totalorder %s49, %s51
      %p58 = scmp.eq.s32.totalorder %s20, 1
      %p59 = por %p57, %p58
      %p60 = scmp.ne.s32.totalorder %s51, %s52
      %p61 = scmp.eq.s32.totalorder %s20, 0
      %p62 = por %p60, %p61
      %p63 = scmp.ne.s32.totalorder %s51, %s52
      %p64 = scmp.eq.s32.totalorder %s21, 1
      %p65 = por %p63, %p64
      %p67 = scmp.ne.s32.totalorder %s52, %s66
      %p68 = scmp.eq.s32.totalorder %s21, 0
      %p69 = por %p67, %p68
      %s71 = sadd.s32 %s70, 1
      %p74 = scmp.eq.s32.totalorder %s15, 1
      %p75 = scmp.ne.s32.totalorder %s70, %s72
      %p76 = scmp.eq.s32.totalorder %s15, 0
      %p77 = por %p75, %p76
      %p78 = scmp.ne.s32.totalorder %s70, %s72
      %p79 = scmp.eq.s32.totalorder %s20, 1
      %p80 = por %p78, %p79
      %p81 = scmp.ne.s32.totalorder %s72, %s73
      %p82 = scmp.eq.s32.totalorder %s20, 0
      %p83 = por %p81, %p82
      %p84 = scmp.ne.s32.totalorder %s72, %s73
      %p85 = scmp.eq.s32.totalorder %s21, 1
      %p86 = por %p84, %p85
      %p88 = scmp.ne.s32.totalorder %s73, %s87
      %p89 = scmp.eq.s32.totalorder %s21, 0
      %p90 = por %p88, %p89
      %s91 = ssub.s32 %s15, %s22
      %p92 = scmp.eq.s32.totalorder %s91, 0
      %s94 = sadd.s32 %s93, 1
      %s95 = scalar_select %p92, %s93, %s94
      %p98 = pneg %p92
      %p99 = scmp.eq.s32.totalorder %s15, 1
      %p100 = por %p98, %p99
      %p101 = scmp.ne.s32.totalorder %s93, %s96
      %p102 = scmp.eq.s32.totalorder %s15, 0
      %p103 = por %p101, %p102
      %p104 = scmp.ne.s32.totalorder %s93, %s96
      %p105 = scmp.eq.s32.totalorder %s20, 1
      %p106 = por %p104, %p105
      %p107 = scmp.ne.s32.totalorder %s96, %s97
      %p108 = scmp.eq.s32.totalorder %s20, 0
      %p109 = por %p107, %p108
      %p110 = scmp.ne.s32.totalorder %s96, %s97
      %p111 = scmp.eq.s32.totalorder %s21, 1
      %p112 = por %p110, %p111
      %p114 = scmp.ne.s32.totalorder %s97, %s113
      %p115 = scmp.eq.s32.totalorder %s21, 0
      %p116 = por %p114, %p115
      %s117 = ssub.s32 %s15, %s22
      %p118 = scmp.eq.s32.totalorder %s117, 0
      %s120 = sadd.s32 %s119, 1
      %s121 = scalar_select %p118, %s119, %s120
      %p124 = pneg %p118
      %p125 = scmp.eq.s32.totalorder %s15, 1
      %p126 = por %p124, %p125
      %p127 = scmp.ne.s32.totalorder %s119, %s122
      %p128 = scmp.eq.s32.totalorder %s15, 0
      %p129 = por %p127, %p128
      %p130 = scmp.ne.s32.totalorder %s119, %s122
      %p131 = scmp.eq.s32.totalorder %s20, 1
      %p132 = por %p130, %p131
      %p133 = scmp.ne.s32.totalorder %s122, %s123
      %p134 = scmp.eq.s32.totalorder %s20, 0
      %p135 = por %p133, %p134
      %p136 = scmp.ne.s32.totalorder %s122, %s123
      %p137 = scmp.eq.s32.totalorder %s21, 1
      %p138 = por %p136, %p137
      %p140 = scmp.ne.s32.totalorder %s123, %s139
      %p141 = scmp.eq.s32.totalorder %s21, 0
      %p142 = por %p140, %p141
      %p143 = scmp.le.s32.totalorder 1, %s15
      %p144 = scmp.lt.s32.totalorder %s15, 3
      %p145 = pnand %p143, %p144
      %p146 = pneg %p145
      // Predicated region
      $region9: #{vae_forward.1} parent=5 // pred_check
        _
      $region10: #{vae_forward.1} parent=5 // pred_check_branch
        %148 = sbr.rel (%p145) target = $region12
      $region11: #{vae_forward.1} parent=5 // pred_region
        %s149 = ssub.s32 %s15, 1
        // Predicated region
        $region13: #{vae_forward.1} parent=11 // pred_check
          %p150 = pneg %p62
        $region14: #{vae_forward.1} parent=11 // pred_check_branch
          %152 = sbr.rel (%p150) target = $region16
        $region15: #{vae_forward.1} parent=11 // pred_region
          %s154 = ssub.s32 3200, 3200
          %155 = vsyncadd [#allocation5], %s154
          %s156 = sshll.u32 [#allocation4], 4
          %s157 = int_to_ptr.vmem [resolvable:$true] %s156
          %162 = dma.hbm_to_vmem [thread:$0]  %s1, 3200, %s157, [#allocation5], 64, 64, 4
        $region16: #{vae_forward.1} parent=11 // pred_fallthru
          _
        // Predicated region
        $region17: #{vae_forward.1} parent=11 // pred_check
          %p163 = pneg %p83
        $region18: #{vae_forward.1} parent=11 // pred_check_branch
          %165 = sbr.rel (%p163) target = $region20
        $region19: #{vae_forward.1} parent=11 // pred_region
          %s167 = ssub.s32 128, 128
          %168 = vsyncadd [#allocation5], %s167
          %s170 = sshll.u32 [#allocation6], 4
          %s171 = int_to_ptr.vmem [resolvable:$true] %s170
          %173 = dma.hbm_to_vmem [thread:$0]  %s2, 128, %s171, [#allocation5]
        $region20: #{vae_forward.1} parent=11 // pred_fallthru
          _
      $region12: #{vae_forward.1} parent=5 // pred_fallthru
        _
      %p174 = scmp.lt.s32.totalorder %s15, 2
      // Predicated region
      $region21: #{vae_forward.1} parent=5 // pred_check
        %p175 = pneg %p174
      $region22: #{vae_forward.1} parent=5 // pred_check_branch
        %177 = sbr.rel (%p175) target = $region24
      $region23: #{vae_forward.1} parent=5 // pred_region
        // Predicated region
        $region25: #{vae_forward.1} parent=23 // pred_check
          %p178 = pneg %p35
        $region26: #{vae_forward.1} parent=23 // pred_check_branch
          %180 = sbr.rel (%p178) target = $region28
        $region27: #{vae_forward.1} parent=23 // pred_region
          %s181 = sand.u32 %s25, 1
          %s182 = scalar_lea.sflag [#allocation3], %s181
          %s183 = sand.u32 %s25, 1
          %s184 = smul.addr %s183, 128
          %s185 = scalar_lea.vmem [#allocation2], %s184
          %s186 = smul.u32 16, %s15
          %s188 = ssub.s32 2048, 2048
          %189 = vsyncadd %s182, %s188
          %s190 = smul.addr %s186, 128
          %s191 = scalar_lea.hbm %s0, %s190
          %s192 = sshll.u32 %s185, 4
          %s193 = int_to_ptr.vmem [resolvable:$true] %s192
          %198 = dma.hbm_to_vmem [thread:$0]  %s191, 2048, %s193, %s182, 128, 128, 8
        $region28: #{vae_forward.1} parent=23 // pred_fallthru
          _
      $region24: #{vae_forward.1} parent=5 // pred_fallthru
        _
      %p199 = scmp.le.s32.totalorder 1, %s15
      %p200 = scmp.lt.s32.totalorder %s15, 3
      %p201 = pnand %p199, %p200
      %p202 = pneg %p201
      // Predicated region
      $region29: #{vae_forward.1} parent=5 // pred_check
        _
      $region30: #{vae_forward.1} parent=5 // pred_check_branch
        %204 = sbr.rel (%p201) target = $region32
      $region31: #{vae_forward.1} parent=5 // pred_region
        %s205 = ssub.s32 %s15, 1
        %s206 = sand.u32 %s28, 1
        %s207 = scalar_lea.sflag [#allocation3], %s206
        %s208 = sand.u32 %s28, 1
        %s209 = smul.addr %s208, 128
        %s210 = scalar_lea.vmem [#allocation2], %s209
        // Predicated region
        $region33: #{vae_forward.1} parent=31 // pred_check
          %p211 = pneg %p41
        $region34: #{vae_forward.1} parent=31 // pred_check_branch
          %213 = sbr.rel (%p211) target = $region36
        $region35: #{vae_forward.1} parent=31 // pred_region
          %214 = dma.done %s207, 2048
        $region36: #{vae_forward.1} parent=31 // pred_fallthru
          _
        // Predicated region
        $region37: #{vae_forward.1} parent=31 // pred_check
          %p215 = pneg %p62
        $region38: #{vae_forward.1} parent=31 // pred_check_branch
          %217 = sbr.rel (%p215) target = $region40
        $region39: #{vae_forward.1} parent=31 // pred_region
          %218 = dma.done [#allocation5], 3200
        $region40: #{vae_forward.1} parent=31 // pred_fallthru
          _
        // Predicated region
        $region41: #{vae_forward.1} parent=31 // pred_check
          %p219 = pneg %p83
        $region42: #{vae_forward.1} parent=31 // pred_check_branch
          %221 = sbr.rel (%p219) target = $region44
        $region43: #{vae_forward.1} parent=31 // pred_region
          %222 = dma.done [#allocation5], 128
        $region44: #{vae_forward.1} parent=31 // pred_fallthru
          _
        %s223 = sand.u32 %s28, 1
        %s224 = scalar_lea.sflag [#allocation3], %s223
        %s225 = sand.u32 %s28, 1
        %s226 = smul.addr %s225, 128
        %s227 = scalar_lea.vmem [#allocation2], %s226
        %p228 = pneg %p41
        %p229 = pneg %p38
        %p230 = pneg %p62
        %p231 = pneg %p59
        %p232 = pneg %p83
        %p233 = pneg %p80
        %p234 = pneg %p109
        %p235 = pneg %p106
        %s236 = smul.u32 16, %s20
        %p237 = scmp.lt.s32.totalorder %s236, 31
        %s238 = scalar_select %p237, %s236, 31
        %s239 = smul.addr %s238, 8
        %s240 = scalar_lea.vmem %s3, %s239
        %p241 = pneg %p135
        %p242 = pneg %p132
        %p243 = scmp.lt.s32.totalorder %s20, 1
        %s244 = scalar_select %p243, %s20, 1
        %s245 = smul.addr %s244, 8
        %s246 = scalar_lea.vmem %s4, %s245
        %s247 = smul.u32 16, %s20
        %s248 = smul.u32 16, %s20
        %p249 = scmp.lt.s32.totalorder %s248, 31
        %s250 = scalar_select %p249, %s248, 31
        %s251 = smul.addr %s250, 8
        %s252 = scalar_lea.vmem %s3, %s251
        %s253 = smul.u32 16, %s20
        %p254 = scmp.lt.s32.totalorder %s20, 1
        %s255 = scalar_select %p254, %s20, 1
        %s256 = smul.addr %s255, 8
        %s257 = scalar_lea.vmem %s4, %s256
        %v259 = vld [vmem:[%s210] sm:$0xff]
        %v260 = vld [vmem:[%s210 + $0x8] sm:$0xff]
        %v261 = vld [vmem:[%s210 + $0x10] sm:$0xff]
        %v262 = vld [vmem:[%s210 + $0x18] sm:$0xff]
        %v263 = vld [vmem:[%s210 + $0x20] sm:$0xff]
        %v264 = vld [vmem:[%s210 + $0x28] sm:$0xff]
        %v265 = vld [vmem:[%s210 + $0x30] sm:$0xff]
        %v266 = vld [vmem:[%s210 + $0x38] sm:$0xff]
        %v267 = vld [vmem:[%s210 + $0x40] sm:$0xff]
        %v268 = vld [vmem:[%s210 + $0x48] sm:$0xff]
        %v269 = vld [vmem:[%s210 + $0x50] sm:$0xff]
        %v270 = vld [vmem:[%s210 + $0x58] sm:$0xff]
        %v271 = vld [vmem:[%s210 + $0x60] sm:$0xff]
        %v272 = vld [vmem:[%s210 + $0x68] sm:$0xff]
        %v273 = vld [vmem:[%s210 + $0x70] sm:$0xff]
        %v274 = vld [vmem:[%s210 + $0x78] sm:$0xff]
        %v275 = vpack.c.bf16 %v260, %v259
        %v276 = vpack.c.bf16 %v262, %v261
        %v277 = vpack.c.bf16 %v264, %v263
        %v278 = vpack.c.bf16 %v266, %v265
        %v279 = vpack.c.bf16 %v268, %v267
        %v280 = vpack.c.bf16 %v270, %v269
        %v281 = vpack.c.bf16 %v272, %v271
        %v282 = vpack.c.bf16 %v274, %v273
        %v283 = vld [vmem:[#allocation4] sm:$0xf]
        %v284 = vld [vmem:[#allocation4 + $0x4] sm:$0xf]
        %v285 = vld [vmem:[#allocation4 + $0x8] sm:$0xf]
        %v286 = vld [vmem:[#allocation4 + $0xc] sm:$0xf]
        %v287 = vld [vmem:[#allocation4 + $0x10] sm:$0xf]
        %v288 = vld [vmem:[#allocation4 + $0x14] sm:$0xf]
        %v289 = vld [vmem:[#allocation4 + $0x18] sm:$0xf]
        %v290 = vld [vmem:[#allocation4 + $0x1c] sm:$0xf]
        %v291 = vld [vmem:[#allocation4 + $0x20] sm:$0xf]
        %v292 = vld [vmem:[#allocation4 + $0x24] sm:$0xf]
        %v293 = vld [vmem:[#allocation4 + $0x28] sm:$0xf]
        %v294 = vld [vmem:[#allocation4 + $0x2c] sm:$0xf]
        %v295 = vld [vmem:[#allocation4 + $0x30] sm:$0xf]
        %v296 = vld [vmem:[#allocation4 + $0x34] sm:$0xf]
        %v297 = vld [vmem:[#allocation4 + $0x38] sm:$0xf]
        %v298 = vld [vmem:[#allocation4 + $0x3c] sm:$0xf]
        %v299 = vld [vmem:[#allocation6] sm:$0x1]
        %v300 = vlaneseq
        %v301 = vshrl.u32 %v300, 7
        %v302 = vsub.s32 0, %v301
        %v303 = vrot.slane %v299, %v302
        %v320 = vunpack.c.l.b16 %v283
        %v321 = vunpack.c.l.b16 %v284
        %v322 = vunpack.c.l.b16 %v285
        %v323 = vunpack.c.l.b16 %v286
        %v324 = vunpack.c.l.b16 %v287
        %v325 = vunpack.c.l.b16 %v288
        %v326 = vunpack.c.l.b16 %v289
        %v327 = vunpack.c.l.b16 %v290
        %v328 = vunpack.c.l.b16 %v291
        %v329 = vunpack.c.l.b16 %v292
        %v330 = vunpack.c.l.b16 %v293
        %v331 = vunpack.c.l.b16 %v294
        %v332 = vunpack.c.l.b16 %v295
        %v333 = vunpack.c.l.b16 %v296
        %v334 = vunpack.c.l.b16 %v297
        %v335 = vunpack.c.l.b16 %v298
        %v336 = vpack.c.b16 %v321, %v320
        %v337 = vpack.c.b16 %v323, %v322
        %v338 = vpack.c.b16 %v325, %v324
        %v339 = vpack.c.b16 %v327, %v326
        %v340 = vpack.c.b16 %v329, %v328
        %v341 = vpack.c.b16 %v331, %v330
        %v342 = vpack.c.b16 %v333, %v332
        %v343 = vpack.c.b16 %v335, %v334
        %352 = vmatprep.subr.bf16.mxu0 0
        %353 = vmatpush1.bf16.msra.mxu0 %v336
        %354 = vmatprep.subr.bf16.mxu0 0
        %355 = vmatpush1.bf16.msra.mxu0 %v337
        %356 = vmatprep.subr.bf16.mxu0 0
        %357 = vmatpush1.bf16.msra.mxu0 %v338
        %358 = vmatprep.subr.bf16.mxu0 0
        %359 = vmatpush1.bf16.msra.mxu0 %v339
        %360 = vmatprep.subr.bf16.mxu0 0
        %361 = vmatpush1.bf16.msra.mxu0 %v340
        %362 = vmatprep.subr.bf16.mxu0 0
        %363 = vmatpush1.bf16.msra.mxu0 %v341
        %364 = vmatprep.subr.bf16.mxu0 0
        %365 = vmatpush1.bf16.msra.mxu0 %v342
        %366 = vmatprep.subr.bf16.mxu0 0
        %367 = vmatpush1.bf16.msra.mxu0 %v343
        %368 = vmatprep.subr.bf16.mxu0 0
        %369 = vmatpush1.bf16.msra.mxu0 0
        %370 = vmatprep.subr.bf16.mxu0 0
        %371 = vmatpush1.bf16.msra.mxu0 0
        %372 = vmatprep.subr.bf16.mxu0 0
        %373 = vmatpush1.bf16.msra.mxu0 0
        %374 = vmatprep.subr.bf16.mxu0 0
        %375 = vmatpush1.bf16.msra.mxu0 0
        %376 = vmatprep.subr.bf16.mxu0 0
        %377 = vmatpush1.bf16.msra.mxu0 0
        %378 = vmatprep.subr.bf16.mxu0 0
        %379 = vmatpush1.bf16.msra.mxu0 0
        %380 = vmatprep.subr.bf16.mxu0 0
        %381 = vmatpush1.bf16.msra.mxu0 0
        %382 = vmatprep.subr.bf16.mxu0 0
        %383 = vmatpush1.bf16.msra.mxu0 0
        %384 = vmatprep.mubr.bf16.mxu0 0
        %385 = vmatmul.mubr.bf16.gmra.mrb[0].mxu0 %v275
        %v386 = vpop.f32.mrb[0].mxu0
        %v387 = vadd.f32 %v303, %v386
        %v388 = vpop.f32.mrb[0].mxu0
        %v389 = vpop.f32.mrb[0].mxu0
        %v390 = vadd.f32 %v303, %v389
        %v391 = vpop.f32.mrb[0].mxu0
        %392 = vmatprep.mubr.bf16.mxu0 0
        %393 = vmatmul.mubr.bf16.gmra.mrb[0].mxu0 %v276
        %v394 = vpop.f32.mrb[0].mxu0
        %v395 = vadd.f32 %v303, %v394
        %v396 = vpop.f32.mrb[0].mxu0
        %v397 = vpop.f32.mrb[0].mxu0
        %v398 = vadd.f32 %v303, %v397
        %v399 = vpop.f32.mrb[0].mxu0
        %400 = vmatprep.mubr.bf16.mxu0 0
        %401 = vmatmul.mubr.bf16.gmra.mrb[0].mxu0 %v277
        %v402 = vpop.f32.mrb[0].mxu0
        %v403 = vadd.f32 %v303, %v402
        %v404 = vpop.f32.mrb[0].mxu0
        %v405 = vpop.f32.mrb[0].mxu0
        %v406 = vadd.f32 %v303, %v405
        %v407 = vpop.f32.mrb[0].mxu0
        %408 = vmatprep.mubr.bf16.mxu0 0
        %409 = vmatmul.mubr.bf16.gmra.mrb[0].mxu0 %v278
        %v410 = vpop.f32.mrb[0].mxu0
        %v411 = vadd.f32 %v303, %v410
        %v412 = vpop.f32.mrb[0].mxu0
        %v413 = vpop.f32.mrb[0].mxu0
        %v414 = vadd.f32 %v303, %v413
        %v415 = vpop.f32.mrb[0].mxu0
        %416 = vmatprep.mubr.bf16.mxu0 0
        %417 = vmatmul.mubr.bf16.gmra.mrb[0].mxu0 %v279
        %v418 = vpop.f32.mrb[0].mxu0
        %v419 = vadd.f32 %v303, %v418
        %v420 = vpop.f32.mrb[0].mxu0
        %v421 = vpop.f32.mrb[0].mxu0
        %v422 = vadd.f32 %v303, %v421
        %v423 = vpop.f32.mrb[0].mxu0
        %424 = vmatprep.mubr.bf16.mxu0 0
        %425 = vmatmul.mubr.bf16.gmra.mrb[0].mxu0 %v280
        %v426 = vpop.f32.mrb[0].mxu0
        %v427 = vadd.f32 %v303, %v426
        %v428 = vpop.f32.mrb[0].mxu0
        %v429 = vpop.f32.mrb[0].mxu0
        %v430 = vadd.f32 %v303, %v429
        %v431 = vpop.f32.mrb[0].mxu0
        %432 = vmatprep.mubr.bf16.mxu0 0
        %433 = vmatmul.mubr.bf16.gmra.mrb[0].mxu0 %v281
        %v434 = vpop.f32.mrb[0].mxu0
        %v435 = vadd.f32 %v303, %v434
        %v436 = vpop.f32.mrb[0].mxu0
        %v437 = vpop.f32.mrb[0].mxu0
        %v438 = vadd.f32 %v303, %v437
        %v439 = vpop.f32.mrb[0].mxu0
        %440 = vmatprep.mubr.bf16.mxu0 0
        %441 = vmatmul.mubr.bf16.gmra.mrb[0].mxu0 %v282
        %v442 = vpop.f32.mrb[0].mxu0
        %v443 = vadd.f32 %v303, %v442
        %v444 = vpop.f32.mrb[0].mxu0
        %v445 = vpop.f32.mrb[0].mxu0
        %v446 = vadd.f32 %v303, %v445
        %v447 = vpop.f32.mrb[0].mxu0
        %448 = vdwg.mxu0
        %v449 = vsub.f32 0.0, %v387
        %v450 = vsub.f32 0.0, %v390
        %v451 = vsub.f32 0.0, %v395
        %v452 = vsub.f32 0.0, %v398
        %v453 = vsub.f32 0.0, %v403
        %v454 = vsub.f32 0.0, %v406
        %v455 = vsub.f32 0.0, %v411
        %v456 = vsub.f32 0.0, %v414
        %v457 = vsub.f32 0.0, %v419
        %v458 = vsub.f32 0.0, %v422
        %v459 = vsub.f32 0.0, %v427
        %v460 = vsub.f32 0.0, %v430
        %v461 = vsub.f32 0.0, %v435
        %v462 = vsub.f32 0.0, %v438
        %v463 = vsub.f32 0.0, %v443
        %v464 = vsub.f32 0.0, %v446
        %v465 = vmul.f32 %v449, 1.442695
        %v466 = vpow.pop %v465
        %v467 = vmul.f32 %v450, 1.442695
        %v468 = vpow.pop %v467
        %v469 = vmul.f32 %v451, 1.442695
        %v470 = vpow.pop %v469
        %v471 = vmul.f32 %v452, 1.442695
        %v472 = vpow.pop %v471
        %v473 = vmul.f32 %v453, 1.442695
        %v474 = vpow.pop %v473
        %v475 = vmul.f32 %v454, 1.442695
        %v476 = vpow.pop %v475
        %v477 = vmul.f32 %v455, 1.442695
        %v478 = vpow.pop %v477
        %v479 = vmul.f32 %v456, 1.442695
        %v480 = vpow.pop %v479
        %v481 = vmul.f32 %v457, 1.442695
        %v482 = vpow.pop %v481
        %v483 = vmul.f32 %v458, 1.442695
        %v484 = vpow.pop %v483
        %v485 = vmul.f32 %v459, 1.442695
        %v486 = vpow.pop %v485
        %v487 = vmul.f32 %v460, 1.442695
        %v488 = vpow.pop %v487
        %v489 = vmul.f32 %v461, 1.442695
        %v490 = vpow.pop %v489
        %v491 = vmul.f32 %v462, 1.442695
        %v492 = vpow.pop %v491
        %v493 = vmul.f32 %v463, 1.442695
        %v494 = vpow.pop %v493
        %v495 = vmul.f32 %v464, 1.442695
        %v496 = vpow.pop %v495
        %v497 = vadd.f32 %v466, 1.0
        %v498 = vadd.f32 %v468, 1.0
        %v499 = vadd.f32 %v470, 1.0
        %v500 = vadd.f32 %v472, 1.0
        %v501 = vadd.f32 %v474, 1.0
        %v502 = vadd.f32 %v476, 1.0
        %v503 = vadd.f32 %v478, 1.0
        %v504 = vadd.f32 %v480, 1.0
        %v505 = vadd.f32 %v482, 1.0
        %v506 = vadd.f32 %v484, 1.0
        %v507 = vadd.f32 %v486, 1.0
        %v508 = vadd.f32 %v488, 1.0
        %v509 = vadd.f32 %v490, 1.0
        %v510 = vadd.f32 %v492, 1.0
        %v511 = vadd.f32 %v494, 1.0
        %v512 = vadd.f32 %v496, 1.0
        %v513 = vrcp.pop %v497
        %v514 = vmul.f32 1.0, %v513
        %v515 = vrcp.pop %v498
        %v516 = vmul.f32 1.0, %v515
        %v517 = vrcp.pop %v499
        %v518 = vmul.f32 1.0, %v517
        %v519 = vrcp.pop %v500
        %v520 = vmul.f32 1.0, %v519
        %v521 = vrcp.pop %v501
        %v522 = vmul.f32 1.0, %v521
        %v523 = vrcp.pop %v502
        %v524 = vmul.f32 1.0, %v523
        %v525 = vrcp.pop %v503
        %v526 = vmul.f32 1.0, %v525
        %v527 = vrcp.pop %v504
        %v528 = vmul.f32 1.0, %v527
        %v529 = vrcp.pop %v505
        %v530 = vmul.f32 1.0, %v529
        %v531 = vrcp.pop %v506
        %v532 = vmul.f32 1.0, %v531
        %v533 = vrcp.pop %v507
        %v534 = vmul.f32 1.0, %v533
        %v535 = vrcp.pop %v508
        %v536 = vmul.f32 1.0, %v535
        %v537 = vrcp.pop %v509
        %v538 = vmul.f32 1.0, %v537
        %v539 = vrcp.pop %v510
        %v540 = vmul.f32 1.0, %v539
        %v541 = vrcp.pop %v511
        %v542 = vmul.f32 1.0, %v541
        %v543 = vrcp.pop %v512
        %v544 = vmul.f32 1.0, %v543
        %v545 = vmul.f32 %v387, %v514
        %v546 = vmul.f32 %v390, %v516
        %v547 = vmul.f32 %v395, %v518
        %v548 = vmul.f32 %v398, %v520
        %v549 = vmul.f32 %v403, %v522
        %v550 = vmul.f32 %v406, %v524
        %v551 = vmul.f32 %v411, %v526
        %v552 = vmul.f32 %v414, %v528
        %v553 = vmul.f32 %v419, %v530
        %v554 = vmul.f32 %v422, %v532
        %v555 = vmul.f32 %v427, %v534
        %v556 = vmul.f32 %v430, %v536
        %v557 = vmul.f32 %v435, %v538
        %v558 = vmul.f32 %v438, %v540
        %v559 = vmul.f32 %v443, %v542
        %v560 = vmul.f32 %v446, %v544
        %v561 = vld [vmem:[#allocation4 + $0x40] sm:$0xf]
        %v562 = vld [vmem:[#allocation4 + $0x44] sm:$0xf]
        %v563 = vld [vmem:[#allocation4 + $0x48] sm:$0xf]
        %v564 = vld [vmem:[#allocation4 + $0x4c] sm:$0xf]
        %v565 = vld [vmem:[#allocation4 + $0x50] sm:$0xf]
        %v566 = vld [vmem:[#allocation4 + $0x54] sm:$0xf]
        %v567 = vld [vmem:[#allocation4 + $0x58] sm:$0xf]
        %v568 = vld [vmem:[#allocation4 + $0x5c] sm:$0xf]
        %v569 = vld [vmem:[#allocation4 + $0x60] sm:$0xf]
        %v570 = vld [vmem:[#allocation4 + $0x64] sm:$0xf]
        %v571 = vld [vmem:[#allocation4 + $0x68] sm:$0xf]
        %v572 = vld [vmem:[#allocation4 + $0x6c] sm:$0xf]
        %v573 = vld [vmem:[#allocation4 + $0x70] sm:$0xf]
        %v574 = vld [vmem:[#allocation4 + $0x74] sm:$0xf]
        %v575 = vld [vmem:[#allocation4 + $0x78] sm:$0xf]
        %v576 = vld [vmem:[#allocation4 + $0x7c] sm:$0xf]
        %v577 = vld [vmem:[#allocation6 + $0x1] sm:$0x1]
        %v578 = vpack.c.bf16 %v546, %v545
        %v579 = vpack.c.bf16 %v548, %v547
        %v580 = vpack.c.bf16 %v550, %v549
        %v581 = vpack.c.bf16 %v552, %v551
        %v582 = vpack.c.bf16 %v554, %v553
        %v583 = vpack.c.bf16 %v556, %v555
        %v584 = vpack.c.bf16 %v558, %v557
        %v585 = vpack.c.bf16 %v560, %v559
        %v586 = vlaneseq
        %v587 = vshrl.u32 %v586, 7
        %v588 = vsub.s32 0, %v587
        %v589 = vrot.slane %v577, %v588
        %v606 = vunpack.c.l.b16 %v561
        %v607 = vunpack.c.l.b16 %v562
        %v608 = vunpack.c.l.b16 %v563
        %v609 = vunpack.c.l.b16 %v564
        %v610 = vunpack.c.l.b16 %v565
        %v611 = vunpack.c.l.b16 %v566
        %v612 = vunpack.c.l.b16 %v567
        %v613 = vunpack.c.l.b16 %v568
        %v614 = vunpack.c.l.b16 %v569
        %v615 = vunpack.c.l.b16 %v570
        %v616 = vunpack.c.l.b16 %v571
        %v617 = vunpack.c.l.b16 %v572
        %v618 = vunpack.c.l.b16 %v573
        %v619 = vunpack.c.l.b16 %v574
        %v620 = vunpack.c.l.b16 %v575
        %v621 = vunpack.c.l.b16 %v576
        %v622 = vpack.c.b16 %v607, %v606
        %v623 = vpack.c.b16 %v609, %v608
        %v624 = vpack.c.b16 %v611, %v610
        %v625 = vpack.c.b16 %v613, %v612
        %v626 = vpack.c.b16 %v615, %v614
        %v627 = vpack.c.b16 %v617, %v616
        %v628 = vpack.c.b16 %v619, %v618
        %v629 = vpack.c.b16 %v621, %v620
        %638 = vmatprep.subr.bf16.mxu0 0
        %639 = vmatpush1.bf16.msra.mxu0 %v622
        %640 = vmatprep.subr.bf16.mxu0 0
        %641 = vmatpush1.bf16.msra.mxu0 %v623
        %642 = vmatprep.subr.bf16.mxu0 0
        %643 = vmatpush1.bf16.msra.mxu0 %v624
        %644 = vmatprep.subr.bf16.mxu0 0
        %645 = vmatpush1.bf16.msra.mxu0 %v625
        %646 = vmatprep.subr.bf16.mxu0 0
        %647 = vmatpush1.bf16.msra.mxu0 %v626
        %648 = vmatprep.subr.bf16.mxu0 0
        %649 = vmatpush1.bf16.msra.mxu0 %v627
        %650 = vmatprep.subr.bf16.mxu0 0
        %651 = vmatpush1.bf16.msra.mxu0 %v628
        %652 = vmatprep.subr.bf16.mxu0 0
        %653 = vmatpush1.bf16.msra.mxu0 %v629
        %654 = vmatprep.subr.bf16.mxu0 0
        %655 = vmatpush1.bf16.msra.mxu0 0
        %656 = vmatprep.subr.bf16.mxu0 0
        %657 = vmatpush1.bf16.msra.mxu0 0
        %658 = vmatprep.subr.bf16.mxu0 0
        %659 = vmatpush1.bf16.msra.mxu0 0
        %660 = vmatprep.subr.bf16.mxu0 0
        %661 = vmatpush1.bf16.msra.mxu0 0
        %662 = vmatprep.subr.bf16.mxu0 0
        %663 = vmatpush1.bf16.msra.mxu0 0
        %664 = vmatprep.subr.bf16.mxu0 0
        %665 = vmatpush1.bf16.msra.mxu0 0
        %666 = vmatprep.subr.bf16.mxu0 0
        %667 = vmatpush1.bf16.msra.mxu0 0
        %668 = vmatprep.subr.bf16.mxu0 0
        %669 = vmatpush1.bf16.msra.mxu0 0
        %670 = vmatprep.mubr.bf16.mxu0 0
        %671 = vmatmul.mubr.bf16.gmra.mrb[0].mxu0 %v578
        %v672 = vpop.f32.mrb[0].mxu0
        %v673 = vadd.f32 %v589, %v672
        %v674 = vpop.f32.mrb[0].mxu0
        %v675 = vpop.f32.mrb[0].mxu0
        %v676 = vadd.f32 %v589, %v675
        %v677 = vpop.f32.mrb[0].mxu0
        %678 = vmatprep.mubr.bf16.mxu0 0
        %679 = vmatmul.mubr.bf16.gmra.mrb[0].mxu0 %v579
        %v680 = vpop.f32.mrb[0].mxu0
        %v681 = vadd.f32 %v589, %v680
        %v682 = vpop.f32.mrb[0].mxu0
        %v683 = vpop.f32.mrb[0].mxu0
        %v684 = vadd.f32 %v589, %v683
        %v685 = vpop.f32.mrb[0].mxu0
        %686 = vmatprep.mubr.bf16.mxu0 0
        %687 = vmatmul.mubr.bf16.gmra.mrb[0].mxu0 %v580
        %v688 = vpop.f32.mrb[0].mxu0
        %v689 = vadd.f32 %v589, %v688
        %v690 = vpop.f32.mrb[0].mxu0
        %v691 = vpop.f32.mrb[0].mxu0
        %v692 = vadd.f32 %v589, %v691
        %v693 = vpop.f32.mrb[0].mxu0
        %694 = vmatprep.mubr.bf16.mxu0 0
        %695 = vmatmul.mubr.bf16.gmra.mrb[0].mxu0 %v581
        %v696 = vpop.f32.mrb[0].mxu0
        %v697 = vadd.f32 %v589, %v696
        %v698 = vpop.f32.mrb[0].mxu0
        %v699 = vpop.f32.mrb[0].mxu0
        %v700 = vadd.f32 %v589, %v699
        %v701 = vpop.f32.mrb[0].mxu0
        %702 = vmatprep.mubr.bf16.mxu0 0
        %703 = vmatmul.mubr.bf16.gmra.mrb[0].mxu0 %v582
        %v704 = vpop.f32.mrb[0].mxu0
        %v705 = vadd.f32 %v589, %v704
        %v706 = vpop.f32.mrb[0].mxu0
        %v707 = vpop.f32.mrb[0].mxu0
        %v708 = vadd.f32 %v589, %v707
        %v709 = vpop.f32.mrb[0].mxu0
        %710 = vmatprep.mubr.bf16.mxu0 0
        %711 = vmatmul.mubr.bf16.gmra.mrb[0].mxu0 %v583
        %v712 = vpop.f32.mrb[0].mxu0
        %v713 = vadd.f32 %v589, %v712
        %v714 = vpop.f32.mrb[0].mxu0
        %v715 = vpop.f32.mrb[0].mxu0
        %v716 = vadd.f32 %v589, %v715
        %v717 = vpop.f32.mrb[0].mxu0
        %718 = vmatprep.mubr.bf16.mxu0 0
        %719 = vmatmul.mubr.bf16.gmra.mrb[0].mxu0 %v584
        %v720 = vpop.f32.mrb[0].mxu0
        %v721 = vadd.f32 %v589, %v720
        %v722 = vpop.f32.mrb[0].mxu0
        %v723 = vpop.f32.mrb[0].mxu0
        %v724 = vadd.f32 %v589, %v723
        %v725 = vpop.f32.mrb[0].mxu0
        %726 = vmatprep.mubr.bf16.mxu0 0
        %727 = vmatmul.mubr.bf16.gmra.mrb[0].mxu0 %v585
        %v728 = vpop.f32.mrb[0].mxu0
        %v729 = vadd.f32 %v589, %v728
        %v730 = vpop.f32.mrb[0].mxu0
        %v731 = vpop.f32.mrb[0].mxu0
        %v732 = vadd.f32 %v589, %v731
        %v733 = vpop.f32.mrb[0].mxu0
        %734 = vdwg.mxu0
        %v735 = vand.u32 2147483647, %v673
        %v736 = vand.u32 2147483647, %v676
        %v737 = vand.u32 2147483647, %v681
        %v738 = vand.u32 2147483647, %v684
        %v739 = vand.u32 2147483647, %v689
        %v740 = vand.u32 2147483647, %v692
        %v741 = vand.u32 2147483647, %v697
        %v742 = vand.u32 2147483647, %v700
        %v743 = vand.u32 2147483647, %v705
        %v744 = vand.u32 2147483647, %v708
        %v745 = vand.u32 2147483647, %v713
        %v746 = vand.u32 2147483647, %v716
        %v747 = vand.u32 2147483647, %v721
        %v748 = vand.u32 2147483647, %v724
        %v749 = vand.u32 2147483647, %v729
        %v750 = vand.u32 2147483647, %v732
        %v751 = vsub.f32 0.0, %v735
        %v752 = vsub.f32 0.0, %v736
        %v753 = vsub.f32 0.0, %v737
        %v754 = vsub.f32 0.0, %v738
        %v755 = vsub.f32 0.0, %v739
        %v756 = vsub.f32 0.0, %v740
        %v757 = vsub.f32 0.0, %v741
        %v758 = vsub.f32 0.0, %v742
        %v759 = vsub.f32 0.0, %v743
        %v760 = vsub.f32 0.0, %v744
        %v761 = vsub.f32 0.0, %v745
        %v762 = vsub.f32 0.0, %v746
        %v763 = vsub.f32 0.0, %v747
        %v764 = vsub.f32 0.0, %v748
        %v765 = vsub.f32 0.0, %v749
        %v766 = vsub.f32 0.0, %v750
        %v767 = vmul.f32 %v751, 1.442695
        %v768 = vpow.pop %v767
        %v769 = vmul.f32 %v752, 1.442695
        %v770 = vpow.pop %v769
        %v771 = vmul.f32 %v753, 1.442695
        %v772 = vpow.pop %v771
        %v773 = vmul.f32 %v754, 1.442695
        %v774 = vpow.pop %v773
        %v775 = vmul.f32 %v755, 1.442695
        %v776 = vpow.pop %v775
        %v777 = vmul.f32 %v756, 1.442695
        %v778 = vpow.pop %v777
        %v779 = vmul.f32 %v757, 1.442695
        %v780 = vpow.pop %v779
        %v781 = vmul.f32 %v758, 1.442695
        %v782 = vpow.pop %v781
        %v783 = vmul.f32 %v759, 1.442695
        %v784 = vpow.pop %v783
        %v785 = vmul.f32 %v760, 1.442695
        %v786 = vpow.pop %v785
        %v787 = vmul.f32 %v761, 1.442695
        %v788 = vpow.pop %v787
        %v789 = vmul.f32 %v762, 1.442695
        %v790 = vpow.pop %v789
        %v791 = vmul.f32 %v763, 1.442695
        %v792 = vpow.pop %v791
        %v793 = vmul.f32 %v764, 1.442695
        %v794 = vpow.pop %v793
        %v795 = vmul.f32 %v765, 1.442695
        %v796 = vpow.pop %v795
        %v797 = vmul.f32 %v766, 1.442695
        %v798 = vpow.pop %v797
        %v799 = vadd.f32 %v768, 1.0
        %v800 = vadd.f32 %v770, 1.0
        %v801 = vadd.f32 %v772, 1.0
        %v802 = vadd.f32 %v774, 1.0
        %v803 = vadd.f32 %v776, 1.0
        %v804 = vadd.f32 %v778, 1.0
        %v805 = vadd.f32 %v780, 1.0
        %v806 = vadd.f32 %v782, 1.0
        %v807 = vadd.f32 %v784, 1.0
        %v808 = vadd.f32 %v786, 1.0
        %v809 = vadd.f32 %v788, 1.0
        %v810 = vadd.f32 %v790, 1.0
        %v811 = vadd.f32 %v792, 1.0
        %v812 = vadd.f32 %v794, 1.0
        %v813 = vadd.f32 %v796, 1.0
        %v814 = vadd.f32 %v798, 1.0
        %v815 = vlog2.pop %v799
        %v816 = vmul.f32 %v815, 0.6931472
        %v817 = vlog2.pop %v800
        %v818 = vmul.f32 %v817, 0.6931472
        %v819 = vlog2.pop %v801
        %v820 = vmul.f32 %v819, 0.6931472
        %v821 = vlog2.pop %v802
        %v822 = vmul.f32 %v821, 0.6931472
        %v823 = vlog2.pop %v803
        %v824 = vmul.f32 %v823, 0.6931472
        %v825 = vlog2.pop %v804
        %v826 = vmul.f32 %v825, 0.6931472
        %v827 = vlog2.pop %v805
        %v828 = vmul.f32 %v827, 0.6931472
        %v829 = vlog2.pop %v806
        %v830 = vmul.f32 %v829, 0.6931472
        %v831 = vlog2.pop %v807
        %v832 = vmul.f32 %v831, 0.6931472
        %v833 = vlog2.pop %v808
        %v834 = vmul.f32 %v833, 0.6931472
        %v835 = vlog2.pop %v809
        %v836 = vmul.f32 %v835, 0.6931472
        %v837 = vlog2.pop %v810
        %v838 = vmul.f32 %v837, 0.6931472
        %v839 = vlog2.pop %v811
        %v840 = vmul.f32 %v839, 0.6931472
        %v841 = vlog2.pop %v812
        %v842 = vmul.f32 %v841, 0.6931472
        %v843 = vlog2.pop %v813
        %v844 = vmul.f32 %v843, 0.6931472
        %v845 = vlog2.pop %v814
        %v846 = vmul.f32 %v845, 0.6931472
        %v847 = vmax.f32 %v673, 0.0
        %v848 = vmax.f32 %v676, 0.0
        %v849 = vmax.f32 %v681, 0.0
        %v850 = vmax.f32 %v684, 0.0
        %v851 = vmax.f32 %v689, 0.0
        %v852 = vmax.f32 %v692, 0.0
        %v853 = vmax.f32 %v697, 0.0
        %v854 = vmax.f32 %v700, 0.0
        %v855 = vmax.f32 %v705, 0.0
        %v856 = vmax.f32 %v708, 0.0
        %v857 = vmax.f32 %v713, 0.0
        %v858 = vmax.f32 %v716, 0.0
        %v859 = vmax.f32 %v721, 0.0
        %v860 = vmax.f32 %v724, 0.0
        %v861 = vmax.f32 %v729, 0.0
        %v862 = vmax.f32 %v732, 0.0
        %v863 = vadd.f32 %v816, %v847
        %v864 = vadd.f32 %v818, %v848
        %v865 = vadd.f32 %v820, %v849
        %v866 = vadd.f32 %v822, %v850
        %v867 = vadd.f32 %v824, %v851
        %v868 = vadd.f32 %v826, %v852
        %v869 = vadd.f32 %v828, %v853
        %v870 = vadd.f32 %v830, %v854
        %v871 = vadd.f32 %v832, %v855
        %v872 = vadd.f32 %v834, %v856
        %v873 = vadd.f32 %v836, %v857
        %v874 = vadd.f32 %v838, %v858
        %v875 = vadd.f32 %v840, %v859
        %v876 = vadd.f32 %v842, %v860
        %v877 = vadd.f32 %v844, %v861
        %v878 = vadd.f32 %v846, %v862
        %v879 = vadd.f32 %v863, 1e-08
        %v880 = vadd.f32 %v864, 1e-08
        %v881 = vadd.f32 %v865, 1e-08
        %v882 = vadd.f32 %v866, 1e-08
        %v883 = vadd.f32 %v867, 1e-08
        %v884 = vadd.f32 %v868, 1e-08
        %v885 = vadd.f32 %v869, 1e-08
        %v886 = vadd.f32 %v870, 1e-08
        %v887 = vadd.f32 %v871, 1e-08
        %v888 = vadd.f32 %v872, 1e-08
        %v889 = vadd.f32 %v873, 1e-08
        %v890 = vadd.f32 %v874, 1e-08
        %v891 = vadd.f32 %v875, 1e-08
        %v892 = vadd.f32 %v876, 1e-08
        %v893 = vadd.f32 %v877, 1e-08
        %v894 = vadd.f32 %v878, 1e-08
        %911 = vrot.lane.b32.xlu0 %v259, 104
        %v912 = vpop.permute.xlu0 %911
        %913 = vrot.lane.b32.xlu0 %v260, 104
        %v914 = vpop.permute.xlu0 %913
        %915 = vrot.lane.b32.xlu0 %v261, 104
        %v916 = vpop.permute.xlu0 %915
        %917 = vrot.lane.b32.xlu0 %v262, 104
        %v918 = vpop.permute.xlu0 %917
        %919 = vrot.lane.b32.xlu0 %v263, 104
        %v920 = vpop.permute.xlu0 %919
        %921 = vrot.lane.b32.xlu0 %v264, 104
        %v922 = vpop.permute.xlu0 %921
        %923 = vrot.lane.b32.xlu0 %v265, 104
        %v924 = vpop.permute.xlu0 %923
        %925 = vrot.lane.b32.xlu0 %v266, 104
        %v926 = vpop.permute.xlu0 %925
        %927 = vrot.lane.b32.xlu0 %v267, 104
        %v928 = vpop.permute.xlu0 %927
        %929 = vrot.lane.b32.xlu0 %v268, 104
        %v930 = vpop.permute.xlu0 %929
        %931 = vrot.lane.b32.xlu0 %v269, 104
        %v932 = vpop.permute.xlu0 %931
        %933 = vrot.lane.b32.xlu0 %v270, 104
        %v934 = vpop.permute.xlu0 %933
        %935 = vrot.lane.b32.xlu0 %v271, 104
        %v936 = vpop.permute.xlu0 %935
        %937 = vrot.lane.b32.xlu0 %v272, 104
        %v938 = vpop.permute.xlu0 %937
        %939 = vrot.lane.b32.xlu0 %v273, 104
        %v940 = vpop.permute.xlu0 %939
        %941 = vrot.lane.b32.xlu0 %v274, 104
        %v942 = vpop.permute.xlu0 %941
        %v959 = vmul.f32 %v879, %v912
        %v960 = vmul.f32 %v880, %v914
        %v961 = vmul.f32 %v881, %v916
        %v962 = vmul.f32 %v882, %v918
        %v963 = vmul.f32 %v883, %v920
        %v964 = vmul.f32 %v884, %v922
        %v965 = vmul.f32 %v885, %v924
        %v966 = vmul.f32 %v886, %v926
        %v967 = vmul.f32 %v887, %v928
        %v968 = vmul.f32 %v888, %v930
        %v969 = vmul.f32 %v889, %v932
        %v970 = vmul.f32 %v890, %v934
        %v971 = vmul.f32 %v891, %v936
        %v972 = vmul.f32 %v892, %v938
        %v973 = vmul.f32 %v893, %v940
        %v974 = vmul.f32 %v894, %v942
        %991 = vrot.lane.b32.xlu0 %v959, 120
        %v992 = vpop.permute.xlu0 %991
        %993 = vrot.lane.b32.xlu0 %v960, 120
        %v994 = vpop.permute.xlu0 %993
        %995 = vrot.lane.b32.xlu0 %v961, 120
        %v996 = vpop.permute.xlu0 %995
        %997 = vrot.lane.b32.xlu0 %v962, 120
        %v998 = vpop.permute.xlu0 %997
        %999 = vrot.lane.b32.xlu0 %v963, 120
        %v1000 = vpop.permute.xlu0 %999
        %1001 = vrot.lane.b32.xlu0 %v964, 120
        %v1002 = vpop.permute.xlu0 %1001
        %1003 = vrot.lane.b32.xlu0 %v965, 120
        %v1004 = vpop.permute.xlu0 %1003
        %1005 = vrot.lane.b32.xlu0 %v966, 120
        %v1006 = vpop.permute.xlu0 %1005
        %1007 = vrot.lane.b32.xlu0 %v967, 120
        %v1008 = vpop.permute.xlu0 %1007
        %1009 = vrot.lane.b32.xlu0 %v968, 120
        %v1010 = vpop.permute.xlu0 %1009
        %1011 = vrot.lane.b32.xlu0 %v969, 120
        %v1012 = vpop.permute.xlu0 %1011
        %1013 = vrot.lane.b32.xlu0 %v970, 120
        %v1014 = vpop.permute.xlu0 %1013
        %1015 = vrot.lane.b32.xlu0 %v971, 120
        %v1016 = vpop.permute.xlu0 %1015
        %1017 = vrot.lane.b32.xlu0 %v972, 120
        %v1018 = vpop.permute.xlu0 %1017
        %1019 = vrot.lane.b32.xlu0 %v973, 120
        %v1020 = vpop.permute.xlu0 %1019
        %1021 = vrot.lane.b32.xlu0 %v974, 120
        %v1022 = vpop.permute.xlu0 %1021
        %v1039 = vadd.f32 %v673, %v992
        %v1040 = vadd.f32 %v676, %v994
        %v1041 = vadd.f32 %v681, %v996
        %v1042 = vadd.f32 %v684, %v998
        %v1043 = vadd.f32 %v689, %v1000
        %v1044 = vadd.f32 %v692, %v1002
        %v1045 = vadd.f32 %v697, %v1004
        %v1046 = vadd.f32 %v700, %v1006
        %v1047 = vadd.f32 %v705, %v1008
        %v1048 = vadd.f32 %v708, %v1010
        %v1049 = vadd.f32 %v713, %v1012
        %v1050 = vadd.f32 %v716, %v1014
        %v1051 = vadd.f32 %v721, %v1016
        %v1052 = vadd.f32 %v724, %v1018
        %v1053 = vadd.f32 %v729, %v1020
        %v1054 = vadd.f32 %v732, %v1022
        %vm1055 = vcmask 64512
        %v1056 = vsel %vm1055, %v1039, 0.0
        %v1057 = vsel %vm1055, %v1040, 0.0
        %v1058 = vsel %vm1055, %v1041, 0.0
        %v1059 = vsel %vm1055, %v1042, 0.0
        %v1060 = vsel %vm1055, %v1043, 0.0
        %v1061 = vsel %vm1055, %v1044, 0.0
        %v1062 = vsel %vm1055, %v1045, 0.0
        %v1063 = vsel %vm1055, %v1046, 0.0
        %v1064 = vsel %vm1055, %v1047, 0.0
        %v1065 = vsel %vm1055, %v1048, 0.0
        %v1066 = vsel %vm1055, %v1049, 0.0
        %v1067 = vsel %vm1055, %v1050, 0.0
        %v1068 = vsel %vm1055, %v1051, 0.0
        %v1069 = vsel %vm1055, %v1052, 0.0
        %v1070 = vsel %vm1055, %v1053, 0.0
        %v1071 = vsel %vm1055, %v1054, 0.0
        %v1072 = vld [vmem:[#allocation4 + $0x80] sm:$0xf]
        %v1073 = vld [vmem:[#allocation4 + $0x84] sm:$0xf]
        %v1074 = vld [vmem:[#allocation6 + $0x2] sm:$0x1]
        %v1075 = vpack.c.bf16 %v1057, %v1056
        %v1076 = vpack.c.bf16 %v1059, %v1058
        %v1077 = vpack.c.bf16 %v1061, %v1060
        %v1078 = vpack.c.bf16 %v1063, %v1062
        %v1079 = vpack.c.bf16 %v1065, %v1064
        %v1080 = vpack.c.bf16 %v1067, %v1066
        %v1081 = vpack.c.bf16 %v1069, %v1068
        %v1082 = vpack.c.bf16 %v1071, %v1070
        %v1083 = vlaneseq
        %v1084 = vshrl.u32 %v1083, 7
        %v1085 = vsub.s32 0, %v1084
        %v1086 = vrot.slane %v1074, %v1085
        %v1089 = vunpack.c.l.b16 %v1072
        %v1090 = vunpack.c.l.b16 %v1073
        %v1091 = vpack.c.b16 %v1090, %v1089
        %vm1093 = vcmask 130048
        %v1095 = vsel %vm1093, %v1075, 0
        %v1098 = vsel %vm1093, %v1076, 0
        %v1101 = vsel %vm1093, %v1077, 0
        %v1104 = vsel %vm1093, %v1078, 0
        %v1107 = vsel %vm1093, %v1079, 0
        %v1110 = vsel %vm1093, %v1080, 0
        %v1113 = vsel %vm1093, %v1081, 0
        %v1116 = vsel %vm1093, %v1082, 0
        %1118 = vmatprep.subr.bf16.mxu0 0
        %1119 = vmatpush1.bf16.msra.mxu0 %v1091
        %1120 = vmatprep.subr.bf16.mxu0 0
        %1121 = vmatpush1.bf16.msra.mxu0 0
        %1122 = vmatprep.subr.bf16.mxu0 0
        %1123 = vmatpush1.bf16.msra.mxu0 0
        %1124 = vmatprep.subr.bf16.mxu0 0
        %1125 = vmatpush1.bf16.msra.mxu0 0
        %1126 = vmatprep.subr.bf16.mxu0 0
        %1127 = vmatpush1.bf16.msra.mxu0 0
        %1128 = vmatprep.subr.bf16.mxu0 0
        %1129 = vmatpush1.bf16.msra.mxu0 0
        %1130 = vmatprep.subr.bf16.mxu0 0
        %1131 = vmatpush1.bf16.msra.mxu0 0
        %1132 = vmatprep.subr.bf16.mxu0 0
        %1133 = vmatpush1.bf16.msra.mxu0 0
        %1134 = vmatprep.subr.bf16.mxu0 0
        %1135 = vmatpush1.bf16.msra.mxu0 0
        %1136 = vmatprep.subr.bf16.mxu0 0
        %1137 = vmatpush1.bf16.msra.mxu0 0
        %1138 = vmatprep.subr.bf16.mxu0 0
        %1139 = vmatpush1.bf16.msra.mxu0 0
        %1140 = vmatprep.subr.bf16.mxu0 0
        %1141 = vmatpush1.bf16.msra.mxu0 0
        %1142 = vmatprep.subr.bf16.mxu0 0
        %1143 = vmatpush1.bf16.msra.mxu0 0
        %1144 = vmatprep.subr.bf16.mxu0 0
        %1145 = vmatpush1.bf16.msra.mxu0 0
        %1146 = vmatprep.subr.bf16.mxu0 0
        %1147 = vmatpush1.bf16.msra.mxu0 0
        %1148 = vmatprep.subr.bf16.mxu0 0
        %1149 = vmatpush1.bf16.msra.mxu0 0
        %1150 = vmatprep.mubr.bf16.mxu0 0
        %1151 = vmatmul.mubr.bf16.gmra.mrb[0].mxu0 %v1095
        %v1152 = vpop.f32.mrb[0].mxu0
        %v1153 = vadd.f32 %v1086, %v1152
        %v1154 = vpop.f32.mrb[0].mxu0
        %v1155 = vpop.f32.mrb[0].mxu0
        %v1156 = vadd.f32 %v1086, %v1155
        %v1157 = vpop.f32.mrb[0].mxu0
        %1158 = vmatprep.mubr.bf16.mxu0 0
        %1159 = vmatmul.mubr.bf16.gmra.mrb[0].mxu0 %v1098
        %v1160 = vpop.f32.mrb[0].mxu0
        %v1161 = vadd.f32 %v1086, %v1160
        %v1162 = vpop.f32.mrb[0].mxu0
        %v1163 = vpop.f32.mrb[0].mxu0
        %v1164 = vadd.f32 %v1086, %v1163
        %v1165 = vpop.f32.mrb[0].mxu0
        %1166 = vmatprep.mubr.bf16.mxu0 0
        %1167 = vmatmul.mubr.bf16.gmra.mrb[0].mxu0 %v1101
        %v1168 = vpop.f32.mrb[0].mxu0
        %v1169 = vadd.f32 %v1086, %v1168
        %v1170 = vpop.f32.mrb[0].mxu0
        %v1171 = vpop.f32.mrb[0].mxu0
        %v1172 = vadd.f32 %v1086, %v1171
        %v1173 = vpop.f32.mrb[0].mxu0
        %1174 = vmatprep.mubr.bf16.mxu0 0
        %1175 = vmatmul.mubr.bf16.gmra.mrb[0].mxu0 %v1104
        %v1176 = vpop.f32.mrb[0].mxu0
        %v1177 = vadd.f32 %v1086, %v1176
        %v1178 = vpop.f32.mrb[0].mxu0
        %v1179 = vpop.f32.mrb[0].mxu0
        %v1180 = vadd.f32 %v1086, %v1179
        %v1181 = vpop.f32.mrb[0].mxu0
        %1182 = vmatprep.mubr.bf16.mxu0 0
        %1183 = vmatmul.mubr.bf16.gmra.mrb[0].mxu0 %v1107
        %v1184 = vpop.f32.mrb[0].mxu0
        %v1185 = vadd.f32 %v1086, %v1184
        %v1186 = vpop.f32.mrb[0].mxu0
        %v1187 = vpop.f32.mrb[0].mxu0
        %v1188 = vadd.f32 %v1086, %v1187
        %v1189 = vpop.f32.mrb[0].mxu0
        %1190 = vmatprep.mubr.bf16.mxu0 0
        %1191 = vmatmul.mubr.bf16.gmra.mrb[0].mxu0 %v1110
        %v1192 = vpop.f32.mrb[0].mxu0
        %v1193 = vadd.f32 %v1086, %v1192
        %v1194 = vpop.f32.mrb[0].mxu0
        %v1195 = vpop.f32.mrb[0].mxu0
        %v1196 = vadd.f32 %v1086, %v1195
        %v1197 = vpop.f32.mrb[0].mxu0
        %1198 = vmatprep.mubr.bf16.mxu0 0
        %1199 = vmatmul.mubr.bf16.gmra.mrb[0].mxu0 %v1113
        %v1200 = vpop.f32.mrb[0].mxu0
        %v1201 = vadd.f32 %v1086, %v1200
        %v1202 = vpop.f32.mrb[0].mxu0
        %v1203 = vpop.f32.mrb[0].mxu0
        %v1204 = vadd.f32 %v1086, %v1203
        %v1205 = vpop.f32.mrb[0].mxu0
        %1206 = vmatprep.mubr.bf16.mxu0 0
        %1207 = vmatmul.mubr.bf16.gmra.mrb[0].mxu0 %v1116
        %v1208 = vpop.f32.mrb[0].mxu0
        %v1209 = vadd.f32 %v1086, %v1208
        %v1210 = vpop.f32.mrb[0].mxu0
        %v1211 = vpop.f32.mrb[0].mxu0
        %v1212 = vadd.f32 %v1086, %v1211
        %v1213 = vpop.f32.mrb[0].mxu0
        %1214 = vdwg.mxu0
        %v1215 = vsub.f32 0.0, %v1153
        %v1216 = vsub.f32 0.0, %v1156
        %v1217 = vsub.f32 0.0, %v1161
        %v1218 = vsub.f32 0.0, %v1164
        %v1219 = vsub.f32 0.0, %v1169
        %v1220 = vsub.f32 0.0, %v1172
        %v1221 = vsub.f32 0.0, %v1177
        %v1222 = vsub.f32 0.0, %v1180
        %v1223 = vsub.f32 0.0, %v1185
        %v1224 = vsub.f32 0.0, %v1188
        %v1225 = vsub.f32 0.0, %v1193
        %v1226 = vsub.f32 0.0, %v1196
        %v1227 = vsub.f32 0.0, %v1201
        %v1228 = vsub.f32 0.0, %v1204
        %v1229 = vsub.f32 0.0, %v1209
        %v1230 = vsub.f32 0.0, %v1212
        %v1231 = vmul.f32 %v1215, 1.442695
        %v1232 = vpow.pop %v1231
        %v1233 = vmul.f32 %v1216, 1.442695
        %v1234 = vpow.pop %v1233
        %v1235 = vmul.f32 %v1217, 1.442695
        %v1236 = vpow.pop %v1235
        %v1237 = vmul.f32 %v1218, 1.442695
        %v1238 = vpow.pop %v1237
        %v1239 = vmul.f32 %v1219, 1.442695
        %v1240 = vpow.pop %v1239
        %v1241 = vmul.f32 %v1220, 1.442695
        %v1242 = vpow.pop %v1241
        %v1243 = vmul.f32 %v1221, 1.442695
        %v1244 = vpow.pop %v1243
        %v1245 = vmul.f32 %v1222, 1.442695
        %v1246 = vpow.pop %v1245
        %v1247 = vmul.f32 %v1223, 1.442695
        %v1248 = vpow.pop %v1247
        %v1249 = vmul.f32 %v1224, 1.442695
        %v1250 = vpow.pop %v1249
        %v1251 = vmul.f32 %v1225, 1.442695
        %v1252 = vpow.pop %v1251
        %v1253 = vmul.f32 %v1226, 1.442695
        %v1254 = vpow.pop %v1253
        %v1255 = vmul.f32 %v1227, 1.442695
        %v1256 = vpow.pop %v1255
        %v1257 = vmul.f32 %v1228, 1.442695
        %v1258 = vpow.pop %v1257
        %v1259 = vmul.f32 %v1229, 1.442695
        %v1260 = vpow.pop %v1259
        %v1261 = vmul.f32 %v1230, 1.442695
        %v1262 = vpow.pop %v1261
        %v1263 = vadd.f32 %v1232, 1.0
        %v1264 = vadd.f32 %v1234, 1.0
        %v1265 = vadd.f32 %v1236, 1.0
        %v1266 = vadd.f32 %v1238, 1.0
        %v1267 = vadd.f32 %v1240, 1.0
        %v1268 = vadd.f32 %v1242, 1.0
        %v1269 = vadd.f32 %v1244, 1.0
        %v1270 = vadd.f32 %v1246, 1.0
        %v1271 = vadd.f32 %v1248, 1.0
        %v1272 = vadd.f32 %v1250, 1.0
        %v1273 = vadd.f32 %v1252, 1.0
        %v1274 = vadd.f32 %v1254, 1.0
        %v1275 = vadd.f32 %v1256, 1.0
        %v1276 = vadd.f32 %v1258, 1.0
        %v1277 = vadd.f32 %v1260, 1.0
        %v1278 = vadd.f32 %v1262, 1.0
        %v1279 = vrcp.pop %v1263
        %v1280 = vmul.f32 1.0, %v1279
        %v1281 = vrcp.pop %v1264
        %v1282 = vmul.f32 1.0, %v1281
        %v1283 = vrcp.pop %v1265
        %v1284 = vmul.f32 1.0, %v1283
        %v1285 = vrcp.pop %v1266
        %v1286 = vmul.f32 1.0, %v1285
        %v1287 = vrcp.pop %v1267
        %v1288 = vmul.f32 1.0, %v1287
        %v1289 = vrcp.pop %v1268
        %v1290 = vmul.f32 1.0, %v1289
        %v1291 = vrcp.pop %v1269
        %v1292 = vmul.f32 1.0, %v1291
        %v1293 = vrcp.pop %v1270
        %v1294 = vmul.f32 1.0, %v1293
        %v1295 = vrcp.pop %v1271
        %v1296 = vmul.f32 1.0, %v1295
        %v1297 = vrcp.pop %v1272
        %v1298 = vmul.f32 1.0, %v1297
        %v1299 = vrcp.pop %v1273
        %v1300 = vmul.f32 1.0, %v1299
        %v1301 = vrcp.pop %v1274
        %v1302 = vmul.f32 1.0, %v1301
        %v1303 = vrcp.pop %v1275
        %v1304 = vmul.f32 1.0, %v1303
        %v1305 = vrcp.pop %v1276
        %v1306 = vmul.f32 1.0, %v1305
        %v1307 = vrcp.pop %v1277
        %v1308 = vmul.f32 1.0, %v1307
        %v1309 = vrcp.pop %v1278
        %v1310 = vmul.f32 1.0, %v1309
        %v1311 = vmul.f32 %v1153, %v1280
        %v1312 = vmul.f32 %v1156, %v1282
        %v1313 = vmul.f32 %v1161, %v1284
        %v1314 = vmul.f32 %v1164, %v1286
        %v1315 = vmul.f32 %v1169, %v1288
        %v1316 = vmul.f32 %v1172, %v1290
        %v1317 = vmul.f32 %v1177, %v1292
        %v1318 = vmul.f32 %v1180, %v1294
        %v1319 = vmul.f32 %v1185, %v1296
        %v1320 = vmul.f32 %v1188, %v1298
        %v1321 = vmul.f32 %v1193, %v1300
        %v1322 = vmul.f32 %v1196, %v1302
        %v1323 = vmul.f32 %v1201, %v1304
        %v1324 = vmul.f32 %v1204, %v1306
        %v1325 = vmul.f32 %v1209, %v1308
        %v1326 = vmul.f32 %v1212, %v1310
        %v1327 = vld [vmem:[#allocation4 + $0x88] sm:$0xf]
        %v1328 = vld [vmem:[#allocation4 + $0x8c] sm:$0xf]
        %v1329 = vld [vmem:[#allocation4 + $0x90] sm:$0xf]
        %v1330 = vld [vmem:[#allocation4 + $0x94] sm:$0xf]
        %v1331 = vld [vmem:[#allocation4 + $0x98] sm:$0xf]
        %v1332 = vld [vmem:[#allocation4 + $0x9c] sm:$0xf]
        %v1333 = vld [vmem:[#allocation4 + $0xa0] sm:$0xf]
        %v1334 = vld [vmem:[#allocation4 + $0xa4] sm:$0xf]
        %v1335 = vld [vmem:[#allocation4 + $0xa8] sm:$0xf]
        %v1336 = vld [vmem:[#allocation4 + $0xac] sm:$0xf]
        %v1337 = vld [vmem:[#allocation4 + $0xb0] sm:$0xf]
        %v1338 = vld [vmem:[#allocation4 + $0xb4] sm:$0xf]
        %v1339 = vld [vmem:[#allocation4 + $0xb8] sm:$0xf]
        %v1340 = vld [vmem:[#allocation4 + $0xbc] sm:$0xf]
        %v1341 = vld [vmem:[#allocation4 + $0xc0] sm:$0xf]
        %v1342 = vld [vmem:[#allocation4 + $0xc4] sm:$0xf]
        %v1343 = vld [vmem:[#allocation6 + $0x3] sm:$0x1]
        %v1344 = vpack.c.bf16 %v1312, %v1311
        %v1345 = vpack.c.bf16 %v1314, %v1313
        %v1346 = vpack.c.bf16 %v1316, %v1315
        %v1347 = vpack.c.bf16 %v1318, %v1317
        %v1348 = vpack.c.bf16 %v1320, %v1319
        %v1349 = vpack.c.bf16 %v1322, %v1321
        %v1350 = vpack.c.bf16 %v1324, %v1323
        %v1351 = vpack.c.bf16 %v1326, %v1325
        %v1352 = vlaneseq
        %v1353 = vshrl.u32 %v1352, 7
        %v1354 = vsub.s32 0, %v1353
        %v1355 = vrot.slane %v1343, %v1354
        %v1372 = vunpack.c.l.b16 %v1327
        %v1373 = vunpack.c.l.b16 %v1328
        %v1374 = vunpack.c.l.b16 %v1329
        %v1375 = vunpack.c.l.b16 %v1330
        %v1376 = vunpack.c.l.b16 %v1331
        %v1377 = vunpack.c.l.b16 %v1332
        %v1378 = vunpack.c.l.b16 %v1333
        %v1379 = vunpack.c.l.b16 %v1334
        %v1380 = vunpack.c.l.b16 %v1335
        %v1381 = vunpack.c.l.b16 %v1336
        %v1382 = vunpack.c.l.b16 %v1337
        %v1383 = vunpack.c.l.b16 %v1338
        %v1384 = vunpack.c.l.b16 %v1339
        %v1385 = vunpack.c.l.b16 %v1340
        %v1386 = vunpack.c.l.b16 %v1341
        %v1387 = vunpack.c.l.b16 %v1342
        %v1388 = vpack.c.b16 %v1373, %v1372
        %v1389 = vpack.c.b16 %v1375, %v1374
        %v1390 = vpack.c.b16 %v1377, %v1376
        %v1391 = vpack.c.b16 %v1379, %v1378
        %v1392 = vpack.c.b16 %v1381, %v1380
        %v1393 = vpack.c.b16 %v1383, %v1382
        %v1394 = vpack.c.b16 %v1385, %v1384
        %v1395 = vpack.c.b16 %v1387, %v1386
        %1404 = vmatprep.subr.bf16.mxu0 0
        %1405 = vmatpush1.bf16.msra.mxu0 %v1388
        %1406 = vmatprep.subr.bf16.mxu0 0
        %1407 = vmatpush1.bf16.msra.mxu0 %v1389
        %1408 = vmatprep.subr.bf16.mxu0 0
        %1409 = vmatpush1.bf16.msra.mxu0 %v1390
        %1410 = vmatprep.subr.bf16.mxu0 0
        %1411 = vmatpush1.bf16.msra.mxu0 %v1391
        %1412 = vmatprep.subr.bf16.mxu0 0
        %1413 = vmatpush1.bf16.msra.mxu0 %v1392
        %1414 = vmatprep.subr.bf16.mxu0 0
        %1415 = vmatpush1.bf16.msra.mxu0 %v1393
        %1416 = vmatprep.subr.bf16.mxu0 0
        %1417 = vmatpush1.bf16.msra.mxu0 %v1394
        %1418 = vmatprep.subr.bf16.mxu0 0
        %1419 = vmatpush1.bf16.msra.mxu0 %v1395
        %1420 = vmatprep.subr.bf16.mxu0 0
        %1421 = vmatpush1.bf16.msra.mxu0 0
        %1422 = vmatprep.subr.bf16.mxu0 0
        %1423 = vmatpush1.bf16.msra.mxu0 0
        %1424 = vmatprep.subr.bf16.mxu0 0
        %1425 = vmatpush1.bf16.msra.mxu0 0
        %1426 = vmatprep.subr.bf16.mxu0 0
        %1427 = vmatpush1.bf16.msra.mxu0 0
        %1428 = vmatprep.subr.bf16.mxu0 0
        %1429 = vmatpush1.bf16.msra.mxu0 0
        %1430 = vmatprep.subr.bf16.mxu0 0
        %1431 = vmatpush1.bf16.msra.mxu0 0
        %1432 = vmatprep.subr.bf16.mxu0 0
        %1433 = vmatpush1.bf16.msra.mxu0 0
        %1434 = vmatprep.subr.bf16.mxu0 0
        %1435 = vmatpush1.bf16.msra.mxu0 0
        %1436 = vmatprep.mubr.bf16.mxu0 0
        %1437 = vmatmul.mubr.bf16.gmra.mrb[0].mxu0 %v1344
        %v1438 = vpop.f32.mrb[0].mxu0
        %v1439 = vadd.f32 %v1355, %v1438
        %v1440 = vpop.f32.mrb[0].mxu0
        %v1441 = vpop.f32.mrb[0].mxu0
        %v1442 = vadd.f32 %v1355, %v1441
        %v1443 = vpop.f32.mrb[0].mxu0
        %1444 = vmatprep.mubr.bf16.mxu0 0
        %1445 = vmatmul.mubr.bf16.gmra.mrb[0].mxu0 %v1345
        %v1446 = vpop.f32.mrb[0].mxu0
        %v1447 = vadd.f32 %v1355, %v1446
        %v1448 = vpop.f32.mrb[0].mxu0
        %v1449 = vpop.f32.mrb[0].mxu0
        %v1450 = vadd.f32 %v1355, %v1449
        %v1451 = vpop.f32.mrb[0].mxu0
        %1452 = vmatprep.mubr.bf16.mxu0 0
        %1453 = vmatmul.mubr.bf16.gmra.mrb[0].mxu0 %v1346
        %v1454 = vpop.f32.mrb[0].mxu0
        %v1455 = vadd.f32 %v1355, %v1454
        %v1456 = vpop.f32.mrb[0].mxu0
        %v1457 = vpop.f32.mrb[0].mxu0
        %v1458 = vadd.f32 %v1355, %v1457
        %v1459 = vpop.f32.mrb[0].mxu0
        %1460 = vmatprep.mubr.bf16.mxu0 0
        %1461 = vmatmul.mubr.bf16.gmra.mrb[0].mxu0 %v1347
        %v1462 = vpop.f32.mrb[0].mxu0
        %v1463 = vadd.f32 %v1355, %v1462
        %v1464 = vpop.f32.mrb[0].mxu0
        %v1465 = vpop.f32.mrb[0].mxu0
        %v1466 = vadd.f32 %v1355, %v1465
        %v1467 = vpop.f32.mrb[0].mxu0
        %1468 = vmatprep.mubr.bf16.mxu0 0
        %1469 = vmatmul.mubr.bf16.gmra.mrb[0].mxu0 %v1348
        %v1470 = vpop.f32.mrb[0].mxu0
        %v1471 = vadd.f32 %v1355, %v1470
        %v1472 = vpop.f32.mrb[0].mxu0
        %v1473 = vpop.f32.mrb[0].mxu0
        %v1474 = vadd.f32 %v1355, %v1473
        %v1475 = vpop.f32.mrb[0].mxu0
        %1476 = vmatprep.mubr.bf16.mxu0 0
        %1477 = vmatmul.mubr.bf16.gmra.mrb[0].mxu0 %v1349
        %v1478 = vpop.f32.mrb[0].mxu0
        %v1479 = vadd.f32 %v1355, %v1478
        %v1480 = vpop.f32.mrb[0].mxu0
        %v1481 = vpop.f32.mrb[0].mxu0
        %v1482 = vadd.f32 %v1355, %v1481
        %v1483 = vpop.f32.mrb[0].mxu0
        %1484 = vmatprep.mubr.bf16.mxu0 0
        %1485 = vmatmul.mubr.bf16.gmra.mrb[0].mxu0 %v1350
        %v1486 = vpop.f32.mrb[0].mxu0
        %v1487 = vadd.f32 %v1355, %v1486
        %v1488 = vpop.f32.mrb[0].mxu0
        %v1489 = vpop.f32.mrb[0].mxu0
        %v1490 = vadd.f32 %v1355, %v1489
        %v1491 = vpop.f32.mrb[0].mxu0
        %1492 = vmatprep.mubr.bf16.mxu0 0
        %1493 = vmatmul.mubr.bf16.gmra.mrb[0].mxu0 %v1351
        %v1494 = vpop.f32.mrb[0].mxu0
        %v1495 = vadd.f32 %v1355, %v1494
        %v1496 = vpop.f32.mrb[0].mxu0
        %v1497 = vpop.f32.mrb[0].mxu0
        %v1498 = vadd.f32 %v1355, %v1497
        %v1499 = vpop.f32.mrb[0].mxu0
        %1500 = vdwg.mxu0
        %vm1501 = vcmp.eq.f32.partialorder %v259, 0.0
        %vm1502 = vcmp.eq.f32.partialorder %v260, 0.0
        %vm1503 = vcmp.eq.f32.partialorder %v261, 0.0
        %vm1504 = vcmp.eq.f32.partialorder %v262, 0.0
        %vm1505 = vcmp.eq.f32.partialorder %v263, 0.0
        %vm1506 = vcmp.eq.f32.partialorder %v264, 0.0
        %vm1507 = vcmp.eq.f32.partialorder %v265, 0.0
        %vm1508 = vcmp.eq.f32.partialorder %v266, 0.0
        %vm1509 = vcmp.eq.f32.partialorder %v267, 0.0
        %vm1510 = vcmp.eq.f32.partialorder %v268, 0.0
        %vm1511 = vcmp.eq.f32.partialorder %v269, 0.0
        %vm1512 = vcmp.eq.f32.partialorder %v270, 0.0
        %vm1513 = vcmp.eq.f32.partialorder %v271, 0.0
        %vm1514 = vcmp.eq.f32.partialorder %v272, 0.0
        %vm1515 = vcmp.eq.f32.partialorder %v273, 0.0
        %vm1516 = vcmp.eq.f32.partialorder %v274, 0.0
        %1533 = vrot.lane.b32.xlu0 %v1439, 16
        %v1534 = vpop.permute.xlu0 %1533
        %1535 = vrot.lane.b32.xlu0 %v1442, 16
        %v1536 = vpop.permute.xlu0 %1535
        %1537 = vrot.lane.b32.xlu0 %v1447, 16
        %v1538 = vpop.permute.xlu0 %1537
        %1539 = vrot.lane.b32.xlu0 %v1450, 16
        %v1540 = vpop.permute.xlu0 %1539
        %1541 = vrot.lane.b32.xlu0 %v1455, 16
        %v1542 = vpop.permute.xlu0 %1541
        %1543 = vrot.lane.b32.xlu0 %v1458, 16
        %v1544 = vpop.permute.xlu0 %1543
        %1545 = vrot.lane.b32.xlu0 %v1463, 16
        %v1546 = vpop.permute.xlu0 %1545
        %1547 = vrot.lane.b32.xlu0 %v1466, 16
        %v1548 = vpop.permute.xlu0 %1547
        %1549 = vrot.lane.b32.xlu0 %v1471, 16
        %v1550 = vpop.permute.xlu0 %1549
        %1551 = vrot.lane.b32.xlu0 %v1474, 16
        %v1552 = vpop.permute.xlu0 %1551
        %1553 = vrot.lane.b32.xlu0 %v1479, 16
        %v1554 = vpop.permute.xlu0 %1553
        %1555 = vrot.lane.b32.xlu0 %v1482, 16
        %v1556 = vpop.permute.xlu0 %1555
        %1557 = vrot.lane.b32.xlu0 %v1487, 16
        %v1558 = vpop.permute.xlu0 %1557
        %1559 = vrot.lane.b32.xlu0 %v1490, 16
        %v1560 = vpop.permute.xlu0 %1559
        %1561 = vrot.lane.b32.xlu0 %v1495, 16
        %v1562 = vpop.permute.xlu0 %1561
        %1563 = vrot.lane.b32.xlu0 %v1498, 16
        %v1564 = vpop.permute.xlu0 %1563
        %v1581 = vsel %vm1501, %v1534, 0.0
        %v1582 = vsel %vm1502, %v1536, 0.0
        %v1583 = vsel %vm1503, %v1538, 0.0
        %v1584 = vsel %vm1504, %v1540, 0.0
        %v1585 = vsel %vm1505, %v1542, 0.0
        %v1586 = vsel %vm1506, %v1544, 0.0
        %v1587 = vsel %vm1507, %v1546, 0.0
        %v1588 = vsel %vm1508, %v1548, 0.0
        %v1589 = vsel %vm1509, %v1550, 0.0
        %v1590 = vsel %vm1510, %v1552, 0.0
        %v1591 = vsel %vm1511, %v1554, 0.0
        %v1592 = vsel %vm1512, %v1556, 0.0
        %v1593 = vsel %vm1513, %v1558, 0.0
        %v1594 = vsel %vm1514, %v1560, 0.0
        %v1595 = vsel %vm1515, %v1562, 0.0
        %v1596 = vsel %vm1516, %v1564, 0.0
        %v1597 = vsub.f32 %v1439, %v1534
        %v1598 = vsub.f32 %v1442, %v1536
        %v1599 = vsub.f32 %v1447, %v1538
        %v1600 = vsub.f32 %v1450, %v1540
        %v1601 = vsub.f32 %v1455, %v1542
        %v1602 = vsub.f32 %v1458, %v1544
        %v1603 = vsub.f32 %v1463, %v1546
        %v1604 = vsub.f32 %v1466, %v1548
        %v1605 = vsub.f32 %v1471, %v1550
        %v1606 = vsub.f32 %v1474, %v1552
        %v1607 = vsub.f32 %v1479, %v1554
        %v1608 = vsub.f32 %v1482, %v1556
        %v1609 = vsub.f32 %v1487, %v1558
        %v1610 = vsub.f32 %v1490, %v1560
        %v1611 = vsub.f32 %v1495, %v1562
        %v1612 = vsub.f32 %v1498, %v1564
        %v1613 = vand.u32 2147483647, %v1597
        %v1614 = vand.u32 2147483647, %v1598
        %v1615 = vand.u32 2147483647, %v1599
        %v1616 = vand.u32 2147483647, %v1600
        %v1617 = vand.u32 2147483647, %v1601
        %v1618 = vand.u32 2147483647, %v1602
        %v1619 = vand.u32 2147483647, %v1603
        %v1620 = vand.u32 2147483647, %v1604
        %v1621 = vand.u32 2147483647, %v1605
        %v1622 = vand.u32 2147483647, %v1606
        %v1623 = vand.u32 2147483647, %v1607
        %v1624 = vand.u32 2147483647, %v1608
        %v1625 = vand.u32 2147483647, %v1609
        %v1626 = vand.u32 2147483647, %v1610
        %v1627 = vand.u32 2147483647, %v1611
        %v1628 = vand.u32 2147483647, %v1612
        %v1629 = vsub.f32 0.0, %v1613
        %v1630 = vsub.f32 0.0, %v1614
        %v1631 = vsub.f32 0.0, %v1615
        %v1632 = vsub.f32 0.0, %v1616
        %v1633 = vsub.f32 0.0, %v1617
        %v1634 = vsub.f32 0.0, %v1618
        %v1635 = vsub.f32 0.0, %v1619
        %v1636 = vsub.f32 0.0, %v1620
        %v1637 = vsub.f32 0.0, %v1621
        %v1638 = vsub.f32 0.0, %v1622
        %v1639 = vsub.f32 0.0, %v1623
        %v1640 = vsub.f32 0.0, %v1624
        %v1641 = vsub.f32 0.0, %v1625
        %v1642 = vsub.f32 0.0, %v1626
        %v1643 = vsub.f32 0.0, %v1627
        %v1644 = vsub.f32 0.0, %v1628
        %v1645 = vmul.f32 %v1629, 1.442695
        %v1646 = vpow.pop %v1645
        %v1647 = vmul.f32 %v1630, 1.442695
        %v1648 = vpow.pop %v1647
        %v1649 = vmul.f32 %v1631, 1.442695
        %v1650 = vpow.pop %v1649
        %v1651 = vmul.f32 %v1632, 1.442695
        %v1652 = vpow.pop %v1651
        %v1653 = vmul.f32 %v1633, 1.442695
        %v1654 = vpow.pop %v1653
        %v1655 = vmul.f32 %v1634, 1.442695
        %v1656 = vpow.pop %v1655
        %v1657 = vmul.f32 %v1635, 1.442695
        %v1658 = vpow.pop %v1657
        %v1659 = vmul.f32 %v1636, 1.442695
        %v1660 = vpow.pop %v1659
        %v1661 = vmul.f32 %v1637, 1.442695
        %v1662 = vpow.pop %v1661
        %v1663 = vmul.f32 %v1638, 1.442695
        %v1664 = vpow.pop %v1663
        %v1665 = vmul.f32 %v1639, 1.442695
        %v1666 = vpow.pop %v1665
        %v1667 = vmul.f32 %v1640, 1.442695
        %v1668 = vpow.pop %v1667
        %v1669 = vmul.f32 %v1641, 1.442695
        %v1670 = vpow.pop %v1669
        %v1671 = vmul.f32 %v1642, 1.442695
        %v1672 = vpow.pop %v1671
        %v1673 = vmul.f32 %v1643, 1.442695
        %v1674 = vpow.pop %v1673
        %v1675 = vmul.f32 %v1644, 1.442695
        %v1676 = vpow.pop %v1675
        %vm1677 = vcmp.gt.f32.partialorder %v1597, 0.0
        %vm1678 = vcmp.gt.f32.partialorder %v1598, 0.0
        %vm1679 = vcmp.gt.f32.partialorder %v1599, 0.0
        %vm1680 = vcmp.gt.f32.partialorder %v1600, 0.0
        %vm1681 = vcmp.gt.f32.partialorder %v1601, 0.0
        %vm1682 = vcmp.gt.f32.partialorder %v1602, 0.0
        %vm1683 = vcmp.gt.f32.partialorder %v1603, 0.0
        %vm1684 = vcmp.gt.f32.partialorder %v1604, 0.0
        %vm1685 = vcmp.gt.f32.partialorder %v1605, 0.0
        %vm1686 = vcmp.gt.f32.partialorder %v1606, 0.0
        %vm1687 = vcmp.gt.f32.partialorder %v1607, 0.0
        %vm1688 = vcmp.gt.f32.partialorder %v1608, 0.0
        %vm1689 = vcmp.gt.f32.partialorder %v1609, 0.0
        %vm1690 = vcmp.gt.f32.partialorder %v1610, 0.0
        %vm1691 = vcmp.gt.f32.partialorder %v1611, 0.0
        %vm1692 = vcmp.gt.f32.partialorder %v1612, 0.0
        %v1693 = vadd.f32 %v1646, 1.0
        %v1694 = vadd.f32 %v1648, 1.0
        %v1695 = vadd.f32 %v1650, 1.0
        %v1696 = vadd.f32 %v1652, 1.0
        %v1697 = vadd.f32 %v1654, 1.0
        %v1698 = vadd.f32 %v1656, 1.0
        %v1699 = vadd.f32 %v1658, 1.0
        %v1700 = vadd.f32 %v1660, 1.0
        %v1701 = vadd.f32 %v1662, 1.0
        %v1702 = vadd.f32 %v1664, 1.0
        %v1703 = vadd.f32 %v1666, 1.0
        %v1704 = vadd.f32 %v1668, 1.0
        %v1705 = vadd.f32 %v1670, 1.0
        %v1706 = vadd.f32 %v1672, 1.0
        %v1707 = vadd.f32 %v1674, 1.0
        %v1708 = vadd.f32 %v1676, 1.0
        %v1709 = vsel %vm1677, 1.0, 0.0
        %v1710 = vsel %vm1678, 1.0, 0.0
        %v1711 = vsel %vm1679, 1.0, 0.0
        %v1712 = vsel %vm1680, 1.0, 0.0
        %v1713 = vsel %vm1681, 1.0, 0.0
        %v1714 = vsel %vm1682, 1.0, 0.0
        %v1715 = vsel %vm1683, 1.0, 0.0
        %v1716 = vsel %vm1684, 1.0, 0.0
        %v1717 = vsel %vm1685, 1.0, 0.0
        %v1718 = vsel %vm1686, 1.0, 0.0
        %v1719 = vsel %vm1687, 1.0, 0.0
        %v1720 = vsel %vm1688, 1.0, 0.0
        %v1721 = vsel %vm1689, 1.0, 0.0
        %v1722 = vsel %vm1690, 1.0, 0.0
        %v1723 = vsel %vm1691, 1.0, 0.0
        %v1724 = vsel %vm1692, 1.0, 0.0
        %v1725 = vsel %vm1677, %v1439, %v1534
        %v1726 = vsel %vm1678, %v1442, %v1536
        %v1727 = vsel %vm1679, %v1447, %v1538
        %v1728 = vsel %vm1680, %v1450, %v1540
        %v1729 = vsel %vm1681, %v1455, %v1542
        %v1730 = vsel %vm1682, %v1458, %v1544
        %v1731 = vsel %vm1683, %v1463, %v1546
        %v1732 = vsel %vm1684, %v1466, %v1548
        %v1733 = vsel %vm1685, %v1471, %v1550
        %v1734 = vsel %vm1686, %v1474, %v1552
        %v1735 = vsel %vm1687, %v1479, %v1554
        %v1736 = vsel %vm1688, %v1482, %v1556
        %v1737 = vsel %vm1689, %v1487, %v1558
        %v1738 = vsel %vm1690, %v1490, %v1560
        %v1739 = vsel %vm1691, %v1495, %v1562
        %v1740 = vsel %vm1692, %v1498, %v1564
        %vm1741 = vcmp.eq.f32.partialorder %v259, 1.0
        %vm1742 = vcmp.eq.f32.partialorder %v260, 1.0
        %vm1743 = vcmp.eq.f32.partialorder %v261, 1.0
        %vm1744 = vcmp.eq.f32.partialorder %v262, 1.0
        %vm1745 = vcmp.eq.f32.partialorder %v263, 1.0
        %vm1746 = vcmp.eq.f32.partialorder %v264, 1.0
        %vm1747 = vcmp.eq.f32.partialorder %v265, 1.0
        %vm1748 = vcmp.eq.f32.partialorder %v266, 1.0
        %vm1749 = vcmp.eq.f32.partialorder %v267, 1.0
        %vm1750 = vcmp.eq.f32.partialorder %v268, 1.0
        %vm1751 = vcmp.eq.f32.partialorder %v269, 1.0
        %vm1752 = vcmp.eq.f32.partialorder %v270, 1.0
        %vm1753 = vcmp.eq.f32.partialorder %v271, 1.0
        %vm1754 = vcmp.eq.f32.partialorder %v272, 1.0
        %vm1755 = vcmp.eq.f32.partialorder %v273, 1.0
        %vm1756 = vcmp.eq.f32.partialorder %v274, 1.0
        %v1757 = vsel %vm1741, %v1439, 0.0
        %v1758 = vsel %vm1742, %v1442, 0.0
        %v1759 = vsel %vm1743, %v1447, 0.0
        %v1760 = vsel %vm1744, %v1450, 0.0
        %v1761 = vsel %vm1745, %v1455, 0.0
        %v1762 = vsel %vm1746, %v1458, 0.0
        %v1763 = vsel %vm1747, %v1463, 0.0
        %v1764 = vsel %vm1748, %v1466, 0.0
        %v1765 = vsel %vm1749, %v1471, 0.0
        %v1766 = vsel %vm1750, %v1474, 0.0
        %v1767 = vsel %vm1751, %v1479, 0.0
        %v1768 = vsel %vm1752, %v1482, 0.0
        %v1769 = vsel %vm1753, %v1487, 0.0
        %v1770 = vsel %vm1754, %v1490, 0.0
        %v1771 = vsel %vm1755, %v1495, 0.0
        %v1772 = vsel %vm1756, %v1498, 0.0
        %v1773 = vadd.f32 %v1581, %v1757
        %v1774 = vadd.f32 %v1582, %v1758
        %v1775 = vadd.f32 %v1583, %v1759
        %v1776 = vadd.f32 %v1584, %v1760
        %v1777 = vadd.f32 %v1585, %v1761
        %v1778 = vadd.f32 %v1586, %v1762
        %v1779 = vadd.f32 %v1587, %v1763
        %v1780 = vadd.f32 %v1588, %v1764
        %v1781 = vadd.f32 %v1589, %v1765
        %v1782 = vadd.f32 %v1590, %v1766
        %v1783 = vadd.f32 %v1591, %v1767
        %v1784 = vadd.f32 %v1592, %v1768
        %v1785 = vadd.f32 %v1593, %v1769
        %v1786 = vadd.f32 %v1594, %v1770
        %v1787 = vadd.f32 %v1595, %v1771
        %v1788 = vadd.f32 %v1596, %v1772
        %1805 = vrot.lane.b32.xlu0 %v1725, 16
        %v1806 = vpop.permute.xlu0 %1805
        %1807 = vrot.lane.b32.xlu0 %v1726, 16
        %v1808 = vpop.permute.xlu0 %1807
        %1809 = vrot.lane.b32.xlu0 %v1727, 16
        %v1810 = vpop.permute.xlu0 %1809
        %1811 = vrot.lane.b32.xlu0 %v1728, 16
        %v1812 = vpop.permute.xlu0 %1811
        %1813 = vrot.lane.b32.xlu0 %v1729, 16
        %v1814 = vpop.permute.xlu0 %1813
        %1815 = vrot.lane.b32.xlu0 %v1730, 16
        %v1816 = vpop.permute.xlu0 %1815
        %1817 = vrot.lane.b32.xlu0 %v1731, 16
        %v1818 = vpop.permute.xlu0 %1817
        %1819 = vrot.lane.b32.xlu0 %v1732, 16
        %v1820 = vpop.permute.xlu0 %1819
        %1821 = vrot.lane.b32.xlu0 %v1733, 16
        %v1822 = vpop.permute.xlu0 %1821
        %1823 = vrot.lane.b32.xlu0 %v1734, 16
        %v1824 = vpop.permute.xlu0 %1823
        %1825 = vrot.lane.b32.xlu0 %v1735, 16
        %v1826 = vpop.permute.xlu0 %1825
        %1827 = vrot.lane.b32.xlu0 %v1736, 16
        %v1828 = vpop.permute.xlu0 %1827
        %1829 = vrot.lane.b32.xlu0 %v1737, 16
        %v1830 = vpop.permute.xlu0 %1829
        %1831 = vrot.lane.b32.xlu0 %v1738, 16
        %v1832 = vpop.permute.xlu0 %1831
        %1833 = vrot.lane.b32.xlu0 %v1739, 16
        %v1834 = vpop.permute.xlu0 %1833
        %1835 = vrot.lane.b32.xlu0 %v1740, 16
        %v1836 = vpop.permute.xlu0 %1835
        %v1853 = vsub.f32 %v1439, %v1806
        %v1854 = vsub.f32 %v1442, %v1808
        %v1855 = vsub.f32 %v1447, %v1810
        %v1856 = vsub.f32 %v1450, %v1812
        %v1857 = vsub.f32 %v1455, %v1814
        %v1858 = vsub.f32 %v1458, %v1816
        %v1859 = vsub.f32 %v1463, %v1818
        %v1860 = vsub.f32 %v1466, %v1820
        %v1861 = vsub.f32 %v1471, %v1822
        %v1862 = vsub.f32 %v1474, %v1824
        %v1863 = vsub.f32 %v1479, %v1826
        %v1864 = vsub.f32 %v1482, %v1828
        %v1865 = vsub.f32 %v1487, %v1830
        %v1866 = vsub.f32 %v1490, %v1832
        %v1867 = vsub.f32 %v1495, %v1834
        %v1868 = vsub.f32 %v1498, %v1836
        %v1869 = vand.u32 2147483647, %v1853
        %v1870 = vand.u32 2147483647, %v1854
        %v1871 = vand.u32 2147483647, %v1855
        %v1872 = vand.u32 2147483647, %v1856
        %v1873 = vand.u32 2147483647, %v1857
        %v1874 = vand.u32 2147483647, %v1858
        %v1875 = vand.u32 2147483647, %v1859
        %v1876 = vand.u32 2147483647, %v1860
        %v1877 = vand.u32 2147483647, %v1861
        %v1878 = vand.u32 2147483647, %v1862
        %v1879 = vand.u32 2147483647, %v1863
        %v1880 = vand.u32 2147483647, %v1864
        %v1881 = vand.u32 2147483647, %v1865
        %v1882 = vand.u32 2147483647, %v1866
        %v1883 = vand.u32 2147483647, %v1867
        %v1884 = vand.u32 2147483647, %v1868
        %v1885 = vsub.f32 0.0, %v1869
        %v1886 = vsub.f32 0.0, %v1870
        %v1887 = vsub.f32 0.0, %v1871
        %v1888 = vsub.f32 0.0, %v1872
        %v1889 = vsub.f32 0.0, %v1873
        %v1890 = vsub.f32 0.0, %v1874
        %v1891 = vsub.f32 0.0, %v1875
        %v1892 = vsub.f32 0.0, %v1876
        %v1893 = vsub.f32 0.0, %v1877
        %v1894 = vsub.f32 0.0, %v1878
        %v1895 = vsub.f32 0.0, %v1879
        %v1896 = vsub.f32 0.0, %v1880
        %v1897 = vsub.f32 0.0, %v1881
        %v1898 = vsub.f32 0.0, %v1882
        %v1899 = vsub.f32 0.0, %v1883
        %v1900 = vsub.f32 0.0, %v1884
        %v1901 = vmul.f32 %v1885, 1.442695
        %v1902 = vpow.pop %v1901
        %v1903 = vmul.f32 %v1886, 1.442695
        %v1904 = vpow.pop %v1903
        %v1905 = vmul.f32 %v1887, 1.442695
        %v1906 = vpow.pop %v1905
        %v1907 = vmul.f32 %v1888, 1.442695
        %v1908 = vpow.pop %v1907
        %v1909 = vmul.f32 %v1889, 1.442695
        %v1910 = vpow.pop %v1909
        %v1911 = vmul.f32 %v1890, 1.442695
        %v1912 = vpow.pop %v1911
        %v1913 = vmul.f32 %v1891, 1.442695
        %v1914 = vpow.pop %v1913
        %v1915 = vmul.f32 %v1892, 1.442695
        %v1916 = vpow.pop %v1915
        %v1917 = vmul.f32 %v1893, 1.442695
        %v1918 = vpow.pop %v1917
        %v1919 = vmul.f32 %v1894, 1.442695
        %v1920 = vpow.pop %v1919
        %v1921 = vmul.f32 %v1895, 1.442695
        %v1922 = vpow.pop %v1921
        %v1923 = vmul.f32 %v1896, 1.442695
        %v1924 = vpow.pop %v1923
        %v1925 = vmul.f32 %v1897, 1.442695
        %v1926 = vpow.pop %v1925
        %v1927 = vmul.f32 %v1898, 1.442695
        %v1928 = vpow.pop %v1927
        %v1929 = vmul.f32 %v1899, 1.442695
        %v1930 = vpow.pop %v1929
        %v1931 = vmul.f32 %v1900, 1.442695
        %v1932 = vpow.pop %v1931
        %vm1933 = vcmp.gt.f32.partialorder %v1853, 0.0
        %vm1934 = vcmp.gt.f32.partialorder %v1854, 0.0
        %vm1935 = vcmp.gt.f32.partialorder %v1855, 0.0
        %vm1936 = vcmp.gt.f32.partialorder %v1856, 0.0
        %vm1937 = vcmp.gt.f32.partialorder %v1857, 0.0
        %vm1938 = vcmp.gt.f32.partialorder %v1858, 0.0
        %vm1939 = vcmp.gt.f32.partialorder %v1859, 0.0
        %vm1940 = vcmp.gt.f32.partialorder %v1860, 0.0
        %vm1941 = vcmp.gt.f32.partialorder %v1861, 0.0
        %vm1942 = vcmp.gt.f32.partialorder %v1862, 0.0
        %vm1943 = vcmp.gt.f32.partialorder %v1863, 0.0
        %vm1944 = vcmp.gt.f32.partialorder %v1864, 0.0
        %vm1945 = vcmp.gt.f32.partialorder %v1865, 0.0
        %vm1946 = vcmp.gt.f32.partialorder %v1866, 0.0
        %vm1947 = vcmp.gt.f32.partialorder %v1867, 0.0
        %vm1948 = vcmp.gt.f32.partialorder %v1868, 0.0
        %1965 = vrot.lane.b32.xlu0 %v1902, 112
        %v1966 = vpop.permute.xlu0 %1965
        %1967 = vrot.lane.b32.xlu0 %v1904, 112
        %v1968 = vpop.permute.xlu0 %1967
        %1969 = vrot.lane.b32.xlu0 %v1906, 112
        %v1970 = vpop.permute.xlu0 %1969
        %1971 = vrot.lane.b32.xlu0 %v1908, 112
        %v1972 = vpop.permute.xlu0 %1971
        %1973 = vrot.lane.b32.xlu0 %v1910, 112
        %v1974 = vpop.permute.xlu0 %1973
        %1975 = vrot.lane.b32.xlu0 %v1912, 112
        %v1976 = vpop.permute.xlu0 %1975
        %1977 = vrot.lane.b32.xlu0 %v1914, 112
        %v1978 = vpop.permute.xlu0 %1977
        %1979 = vrot.lane.b32.xlu0 %v1916, 112
        %v1980 = vpop.permute.xlu0 %1979
        %1981 = vrot.lane.b32.xlu0 %v1918, 112
        %v1982 = vpop.permute.xlu0 %1981
        %1983 = vrot.lane.b32.xlu0 %v1920, 112
        %v1984 = vpop.permute.xlu0 %1983
        %1985 = vrot.lane.b32.xlu0 %v1922, 112
        %v1986 = vpop.permute.xlu0 %1985
        %1987 = vrot.lane.b32.xlu0 %v1924, 112
        %v1988 = vpop.permute.xlu0 %1987
        %1989 = vrot.lane.b32.xlu0 %v1926, 112
        %v1990 = vpop.permute.xlu0 %1989
        %1991 = vrot.lane.b32.xlu0 %v1928, 112
        %v1992 = vpop.permute.xlu0 %1991
        %1993 = vrot.lane.b32.xlu0 %v1930, 112
        %v1994 = vpop.permute.xlu0 %1993
        %1995 = vrot.lane.b32.xlu0 %v1932, 112
        %v1996 = vpop.permute.xlu0 %1995
        %v2013 = vmul.f32 %v1693, %v1966
        %v2014 = vmul.f32 %v1694, %v1968
        %v2015 = vmul.f32 %v1695, %v1970
        %v2016 = vmul.f32 %v1696, %v1972
        %v2017 = vmul.f32 %v1697, %v1974
        %v2018 = vmul.f32 %v1698, %v1976
        %v2019 = vmul.f32 %v1699, %v1978
        %v2020 = vmul.f32 %v1700, %v1980
        %v2021 = vmul.f32 %v1701, %v1982
        %v2022 = vmul.f32 %v1702, %v1984
        %v2023 = vmul.f32 %v1703, %v1986
        %v2024 = vmul.f32 %v1704, %v1988
        %v2025 = vmul.f32 %v1705, %v1990
        %v2026 = vmul.f32 %v1706, %v1992
        %v2027 = vmul.f32 %v1707, %v1994
        %v2028 = vmul.f32 %v1708, %v1996
        %v2029 = vadd.f32 %v2013, 1.0
        %v2030 = vadd.f32 %v2014, 1.0
        %v2031 = vadd.f32 %v2015, 1.0
        %v2032 = vadd.f32 %v2016, 1.0
        %v2033 = vadd.f32 %v2017, 1.0
        %v2034 = vadd.f32 %v2018, 1.0
        %v2035 = vadd.f32 %v2019, 1.0
        %v2036 = vadd.f32 %v2020, 1.0
        %v2037 = vadd.f32 %v2021, 1.0
        %v2038 = vadd.f32 %v2022, 1.0
        %v2039 = vadd.f32 %v2023, 1.0
        %v2040 = vadd.f32 %v2024, 1.0
        %v2041 = vadd.f32 %v2025, 1.0
        %v2042 = vadd.f32 %v2026, 1.0
        %v2043 = vadd.f32 %v2027, 1.0
        %v2044 = vadd.f32 %v2028, 1.0
        %v2045 = vadd.f32 %v1693, %v1966
        %v2046 = vadd.f32 %v1694, %v1968
        %v2047 = vadd.f32 %v1695, %v1970
        %v2048 = vadd.f32 %v1696, %v1972
        %v2049 = vadd.f32 %v1697, %v1974
        %v2050 = vadd.f32 %v1698, %v1976
        %v2051 = vadd.f32 %v1699, %v1978
        %v2052 = vadd.f32 %v1700, %v1980
        %v2053 = vadd.f32 %v1701, %v1982
        %v2054 = vadd.f32 %v1702, %v1984
        %v2055 = vadd.f32 %v1703, %v1986
        %v2056 = vadd.f32 %v1704, %v1988
        %v2057 = vadd.f32 %v1705, %v1990
        %v2058 = vadd.f32 %v1706, %v1992
        %v2059 = vadd.f32 %v1707, %v1994
        %v2060 = vadd.f32 %v1708, %v1996
        %2077 = vrot.lane.b32.xlu0 %v2029, 16
        %v2078 = vpop.permute.xlu0 %2077
        %2079 = vrot.lane.b32.xlu0 %v2030, 16
        %v2080 = vpop.permute.xlu0 %2079
        %2081 = vrot.lane.b32.xlu0 %v2031, 16
        %v2082 = vpop.permute.xlu0 %2081
        %2083 = vrot.lane.b32.xlu0 %v2032, 16
        %v2084 = vpop.permute.xlu0 %2083
        %2085 = vrot.lane.b32.xlu0 %v2033, 16
        %v2086 = vpop.permute.xlu0 %2085
        %2087 = vrot.lane.b32.xlu0 %v2034, 16
        %v2088 = vpop.permute.xlu0 %2087
        %2089 = vrot.lane.b32.xlu0 %v2035, 16
        %v2090 = vpop.permute.xlu0 %2089
        %2091 = vrot.lane.b32.xlu0 %v2036, 16
        %v2092 = vpop.permute.xlu0 %2091
        %2093 = vrot.lane.b32.xlu0 %v2037, 16
        %v2094 = vpop.permute.xlu0 %2093
        %2095 = vrot.lane.b32.xlu0 %v2038, 16
        %v2096 = vpop.permute.xlu0 %2095
        %2097 = vrot.lane.b32.xlu0 %v2039, 16
        %v2098 = vpop.permute.xlu0 %2097
        %2099 = vrot.lane.b32.xlu0 %v2040, 16
        %v2100 = vpop.permute.xlu0 %2099
        %2101 = vrot.lane.b32.xlu0 %v2041, 16
        %v2102 = vpop.permute.xlu0 %2101
        %2103 = vrot.lane.b32.xlu0 %v2042, 16
        %v2104 = vpop.permute.xlu0 %2103
        %2105 = vrot.lane.b32.xlu0 %v2043, 16
        %v2106 = vpop.permute.xlu0 %2105
        %2107 = vrot.lane.b32.xlu0 %v2044, 16
        %v2108 = vpop.permute.xlu0 %2107
        %2141 = vrot.lane.b32.xlu0 %v2045, 16
        %v2142 = vpop.permute.xlu0 %2141
        %2143 = vrot.lane.b32.xlu0 %v2046, 16
        %v2144 = vpop.permute.xlu0 %2143
        %2145 = vrot.lane.b32.xlu0 %v2047, 16
        %v2146 = vpop.permute.xlu0 %2145
        %2147 = vrot.lane.b32.xlu0 %v2048, 16
        %v2148 = vpop.permute.xlu0 %2147
        %2149 = vrot.lane.b32.xlu0 %v2049, 16
        %v2150 = vpop.permute.xlu0 %2149
        %2151 = vrot.lane.b32.xlu0 %v2050, 16
        %v2152 = vpop.permute.xlu0 %2151
        %2153 = vrot.lane.b32.xlu0 %v2051, 16
        %v2154 = vpop.permute.xlu0 %2153
        %2155 = vrot.lane.b32.xlu0 %v2052, 16
        %v2156 = vpop.permute.xlu0 %2155
        %2157 = vrot.lane.b32.xlu0 %v2053, 16
        %v2158 = vpop.permute.xlu0 %2157
        %2159 = vrot.lane.b32.xlu0 %v2054, 16
        %v2160 = vpop.permute.xlu0 %2159
        %2161 = vrot.lane.b32.xlu0 %v2055, 16
        %v2162 = vpop.permute.xlu0 %2161
        %2163 = vrot.lane.b32.xlu0 %v2056, 16
        %v2164 = vpop.permute.xlu0 %2163
        %2165 = vrot.lane.b32.xlu0 %v2057, 16
        %v2166 = vpop.permute.xlu0 %2165
        %2167 = vrot.lane.b32.xlu0 %v2058, 16
        %v2168 = vpop.permute.xlu0 %2167
        %2169 = vrot.lane.b32.xlu0 %v2059, 16
        %v2170 = vpop.permute.xlu0 %2169
        %2171 = vrot.lane.b32.xlu0 %v2060, 16
        %v2172 = vpop.permute.xlu0 %2171
        %v2189 = vsel %vm1933, %v2078, %v2142
        %v2190 = vsel %vm1934, %v2080, %v2144
        %v2191 = vsel %vm1935, %v2082, %v2146
        %v2192 = vsel %vm1936, %v2084, %v2148
        %v2193 = vsel %vm1937, %v2086, %v2150
        %v2194 = vsel %vm1938, %v2088, %v2152
        %v2195 = vsel %vm1939, %v2090, %v2154
        %v2196 = vsel %vm1940, %v2092, %v2156
        %v2197 = vsel %vm1941, %v2094, %v2158
        %v2198 = vsel %vm1942, %v2096, %v2160
        %v2199 = vsel %vm1943, %v2098, %v2162
        %v2200 = vsel %vm1944, %v2100, %v2164
        %v2201 = vsel %vm1945, %v2102, %v2166
        %v2202 = vsel %vm1946, %v2104, %v2168
        %v2203 = vsel %vm1947, %v2106, %v2170
        %v2204 = vsel %vm1948, %v2108, %v2172
        %2221 = vrot.lane.b32.xlu0 %v1709, 16
        %v2222 = vpop.permute.xlu0 %2221
        %2223 = vrot.lane.b32.xlu0 %v1710, 16
        %v2224 = vpop.permute.xlu0 %2223
        %2225 = vrot.lane.b32.xlu0 %v1711, 16
        %v2226 = vpop.permute.xlu0 %2225
        %2227 = vrot.lane.b32.xlu0 %v1712, 16
        %v2228 = vpop.permute.xlu0 %2227
        %2229 = vrot.lane.b32.xlu0 %v1713, 16
        %v2230 = vpop.permute.xlu0 %2229
        %2231 = vrot.lane.b32.xlu0 %v1714, 16
        %v2232 = vpop.permute.xlu0 %2231
        %2233 = vrot.lane.b32.xlu0 %v1715, 16
        %v2234 = vpop.permute.xlu0 %2233
        %2235 = vrot.lane.b32.xlu0 %v1716, 16
        %v2236 = vpop.permute.xlu0 %2235
        %2237 = vrot.lane.b32.xlu0 %v1717, 16
        %v2238 = vpop.permute.xlu0 %2237
        %2239 = vrot.lane.b32.xlu0 %v1718, 16
        %v2240 = vpop.permute.xlu0 %2239
        %2241 = vrot.lane.b32.xlu0 %v1719, 16
        %v2242 = vpop.permute.xlu0 %2241
        %2243 = vrot.lane.b32.xlu0 %v1720, 16
        %v2244 = vpop.permute.xlu0 %2243
        %2245 = vrot.lane.b32.xlu0 %v1721, 16
        %v2246 = vpop.permute.xlu0 %2245
        %2247 = vrot.lane.b32.xlu0 %v1722, 16
        %v2248 = vpop.permute.xlu0 %2247
        %2249 = vrot.lane.b32.xlu0 %v1723, 16
        %v2250 = vpop.permute.xlu0 %2249
        %2251 = vrot.lane.b32.xlu0 %v1724, 16
        %v2252 = vpop.permute.xlu0 %2251
        %v2269 = vsel %vm1933, 2.0, %v2222
        %v2270 = vsel %vm1934, 2.0, %v2224
        %v2271 = vsel %vm1935, 2.0, %v2226
        %v2272 = vsel %vm1936, 2.0, %v2228
        %v2273 = vsel %vm1937, 2.0, %v2230
        %v2274 = vsel %vm1938, 2.0, %v2232
        %v2275 = vsel %vm1939, 2.0, %v2234
        %v2276 = vsel %vm1940, 2.0, %v2236
        %v2277 = vsel %vm1941, 2.0, %v2238
        %v2278 = vsel %vm1942, 2.0, %v2240
        %v2279 = vsel %vm1943, 2.0, %v2242
        %v2280 = vsel %vm1944, 2.0, %v2244
        %v2281 = vsel %vm1945, 2.0, %v2246
        %v2282 = vsel %vm1946, 2.0, %v2248
        %v2283 = vsel %vm1947, 2.0, %v2250
        %v2284 = vsel %vm1948, 2.0, %v2252
        %v2285 = vsel %vm1933, %v1439, %v1806
        %v2286 = vsel %vm1934, %v1442, %v1808
        %v2287 = vsel %vm1935, %v1447, %v1810
        %v2288 = vsel %vm1936, %v1450, %v1812
        %v2289 = vsel %vm1937, %v1455, %v1814
        %v2290 = vsel %vm1938, %v1458, %v1816
        %v2291 = vsel %vm1939, %v1463, %v1818
        %v2292 = vsel %vm1940, %v1466, %v1820
        %v2293 = vsel %vm1941, %v1471, %v1822
        %v2294 = vsel %vm1942, %v1474, %v1824
        %v2295 = vsel %vm1943, %v1479, %v1826
        %v2296 = vsel %vm1944, %v1482, %v1828
        %v2297 = vsel %vm1945, %v1487, %v1830
        %v2298 = vsel %vm1946, %v1490, %v1832
        %v2299 = vsel %vm1947, %v1495, %v1834
        %v2300 = vsel %vm1948, %v1498, %v1836
        %vm2301 = vcmp.eq.f32.partialorder %v259, 2.0
        %vm2302 = vcmp.eq.f32.partialorder %v260, 2.0
        %vm2303 = vcmp.eq.f32.partialorder %v261, 2.0
        %vm2304 = vcmp.eq.f32.partialorder %v262, 2.0
        %vm2305 = vcmp.eq.f32.partialorder %v263, 2.0
        %vm2306 = vcmp.eq.f32.partialorder %v264, 2.0
        %vm2307 = vcmp.eq.f32.partialorder %v265, 2.0
        %vm2308 = vcmp.eq.f32.partialorder %v266, 2.0
        %vm2309 = vcmp.eq.f32.partialorder %v267, 2.0
        %vm2310 = vcmp.eq.f32.partialorder %v268, 2.0
        %vm2311 = vcmp.eq.f32.partialorder %v269, 2.0
        %vm2312 = vcmp.eq.f32.partialorder %v270, 2.0
        %vm2313 = vcmp.eq.f32.partialorder %v271, 2.0
        %vm2314 = vcmp.eq.f32.partialorder %v272, 2.0
        %vm2315 = vcmp.eq.f32.partialorder %v273, 2.0
        %vm2316 = vcmp.eq.f32.partialorder %v274, 2.0
        %2317 = vrot.lane.b32.xlu0 %v1439, 112
        %v2318 = vpop.permute.xlu0 %2317
        %2319 = vrot.lane.b32.xlu0 %v1442, 112
        %v2320 = vpop.permute.xlu0 %2319
        %2321 = vrot.lane.b32.xlu0 %v1447, 112
        %v2322 = vpop.permute.xlu0 %2321
        %2323 = vrot.lane.b32.xlu0 %v1450, 112
        %v2324 = vpop.permute.xlu0 %2323
        %2325 = vrot.lane.b32.xlu0 %v1455, 112
        %v2326 = vpop.permute.xlu0 %2325
        %2327 = vrot.lane.b32.xlu0 %v1458, 112
        %v2328 = vpop.permute.xlu0 %2327
        %2329 = vrot.lane.b32.xlu0 %v1463, 112
        %v2330 = vpop.permute.xlu0 %2329
        %2331 = vrot.lane.b32.xlu0 %v1466, 112
        %v2332 = vpop.permute.xlu0 %2331
        %2333 = vrot.lane.b32.xlu0 %v1471, 112
        %v2334 = vpop.permute.xlu0 %2333
        %2335 = vrot.lane.b32.xlu0 %v1474, 112
        %v2336 = vpop.permute.xlu0 %2335
        %2337 = vrot.lane.b32.xlu0 %v1479, 112
        %v2338 = vpop.permute.xlu0 %2337
        %2339 = vrot.lane.b32.xlu0 %v1482, 112
        %v2340 = vpop.permute.xlu0 %2339
        %2341 = vrot.lane.b32.xlu0 %v1487, 112
        %v2342 = vpop.permute.xlu0 %2341
        %2343 = vrot.lane.b32.xlu0 %v1490, 112
        %v2344 = vpop.permute.xlu0 %2343
        %2345 = vrot.lane.b32.xlu0 %v1495, 112
        %v2346 = vpop.permute.xlu0 %2345
        %2347 = vrot.lane.b32.xlu0 %v1498, 112
        %v2348 = vpop.permute.xlu0 %2347
        %v2365 = vsel %vm2301, %v2318, 0.0
        %v2366 = vsel %vm2302, %v2320, 0.0
        %v2367 = vsel %vm2303, %v2322, 0.0
        %v2368 = vsel %vm2304, %v2324, 0.0
        %v2369 = vsel %vm2305, %v2326, 0.0
        %v2370 = vsel %vm2306, %v2328, 0.0
        %v2371 = vsel %vm2307, %v2330, 0.0
        %v2372 = vsel %vm2308, %v2332, 0.0
        %v2373 = vsel %vm2309, %v2334, 0.0
        %v2374 = vsel %vm2310, %v2336, 0.0
        %v2375 = vsel %vm2311, %v2338, 0.0
        %v2376 = vsel %vm2312, %v2340, 0.0
        %v2377 = vsel %vm2313, %v2342, 0.0
        %v2378 = vsel %vm2314, %v2344, 0.0
        %v2379 = vsel %vm2315, %v2346, 0.0
        %v2380 = vsel %vm2316, %v2348, 0.0
        %v2381 = vadd.f32 %v1773, %v2365
        %v2382 = vadd.f32 %v1774, %v2366
        %v2383 = vadd.f32 %v1775, %v2367
        %v2384 = vadd.f32 %v1776, %v2368
        %v2385 = vadd.f32 %v1777, %v2369
        %v2386 = vadd.f32 %v1778, %v2370
        %v2387 = vadd.f32 %v1779, %v2371
        %v2388 = vadd.f32 %v1780, %v2372
        %v2389 = vadd.f32 %v1781, %v2373
        %v2390 = vadd.f32 %v1782, %v2374
        %v2391 = vadd.f32 %v1783, %v2375
        %v2392 = vadd.f32 %v1784, %v2376
        %v2393 = vadd.f32 %v1785, %v2377
        %v2394 = vadd.f32 %v1786, %v2378
        %v2395 = vadd.f32 %v1787, %v2379
        %v2396 = vadd.f32 %v1788, %v2380
        %2413 = vrot.lane.b32.xlu0 %v2285, 16
        %v2414 = vpop.permute.xlu0 %2413
        %2415 = vrot.lane.b32.xlu0 %v2286, 16
        %v2416 = vpop.permute.xlu0 %2415
        %2417 = vrot.lane.b32.xlu0 %v2287, 16
        %v2418 = vpop.permute.xlu0 %2417
        %2419 = vrot.lane.b32.xlu0 %v2288, 16
        %v2420 = vpop.permute.xlu0 %2419
        %2421 = vrot.lane.b32.xlu0 %v2289, 16
        %v2422 = vpop.permute.xlu0 %2421
        %2423 = vrot.lane.b32.xlu0 %v2290, 16
        %v2424 = vpop.permute.xlu0 %2423
        %2425 = vrot.lane.b32.xlu0 %v2291, 16
        %v2426 = vpop.permute.xlu0 %2425
        %2427 = vrot.lane.b32.xlu0 %v2292, 16
        %v2428 = vpop.permute.xlu0 %2427
        %2429 = vrot.lane.b32.xlu0 %v2293, 16
        %v2430 = vpop.permute.xlu0 %2429
        %2431 = vrot.lane.b32.xlu0 %v2294, 16
        %v2432 = vpop.permute.xlu0 %2431
        %2433 = vrot.lane.b32.xlu0 %v2295, 16
        %v2434 = vpop.permute.xlu0 %2433
        %2435 = vrot.lane.b32.xlu0 %v2296, 16
        %v2436 = vpop.permute.xlu0 %2435
        %2437 = vrot.lane.b32.xlu0 %v2297, 16
        %v2438 = vpop.permute.xlu0 %2437
        %2439 = vrot.lane.b32.xlu0 %v2298, 16
        %v2440 = vpop.permute.xlu0 %2439
        %2441 = vrot.lane.b32.xlu0 %v2299, 16
        %v2442 = vpop.permute.xlu0 %2441
        %2443 = vrot.lane.b32.xlu0 %v2300, 16
        %v2444 = vpop.permute.xlu0 %2443
        %v2461 = vsub.f32 %v1439, %v2414
        %v2462 = vsub.f32 %v1442, %v2416
        %v2463 = vsub.f32 %v1447, %v2418
        %v2464 = vsub.f32 %v1450, %v2420
        %v2465 = vsub.f32 %v1455, %v2422
        %v2466 = vsub.f32 %v1458, %v2424
        %v2467 = vsub.f32 %v1463, %v2426
        %v2468 = vsub.f32 %v1466, %v2428
        %v2469 = vsub.f32 %v1471, %v2430
        %v2470 = vsub.f32 %v1474, %v2432
        %v2471 = vsub.f32 %v1479, %v2434
        %v2472 = vsub.f32 %v1482, %v2436
        %v2473 = vsub.f32 %v1487, %v2438
        %v2474 = vsub.f32 %v1490, %v2440
        %v2475 = vsub.f32 %v1495, %v2442
        %v2476 = vsub.f32 %v1498, %v2444
        %v2477 = vand.u32 2147483647, %v2461
        %v2478 = vand.u32 2147483647, %v2462
        %v2479 = vand.u32 2147483647, %v2463
        %v2480 = vand.u32 2147483647, %v2464
        %v2481 = vand.u32 2147483647, %v2465
        %v2482 = vand.u32 2147483647, %v2466
        %v2483 = vand.u32 2147483647, %v2467
        %v2484 = vand.u32 2147483647, %v2468
        %v2485 = vand.u32 2147483647, %v2469
        %v2486 = vand.u32 2147483647, %v2470
        %v2487 = vand.u32 2147483647, %v2471
        %v2488 = vand.u32 2147483647, %v2472
        %v2489 = vand.u32 2147483647, %v2473
        %v2490 = vand.u32 2147483647, %v2474
        %v2491 = vand.u32 2147483647, %v2475
        %v2492 = vand.u32 2147483647, %v2476
        %v2493 = vsub.f32 0.0, %v2477
        %v2494 = vsub.f32 0.0, %v2478
        %v2495 = vsub.f32 0.0, %v2479
        %v2496 = vsub.f32 0.0, %v2480
        %v2497 = vsub.f32 0.0, %v2481
        %v2498 = vsub.f32 0.0, %v2482
        %v2499 = vsub.f32 0.0, %v2483
        %v2500 = vsub.f32 0.0, %v2484
        %v2501 = vsub.f32 0.0, %v2485
        %v2502 = vsub.f32 0.0, %v2486
        %v2503 = vsub.f32 0.0, %v2487
        %v2504 = vsub.f32 0.0, %v2488
        %v2505 = vsub.f32 0.0, %v2489
        %v2506 = vsub.f32 0.0, %v2490
        %v2507 = vsub.f32 0.0, %v2491
        %v2508 = vsub.f32 0.0, %v2492
        %v2509 = vmul.f32 %v2493, 1.442695
        %v2510 = vpow.pop %v2509
        %v2511 = vmul.f32 %v2494, 1.442695
        %v2512 = vpow.pop %v2511
        %v2513 = vmul.f32 %v2495, 1.442695
        %v2514 = vpow.pop %v2513
        %v2515 = vmul.f32 %v2496, 1.442695
        %v2516 = vpow.pop %v2515
        %v2517 = vmul.f32 %v2497, 1.442695
        %v2518 = vpow.pop %v2517
        %v2519 = vmul.f32 %v2498, 1.442695
        %v2520 = vpow.pop %v2519
        %v2521 = vmul.f32 %v2499, 1.442695
        %v2522 = vpow.pop %v2521
        %v2523 = vmul.f32 %v2500, 1.442695
        %v2524 = vpow.pop %v2523
        %v2525 = vmul.f32 %v2501, 1.442695
        %v2526 = vpow.pop %v2525
        %v2527 = vmul.f32 %v2502, 1.442695
        %v2528 = vpow.pop %v2527
        %v2529 = vmul.f32 %v2503, 1.442695
        %v2530 = vpow.pop %v2529
        %v2531 = vmul.f32 %v2504, 1.442695
        %v2532 = vpow.pop %v2531
        %v2533 = vmul.f32 %v2505, 1.442695
        %v2534 = vpow.pop %v2533
        %v2535 = vmul.f32 %v2506, 1.442695
        %v2536 = vpow.pop %v2535
        %v2537 = vmul.f32 %v2507, 1.442695
        %v2538 = vpow.pop %v2537
        %v2539 = vmul.f32 %v2508, 1.442695
        %v2540 = vpow.pop %v2539
        %vm2541 = vcmp.gt.f32.partialorder %v2461, 0.0
        %vm2542 = vcmp.gt.f32.partialorder %v2462, 0.0
        %vm2543 = vcmp.gt.f32.partialorder %v2463, 0.0
        %vm2544 = vcmp.gt.f32.partialorder %v2464, 0.0
        %vm2545 = vcmp.gt.f32.partialorder %v2465, 0.0
        %vm2546 = vcmp.gt.f32.partialorder %v2466, 0.0
        %vm2547 = vcmp.gt.f32.partialorder %v2467, 0.0
        %vm2548 = vcmp.gt.f32.partialorder %v2468, 0.0
        %vm2549 = vcmp.gt.f32.partialorder %v2469, 0.0
        %vm2550 = vcmp.gt.f32.partialorder %v2470, 0.0
        %vm2551 = vcmp.gt.f32.partialorder %v2471, 0.0
        %vm2552 = vcmp.gt.f32.partialorder %v2472, 0.0
        %vm2553 = vcmp.gt.f32.partialorder %v2473, 0.0
        %vm2554 = vcmp.gt.f32.partialorder %v2474, 0.0
        %vm2555 = vcmp.gt.f32.partialorder %v2475, 0.0
        %vm2556 = vcmp.gt.f32.partialorder %v2476, 0.0
        %2573 = vrot.lane.b32.xlu0 %v2510, 112
        %v2574 = vpop.permute.xlu0 %2573
        %2575 = vrot.lane.b32.xlu0 %v2512, 112
        %v2576 = vpop.permute.xlu0 %2575
        %2577 = vrot.lane.b32.xlu0 %v2514, 112
        %v2578 = vpop.permute.xlu0 %2577
        %2579 = vrot.lane.b32.xlu0 %v2516, 112
        %v2580 = vpop.permute.xlu0 %2579
        %2581 = vrot.lane.b32.xlu0 %v2518, 112
        %v2582 = vpop.permute.xlu0 %2581
        %2583 = vrot.lane.b32.xlu0 %v2520, 112
        %v2584 = vpop.permute.xlu0 %2583
        %2585 = vrot.lane.b32.xlu0 %v2522, 112
        %v2586 = vpop.permute.xlu0 %2585
        %2587 = vrot.lane.b32.xlu0 %v2524, 112
        %v2588 = vpop.permute.xlu0 %2587
        %2589 = vrot.lane.b32.xlu0 %v2526, 112
        %v2590 = vpop.permute.xlu0 %2589
        %2591 = vrot.lane.b32.xlu0 %v2528, 112
        %v2592 = vpop.permute.xlu0 %2591
        %2593 = vrot.lane.b32.xlu0 %v2530, 112
        %v2594 = vpop.permute.xlu0 %2593
        %2595 = vrot.lane.b32.xlu0 %v2532, 112
        %v2596 = vpop.permute.xlu0 %2595
        %2597 = vrot.lane.b32.xlu0 %v2534, 112
        %v2598 = vpop.permute.xlu0 %2597
        %2599 = vrot.lane.b32.xlu0 %v2536, 112
        %v2600 = vpop.permute.xlu0 %2599
        %2601 = vrot.lane.b32.xlu0 %v2538, 112
        %v2602 = vpop.permute.xlu0 %2601
        %2603 = vrot.lane.b32.xlu0 %v2540, 112
        %v2604 = vpop.permute.xlu0 %2603
        %v2621 = vmul.f32 %v2189, %v2574
        %v2622 = vmul.f32 %v2190, %v2576
        %v2623 = vmul.f32 %v2191, %v2578
        %v2624 = vmul.f32 %v2192, %v2580
        %v2625 = vmul.f32 %v2193, %v2582
        %v2626 = vmul.f32 %v2194, %v2584
        %v2627 = vmul.f32 %v2195, %v2586
        %v2628 = vmul.f32 %v2196, %v2588
        %v2629 = vmul.f32 %v2197, %v2590
        %v2630 = vmul.f32 %v2198, %v2592
        %v2631 = vmul.f32 %v2199, %v2594
        %v2632 = vmul.f32 %v2200, %v2596
        %v2633 = vmul.f32 %v2201, %v2598
        %v2634 = vmul.f32 %v2202, %v2600
        %v2635 = vmul.f32 %v2203, %v2602
        %v2636 = vmul.f32 %v2204, %v2604
        %v2637 = vadd.f32 %v2621, 1.0
        %v2638 = vadd.f32 %v2622, 1.0
        %v2639 = vadd.f32 %v2623, 1.0
        %v2640 = vadd.f32 %v2624, 1.0
        %v2641 = vadd.f32 %v2625, 1.0
        %v2642 = vadd.f32 %v2626, 1.0
        %v2643 = vadd.f32 %v2627, 1.0
        %v2644 = vadd.f32 %v2628, 1.0
        %v2645 = vadd.f32 %v2629, 1.0
        %v2646 = vadd.f32 %v2630, 1.0
        %v2647 = vadd.f32 %v2631, 1.0
        %v2648 = vadd.f32 %v2632, 1.0
        %v2649 = vadd.f32 %v2633, 1.0
        %v2650 = vadd.f32 %v2634, 1.0
        %v2651 = vadd.f32 %v2635, 1.0
        %v2652 = vadd.f32 %v2636, 1.0
        %v2653 = vadd.f32 %v2189, %v2574
        %v2654 = vadd.f32 %v2190, %v2576
        %v2655 = vadd.f32 %v2191, %v2578
        %v2656 = vadd.f32 %v2192, %v2580
        %v2657 = vadd.f32 %v2193, %v2582
        %v2658 = vadd.f32 %v2194, %v2584
        %v2659 = vadd.f32 %v2195, %v2586
        %v2660 = vadd.f32 %v2196, %v2588
        %v2661 = vadd.f32 %v2197, %v2590
        %v2662 = vadd.f32 %v2198, %v2592
        %v2663 = vadd.f32 %v2199, %v2594
        %v2664 = vadd.f32 %v2200, %v2596
        %v2665 = vadd.f32 %v2201, %v2598
        %v2666 = vadd.f32 %v2202, %v2600
        %v2667 = vadd.f32 %v2203, %v2602
        %v2668 = vadd.f32 %v2204, %v2604
        %2685 = vrot.lane.b32.xlu0 %v2637, 16
        %v2686 = vpop.permute.xlu0 %2685
        %2687 = vrot.lane.b32.xlu0 %v2638, 16
        %v2688 = vpop.permute.xlu0 %2687
        %2689 = vrot.lane.b32.xlu0 %v2639, 16
        %v2690 = vpop.permute.xlu0 %2689
        %2691 = vrot.lane.b32.xlu0 %v2640, 16
        %v2692 = vpop.permute.xlu0 %2691
        %2693 = vrot.lane.b32.xlu0 %v2641, 16
        %v2694 = vpop.permute.xlu0 %2693
        %2695 = vrot.lane.b32.xlu0 %v2642, 16
        %v2696 = vpop.permute.xlu0 %2695
        %2697 = vrot.lane.b32.xlu0 %v2643, 16
        %v2698 = vpop.permute.xlu0 %2697
        %2699 = vrot.lane.b32.xlu0 %v2644, 16
        %v2700 = vpop.permute.xlu0 %2699
        %2701 = vrot.lane.b32.xlu0 %v2645, 16
        %v2702 = vpop.permute.xlu0 %2701
        %2703 = vrot.lane.b32.xlu0 %v2646, 16
        %v2704 = vpop.permute.xlu0 %2703
        %2705 = vrot.lane.b32.xlu0 %v2647, 16
        %v2706 = vpop.permute.xlu0 %2705
        %2707 = vrot.lane.b32.xlu0 %v2648, 16
        %v2708 = vpop.permute.xlu0 %2707
        %2709 = vrot.lane.b32.xlu0 %v2649, 16
        %v2710 = vpop.permute.xlu0 %2709
        %2711 = vrot.lane.b32.xlu0 %v2650, 16
        %v2712 = vpop.permute.xlu0 %2711
        %2713 = vrot.lane.b32.xlu0 %v2651, 16
        %v2714 = vpop.permute.xlu0 %2713
        %2715 = vrot.lane.b32.xlu0 %v2652, 16
        %v2716 = vpop.permute.xlu0 %2715
        %2749 = vrot.lane.b32.xlu0 %v2653, 16
        %v2750 = vpop.permute.xlu0 %2749
        %2751 = vrot.lane.b32.xlu0 %v2654, 16
        %v2752 = vpop.permute.xlu0 %2751
        %2753 = vrot.lane.b32.xlu0 %v2655, 16
        %v2754 = vpop.permute.xlu0 %2753
        %2755 = vrot.lane.b32.xlu0 %v2656, 16
        %v2756 = vpop.permute.xlu0 %2755
        %2757 = vrot.lane.b32.xlu0 %v2657, 16
        %v2758 = vpop.permute.xlu0 %2757
        %2759 = vrot.lane.b32.xlu0 %v2658, 16
        %v2760 = vpop.permute.xlu0 %2759
        %2761 = vrot.lane.b32.xlu0 %v2659, 16
        %v2762 = vpop.permute.xlu0 %2761
        %2763 = vrot.lane.b32.xlu0 %v2660, 16
        %v2764 = vpop.permute.xlu0 %2763
        %2765 = vrot.lane.b32.xlu0 %v2661, 16
        %v2766 = vpop.permute.xlu0 %2765
        %2767 = vrot.lane.b32.xlu0 %v2662, 16
        %v2768 = vpop.permute.xlu0 %2767
        %2769 = vrot.lane.b32.xlu0 %v2663, 16
        %v2770 = vpop.permute.xlu0 %2769
        %2771 = vrot.lane.b32.xlu0 %v2664, 16
        %v2772 = vpop.permute.xlu0 %2771
        %2773 = vrot.lane.b32.xlu0 %v2665, 16
        %v2774 = vpop.permute.xlu0 %2773
        %2775 = vrot.lane.b32.xlu0 %v2666, 16
        %v2776 = vpop.permute.xlu0 %2775
        %2777 = vrot.lane.b32.xlu0 %v2667, 16
        %v2778 = vpop.permute.xlu0 %2777
        %2779 = vrot.lane.b32.xlu0 %v2668, 16
        %v2780 = vpop.permute.xlu0 %2779
        %v2797 = vsel %vm2541, %v2686, %v2750
        %v2798 = vsel %vm2542, %v2688, %v2752
        %v2799 = vsel %vm2543, %v2690, %v2754
        %v2800 = vsel %vm2544, %v2692, %v2756
        %v2801 = vsel %vm2545, %v2694, %v2758
        %v2802 = vsel %vm2546, %v2696, %v2760
        %v2803 = vsel %vm2547, %v2698, %v2762
        %v2804 = vsel %vm2548, %v2700, %v2764
        %v2805 = vsel %vm2549, %v2702, %v2766
        %v2806 = vsel %vm2550, %v2704, %v2768
        %v2807 = vsel %vm2551, %v2706, %v2770
        %v2808 = vsel %vm2552, %v2708, %v2772
        %v2809 = vsel %vm2553, %v2710, %v2774
        %v2810 = vsel %vm2554, %v2712, %v2776
        %v2811 = vsel %vm2555, %v2714, %v2778
        %v2812 = vsel %vm2556, %v2716, %v2780
        %2829 = vrot.lane.b32.xlu0 %v2269, 16
        %v2830 = vpop.permute.xlu0 %2829
        %2831 = vrot.lane.b32.xlu0 %v2270, 16
        %v2832 = vpop.permute.xlu0 %2831
        %2833 = vrot.lane.b32.xlu0 %v2271, 16
        %v2834 = vpop.permute.xlu0 %2833
        %2835 = vrot.lane.b32.xlu0 %v2272, 16
        %v2836 = vpop.permute.xlu0 %2835
        %2837 = vrot.lane.b32.xlu0 %v2273, 16
        %v2838 = vpop.permute.xlu0 %2837
        %2839 = vrot.lane.b32.xlu0 %v2274, 16
        %v2840 = vpop.permute.xlu0 %2839
        %2841 = vrot.lane.b32.xlu0 %v2275, 16
        %v2842 = vpop.permute.xlu0 %2841
        %2843 = vrot.lane.b32.xlu0 %v2276, 16
        %v2844 = vpop.permute.xlu0 %2843
        %2845 = vrot.lane.b32.xlu0 %v2277, 16
        %v2846 = vpop.permute.xlu0 %2845
        %2847 = vrot.lane.b32.xlu0 %v2278, 16
        %v2848 = vpop.permute.xlu0 %2847
        %2849 = vrot.lane.b32.xlu0 %v2279, 16
        %v2850 = vpop.permute.xlu0 %2849
        %2851 = vrot.lane.b32.xlu0 %v2280, 16
        %v2852 = vpop.permute.xlu0 %2851
        %2853 = vrot.lane.b32.xlu0 %v2281, 16
        %v2854 = vpop.permute.xlu0 %2853
        %2855 = vrot.lane.b32.xlu0 %v2282, 16
        %v2856 = vpop.permute.xlu0 %2855
        %2857 = vrot.lane.b32.xlu0 %v2283, 16
        %v2858 = vpop.permute.xlu0 %2857
        %2859 = vrot.lane.b32.xlu0 %v2284, 16
        %v2860 = vpop.permute.xlu0 %2859
        %v2877 = vsel %vm2541, 3.0, %v2830
        %v2878 = vsel %vm2542, 3.0, %v2832
        %v2879 = vsel %vm2543, 3.0, %v2834
        %v2880 = vsel %vm2544, 3.0, %v2836
        %v2881 = vsel %vm2545, 3.0, %v2838
        %v2882 = vsel %vm2546, 3.0, %v2840
        %v2883 = vsel %vm2547, 3.0, %v2842
        %v2884 = vsel %vm2548, 3.0, %v2844
        %v2885 = vsel %vm2549, 3.0, %v2846
        %v2886 = vsel %vm2550, 3.0, %v2848
        %v2887 = vsel %vm2551, 3.0, %v2850
        %v2888 = vsel %vm2552, 3.0, %v2852
        %v2889 = vsel %vm2553, 3.0, %v2854
        %v2890 = vsel %vm2554, 3.0, %v2856
        %v2891 = vsel %vm2555, 3.0, %v2858
        %v2892 = vsel %vm2556, 3.0, %v2860
        %v2893 = vsel %vm2541, %v1439, %v2414
        %v2894 = vsel %vm2542, %v1442, %v2416
        %v2895 = vsel %vm2543, %v1447, %v2418
        %v2896 = vsel %vm2544, %v1450, %v2420
        %v2897 = vsel %vm2545, %v1455, %v2422
        %v2898 = vsel %vm2546, %v1458, %v2424
        %v2899 = vsel %vm2547, %v1463, %v2426
        %v2900 = vsel %vm2548, %v1466, %v2428
        %v2901 = vsel %vm2549, %v1471, %v2430
        %v2902 = vsel %vm2550, %v1474, %v2432
        %v2903 = vsel %vm2551, %v1479, %v2434
        %v2904 = vsel %vm2552, %v1482, %v2436
        %v2905 = vsel %vm2553, %v1487, %v2438
        %v2906 = vsel %vm2554, %v1490, %v2440
        %v2907 = vsel %vm2555, %v1495, %v2442
        %v2908 = vsel %vm2556, %v1498, %v2444
        %vm2909 = vcmp.eq.f32.partialorder %v259, 3.0
        %vm2910 = vcmp.eq.f32.partialorder %v260, 3.0
        %vm2911 = vcmp.eq.f32.partialorder %v261, 3.0
        %vm2912 = vcmp.eq.f32.partialorder %v262, 3.0
        %vm2913 = vcmp.eq.f32.partialorder %v263, 3.0
        %vm2914 = vcmp.eq.f32.partialorder %v264, 3.0
        %vm2915 = vcmp.eq.f32.partialorder %v265, 3.0
        %vm2916 = vcmp.eq.f32.partialorder %v266, 3.0
        %vm2917 = vcmp.eq.f32.partialorder %v267, 3.0
        %vm2918 = vcmp.eq.f32.partialorder %v268, 3.0
        %vm2919 = vcmp.eq.f32.partialorder %v269, 3.0
        %vm2920 = vcmp.eq.f32.partialorder %v270, 3.0
        %vm2921 = vcmp.eq.f32.partialorder %v271, 3.0
        %vm2922 = vcmp.eq.f32.partialorder %v272, 3.0
        %vm2923 = vcmp.eq.f32.partialorder %v273, 3.0
        %vm2924 = vcmp.eq.f32.partialorder %v274, 3.0
        %2925 = vrot.lane.b32.xlu0 %v1439, 96
        %v2926 = vpop.permute.xlu0 %2925
        %2927 = vrot.lane.b32.xlu0 %v1442, 96
        %v2928 = vpop.permute.xlu0 %2927
        %2929 = vrot.lane.b32.xlu0 %v1447, 96
        %v2930 = vpop.permute.xlu0 %2929
        %2931 = vrot.lane.b32.xlu0 %v1450, 96
        %v2932 = vpop.permute.xlu0 %2931
        %2933 = vrot.lane.b32.xlu0 %v1455, 96
        %v2934 = vpop.permute.xlu0 %2933
        %2935 = vrot.lane.b32.xlu0 %v1458, 96
        %v2936 = vpop.permute.xlu0 %2935
        %2937 = vrot.lane.b32.xlu0 %v1463, 96
        %v2938 = vpop.permute.xlu0 %2937
        %2939 = vrot.lane.b32.xlu0 %v1466, 96
        %v2940 = vpop.permute.xlu0 %2939
        %2941 = vrot.lane.b32.xlu0 %v1471, 96
        %v2942 = vpop.permute.xlu0 %2941
        %2943 = vrot.lane.b32.xlu0 %v1474, 96
        %v2944 = vpop.permute.xlu0 %2943
        %2945 = vrot.lane.b32.xlu0 %v1479, 96
        %v2946 = vpop.permute.xlu0 %2945
        %2947 = vrot.lane.b32.xlu0 %v1482, 96
        %v2948 = vpop.permute.xlu0 %2947
        %2949 = vrot.lane.b32.xlu0 %v1487, 96
        %v2950 = vpop.permute.xlu0 %2949
        %2951 = vrot.lane.b32.xlu0 %v1490, 96
        %v2952 = vpop.permute.xlu0 %2951
        %2953 = vrot.lane.b32.xlu0 %v1495, 96
        %v2954 = vpop.permute.xlu0 %2953
        %2955 = vrot.lane.b32.xlu0 %v1498, 96
        %v2956 = vpop.permute.xlu0 %2955
        %v2973 = vsel %vm2909, %v2926, 0.0
        %v2974 = vsel %vm2910, %v2928, 0.0
        %v2975 = vsel %vm2911, %v2930, 0.0
        %v2976 = vsel %vm2912, %v2932, 0.0
        %v2977 = vsel %vm2913, %v2934, 0.0
        %v2978 = vsel %vm2914, %v2936, 0.0
        %v2979 = vsel %vm2915, %v2938, 0.0
        %v2980 = vsel %vm2916, %v2940, 0.0
        %v2981 = vsel %vm2917, %v2942, 0.0
        %v2982 = vsel %vm2918, %v2944, 0.0
        %v2983 = vsel %vm2919, %v2946, 0.0
        %v2984 = vsel %vm2920, %v2948, 0.0
        %v2985 = vsel %vm2921, %v2950, 0.0
        %v2986 = vsel %vm2922, %v2952, 0.0
        %v2987 = vsel %vm2923, %v2954, 0.0
        %v2988 = vsel %vm2924, %v2956, 0.0
        %v2989 = vadd.f32 %v2381, %v2973
        %v2990 = vadd.f32 %v2382, %v2974
        %v2991 = vadd.f32 %v2383, %v2975
        %v2992 = vadd.f32 %v2384, %v2976
        %v2993 = vadd.f32 %v2385, %v2977
        %v2994 = vadd.f32 %v2386, %v2978
        %v2995 = vadd.f32 %v2387, %v2979
        %v2996 = vadd.f32 %v2388, %v2980
        %v2997 = vadd.f32 %v2389, %v2981
        %v2998 = vadd.f32 %v2390, %v2982
        %v2999 = vadd.f32 %v2391, %v2983
        %v3000 = vadd.f32 %v2392, %v2984
        %v3001 = vadd.f32 %v2393, %v2985
        %v3002 = vadd.f32 %v2394, %v2986
        %v3003 = vadd.f32 %v2395, %v2987
        %v3004 = vadd.f32 %v2396, %v2988
        %v3005 = vlog2.pop %v2797
        %v3006 = vmul.f32 %v3005, 0.6931472
        %v3007 = vlog2.pop %v2798
        %v3008 = vmul.f32 %v3007, 0.6931472
        %v3009 = vlog2.pop %v2799
        %v3010 = vmul.f32 %v3009, 0.6931472
        %v3011 = vlog2.pop %v2800
        %v3012 = vmul.f32 %v3011, 0.6931472
        %v3013 = vlog2.pop %v2801
        %v3014 = vmul.f32 %v3013, 0.6931472
        %v3015 = vlog2.pop %v2802
        %v3016 = vmul.f32 %v3015, 0.6931472
        %v3017 = vlog2.pop %v2803
        %v3018 = vmul.f32 %v3017, 0.6931472
        %v3019 = vlog2.pop %v2804
        %v3020 = vmul.f32 %v3019, 0.6931472
        %v3021 = vlog2.pop %v2805
        %v3022 = vmul.f32 %v3021, 0.6931472
        %v3023 = vlog2.pop %v2806
        %v3024 = vmul.f32 %v3023, 0.6931472
        %v3025 = vlog2.pop %v2807
        %v3026 = vmul.f32 %v3025, 0.6931472
        %v3027 = vlog2.pop %v2808
        %v3028 = vmul.f32 %v3027, 0.6931472
        %v3029 = vlog2.pop %v2809
        %v3030 = vmul.f32 %v3029, 0.6931472
        %v3031 = vlog2.pop %v2810
        %v3032 = vmul.f32 %v3031, 0.6931472
        %v3033 = vlog2.pop %v2811
        %v3034 = vmul.f32 %v3033, 0.6931472
        %v3035 = vlog2.pop %v2812
        %v3036 = vmul.f32 %v3035, 0.6931472
        %v3037 = vadd.f32 %v2893, %v3006
        %v3038 = vadd.f32 %v2894, %v3008
        %v3039 = vadd.f32 %v2895, %v3010
        %v3040 = vadd.f32 %v2896, %v3012
        %v3041 = vadd.f32 %v2897, %v3014
        %v3042 = vadd.f32 %v2898, %v3016
        %v3043 = vadd.f32 %v2899, %v3018
        %v3044 = vadd.f32 %v2900, %v3020
        %v3045 = vadd.f32 %v2901, %v3022
        %v3046 = vadd.f32 %v2902, %v3024
        %v3047 = vadd.f32 %v2903, %v3026
        %v3048 = vadd.f32 %v2904, %v3028
        %v3049 = vadd.f32 %v2905, %v3030
        %v3050 = vadd.f32 %v2906, %v3032
        %v3051 = vadd.f32 %v2907, %v3034
        %v3052 = vadd.f32 %v2908, %v3036
        %3069 = vrot.lane.b32.xlu0 %v2989, 32
        %v3070 = vpop.permute.xlu0 %3069
        %3071 = vrot.lane.b32.xlu0 %v2990, 32
        %v3072 = vpop.permute.xlu0 %3071
        %3073 = vrot.lane.b32.xlu0 %v2991, 32
        %v3074 = vpop.permute.xlu0 %3073
        %3075 = vrot.lane.b32.xlu0 %v2992, 32
        %v3076 = vpop.permute.xlu0 %3075
        %3077 = vrot.lane.b32.xlu0 %v2993, 32
        %v3078 = vpop.permute.xlu0 %3077
        %3079 = vrot.lane.b32.xlu0 %v2994, 32
        %v3080 = vpop.permute.xlu0 %3079
        %3081 = vrot.lane.b32.xlu0 %v2995, 32
        %v3082 = vpop.permute.xlu0 %3081
        %3083 = vrot.lane.b32.xlu0 %v2996, 32
        %v3084 = vpop.permute.xlu0 %3083
        %3085 = vrot.lane.b32.xlu0 %v2997, 32
        %v3086 = vpop.permute.xlu0 %3085
        %3087 = vrot.lane.b32.xlu0 %v2998, 32
        %v3088 = vpop.permute.xlu0 %3087
        %3089 = vrot.lane.b32.xlu0 %v2999, 32
        %v3090 = vpop.permute.xlu0 %3089
        %3091 = vrot.lane.b32.xlu0 %v3000, 32
        %v3092 = vpop.permute.xlu0 %3091
        %3093 = vrot.lane.b32.xlu0 %v3001, 32
        %v3094 = vpop.permute.xlu0 %3093
        %3095 = vrot.lane.b32.xlu0 %v3002, 32
        %v3096 = vpop.permute.xlu0 %3095
        %3097 = vrot.lane.b32.xlu0 %v3003, 32
        %v3098 = vpop.permute.xlu0 %3097
        %3099 = vrot.lane.b32.xlu0 %v3004, 32
        %v3100 = vpop.permute.xlu0 %3099
        %v3117 = vsub.f32 %v3037, %v3070
        %v3118 = vsub.f32 %v3038, %v3072
        %v3119 = vsub.f32 %v3039, %v3074
        %v3120 = vsub.f32 %v3040, %v3076
        %v3121 = vsub.f32 %v3041, %v3078
        %v3122 = vsub.f32 %v3042, %v3080
        %v3123 = vsub.f32 %v3043, %v3082
        %v3124 = vsub.f32 %v3044, %v3084
        %v3125 = vsub.f32 %v3045, %v3086
        %v3126 = vsub.f32 %v3046, %v3088
        %v3127 = vsub.f32 %v3047, %v3090
        %v3128 = vsub.f32 %v3048, %v3092
        %v3129 = vsub.f32 %v3049, %v3094
        %v3130 = vsub.f32 %v3050, %v3096
        %v3131 = vsub.f32 %v3051, %v3098
        %v3132 = vsub.f32 %v3052, %v3100
        %v3133 = vmul.f32 %v879, %v879
        %v3134 = vmul.f32 %v880, %v880
        %v3135 = vmul.f32 %v881, %v881
        %v3136 = vmul.f32 %v882, %v882
        %v3137 = vmul.f32 %v883, %v883
        %v3138 = vmul.f32 %v884, %v884
        %v3139 = vmul.f32 %v885, %v885
        %v3140 = vmul.f32 %v886, %v886
        %v3141 = vmul.f32 %v887, %v887
        %v3142 = vmul.f32 %v888, %v888
        %v3143 = vmul.f32 %v889, %v889
        %v3144 = vmul.f32 %v890, %v890
        %v3145 = vmul.f32 %v891, %v891
        %v3146 = vmul.f32 %v892, %v892
        %v3147 = vmul.f32 %v893, %v893
        %v3148 = vmul.f32 %v894, %v894
        %v3149 = vmul.f32 %v673, %v673
        %v3150 = vmul.f32 %v676, %v676
        %v3151 = vmul.f32 %v681, %v681
        %v3152 = vmul.f32 %v684, %v684
        %v3153 = vmul.f32 %v689, %v689
        %v3154 = vmul.f32 %v692, %v692
        %v3155 = vmul.f32 %v697, %v697
        %v3156 = vmul.f32 %v700, %v700
        %v3157 = vmul.f32 %v705, %v705
        %v3158 = vmul.f32 %v708, %v708
        %v3159 = vmul.f32 %v713, %v713
        %v3160 = vmul.f32 %v716, %v716
        %v3161 = vmul.f32 %v721, %v721
        %v3162 = vmul.f32 %v724, %v724
        %v3163 = vmul.f32 %v729, %v729
        %v3164 = vmul.f32 %v732, %v732
        %3181 = vrot.lane.b32.xlu0 %v3149, 8
        %v3182 = vpop.permute.xlu0 %3181
        %3183 = vrot.lane.b32.xlu0 %v3150, 8
        %v3184 = vpop.permute.xlu0 %3183
        %3185 = vrot.lane.b32.xlu0 %v3151, 8
        %v3186 = vpop.permute.xlu0 %3185
        %3187 = vrot.lane.b32.xlu0 %v3152, 8
        %v3188 = vpop.permute.xlu0 %3187
        %3189 = vrot.lane.b32.xlu0 %v3153, 8
        %v3190 = vpop.permute.xlu0 %3189
        %3191 = vrot.lane.b32.xlu0 %v3154, 8
        %v3192 = vpop.permute.xlu0 %3191
        %3193 = vrot.lane.b32.xlu0 %v3155, 8
        %v3194 = vpop.permute.xlu0 %3193
        %3195 = vrot.lane.b32.xlu0 %v3156, 8
        %v3196 = vpop.permute.xlu0 %3195
        %3197 = vrot.lane.b32.xlu0 %v3157, 8
        %v3198 = vpop.permute.xlu0 %3197
        %3199 = vrot.lane.b32.xlu0 %v3158, 8
        %v3200 = vpop.permute.xlu0 %3199
        %3201 = vrot.lane.b32.xlu0 %v3159, 8
        %v3202 = vpop.permute.xlu0 %3201
        %3203 = vrot.lane.b32.xlu0 %v3160, 8
        %v3204 = vpop.permute.xlu0 %3203
        %3205 = vrot.lane.b32.xlu0 %v3161, 8
        %v3206 = vpop.permute.xlu0 %3205
        %3207 = vrot.lane.b32.xlu0 %v3162, 8
        %v3208 = vpop.permute.xlu0 %3207
        %3209 = vrot.lane.b32.xlu0 %v3163, 8
        %v3210 = vpop.permute.xlu0 %3209
        %3211 = vrot.lane.b32.xlu0 %v3164, 8
        %v3212 = vpop.permute.xlu0 %3211
        %v3229 = vadd.f32 %v3133, %v3182
        %v3230 = vadd.f32 %v3134, %v3184
        %v3231 = vadd.f32 %v3135, %v3186
        %v3232 = vadd.f32 %v3136, %v3188
        %v3233 = vadd.f32 %v3137, %v3190
        %v3234 = vadd.f32 %v3138, %v3192
        %v3235 = vadd.f32 %v3139, %v3194
        %v3236 = vadd.f32 %v3140, %v3196
        %v3237 = vadd.f32 %v3141, %v3198
        %v3238 = vadd.f32 %v3142, %v3200
        %v3239 = vadd.f32 %v3143, %v3202
        %v3240 = vadd.f32 %v3144, %v3204
        %v3241 = vadd.f32 %v3145, %v3206
        %v3242 = vadd.f32 %v3146, %v3208
        %v3243 = vadd.f32 %v3147, %v3210
        %v3244 = vadd.f32 %v3148, %v3212
        %v3245 = vsub.f32 %v3229, 1.0
        %v3246 = vsub.f32 %v3230, 1.0
        %v3247 = vsub.f32 %v3231, 1.0
        %v3248 = vsub.f32 %v3232, 1.0
        %v3249 = vsub.f32 %v3233, 1.0
        %v3250 = vsub.f32 %v3234, 1.0
        %v3251 = vsub.f32 %v3235, 1.0
        %v3252 = vsub.f32 %v3236, 1.0
        %v3253 = vsub.f32 %v3237, 1.0
        %v3254 = vsub.f32 %v3238, 1.0
        %v3255 = vsub.f32 %v3239, 1.0
        %v3256 = vsub.f32 %v3240, 1.0
        %v3257 = vsub.f32 %v3241, 1.0
        %v3258 = vsub.f32 %v3242, 1.0
        %v3259 = vsub.f32 %v3243, 1.0
        %v3260 = vsub.f32 %v3244, 1.0
        %v3261 = vlog2.pop %v3133
        %v3262 = vmul.f32 %v3261, 0.6931472
        %v3263 = vlog2.pop %v3134
        %v3264 = vmul.f32 %v3263, 0.6931472
        %v3265 = vlog2.pop %v3135
        %v3266 = vmul.f32 %v3265, 0.6931472
        %v3267 = vlog2.pop %v3136
        %v3268 = vmul.f32 %v3267, 0.6931472
        %v3269 = vlog2.pop %v3137
        %v3270 = vmul.f32 %v3269, 0.6931472
        %v3271 = vlog2.pop %v3138
        %v3272 = vmul.f32 %v3271, 0.6931472
        %v3273 = vlog2.pop %v3139
        %v3274 = vmul.f32 %v3273, 0.6931472
        %v3275 = vlog2.pop %v3140
        %v3276 = vmul.f32 %v3275, 0.6931472
        %v3277 = vlog2.pop %v3141
        %v3278 = vmul.f32 %v3277, 0.6931472
        %v3279 = vlog2.pop %v3142
        %v3280 = vmul.f32 %v3279, 0.6931472
        %v3281 = vlog2.pop %v3143
        %v3282 = vmul.f32 %v3281, 0.6931472
        %v3283 = vlog2.pop %v3144
        %v3284 = vmul.f32 %v3283, 0.6931472
        %v3285 = vlog2.pop %v3145
        %v3286 = vmul.f32 %v3285, 0.6931472
        %v3287 = vlog2.pop %v3146
        %v3288 = vmul.f32 %v3287, 0.6931472
        %v3289 = vlog2.pop %v3147
        %v3290 = vmul.f32 %v3289, 0.6931472
        %v3291 = vlog2.pop %v3148
        %v3292 = vmul.f32 %v3291, 0.6931472
        %v3293 = vsub.f32 %v3245, %v3262
        %v3294 = vsub.f32 %v3246, %v3264
        %v3295 = vsub.f32 %v3247, %v3266
        %v3296 = vsub.f32 %v3248, %v3268
        %v3297 = vsub.f32 %v3249, %v3270
        %v3298 = vsub.f32 %v3250, %v3272
        %v3299 = vsub.f32 %v3251, %v3274
        %v3300 = vsub.f32 %v3252, %v3276
        %v3301 = vsub.f32 %v3253, %v3278
        %v3302 = vsub.f32 %v3254, %v3280
        %v3303 = vsub.f32 %v3255, %v3282
        %v3304 = vsub.f32 %v3256, %v3284
        %v3305 = vsub.f32 %v3257, %v3286
        %v3306 = vsub.f32 %v3258, %v3288
        %v3307 = vsub.f32 %v3259, %v3290
        %v3308 = vsub.f32 %v3260, %v3292
        %v3309 = vmul.f32 %v3293, 0.5
        %v3310 = vmul.f32 %v3294, 0.5
        %v3311 = vmul.f32 %v3295, 0.5
        %v3312 = vmul.f32 %v3296, 0.5
        %v3313 = vmul.f32 %v3297, 0.5
        %v3314 = vmul.f32 %v3298, 0.5
        %v3315 = vmul.f32 %v3299, 0.5
        %v3316 = vmul.f32 %v3300, 0.5
        %v3317 = vmul.f32 %v3301, 0.5
        %v3318 = vmul.f32 %v3302, 0.5
        %v3319 = vmul.f32 %v3303, 0.5
        %v3320 = vmul.f32 %v3304, 0.5
        %v3321 = vmul.f32 %v3305, 0.5
        %v3322 = vmul.f32 %v3306, 0.5
        %v3323 = vmul.f32 %v3307, 0.5
        %v3324 = vmul.f32 %v3308, 0.5
        %3341 = vrot.lane.b32.xlu0 %v3117, 80
        %v3342 = vpop.permute.xlu0 %3341
        %3343 = vrot.lane.b32.xlu0 %v3118, 80
        %v3344 = vpop.permute.xlu0 %3343
        %3345 = vrot.lane.b32.xlu0 %v3119, 80
        %v3346 = vpop.permute.xlu0 %3345
        %3347 = vrot.lane.b32.xlu0 %v3120, 80
        %v3348 = vpop.permute.xlu0 %3347
        %3349 = vrot.lane.b32.xlu0 %v3121, 80
        %v3350 = vpop.permute.xlu0 %3349
        %3351 = vrot.lane.b32.xlu0 %v3122, 80
        %v3352 = vpop.permute.xlu0 %3351
        %3353 = vrot.lane.b32.xlu0 %v3123, 80
        %v3354 = vpop.permute.xlu0 %3353
        %3355 = vrot.lane.b32.xlu0 %v3124, 80
        %v3356 = vpop.permute.xlu0 %3355
        %3357 = vrot.lane.b32.xlu0 %v3125, 80
        %v3358 = vpop.permute.xlu0 %3357
        %3359 = vrot.lane.b32.xlu0 %v3126, 80
        %v3360 = vpop.permute.xlu0 %3359
        %3361 = vrot.lane.b32.xlu0 %v3127, 80
        %v3362 = vpop.permute.xlu0 %3361
        %3363 = vrot.lane.b32.xlu0 %v3128, 80
        %v3364 = vpop.permute.xlu0 %3363
        %3365 = vrot.lane.b32.xlu0 %v3129, 80
        %v3366 = vpop.permute.xlu0 %3365
        %3367 = vrot.lane.b32.xlu0 %v3130, 80
        %v3368 = vpop.permute.xlu0 %3367
        %3369 = vrot.lane.b32.xlu0 %v3131, 80
        %v3370 = vpop.permute.xlu0 %3369
        %3371 = vrot.lane.b32.xlu0 %v3132, 80
        %v3372 = vpop.permute.xlu0 %3371
        %v3389 = vsel %vm1093, %v3342, 0.0
        %v3390 = vsel %vm1093, %v3344, 0.0
        %v3391 = vadd.f32 %v3389, %v3390
        %v3392 = vsel %vm1093, %v3346, 0.0
        %v3393 = vadd.f32 %v3391, %v3392
        %v3394 = vsel %vm1093, %v3348, 0.0
        %v3395 = vadd.f32 %v3393, %v3394
        %v3396 = vsel %vm1093, %v3350, 0.0
        %v3397 = vadd.f32 %v3395, %v3396
        %v3398 = vsel %vm1093, %v3352, 0.0
        %v3399 = vadd.f32 %v3397, %v3398
        %v3400 = vsel %vm1093, %v3354, 0.0
        %v3401 = vadd.f32 %v3399, %v3400
        %v3402 = vsel %vm1093, %v3356, 0.0
        %v3403 = vadd.f32 %v3401, %v3402
        %v3404 = vsel %vm1093, %v3358, 0.0
        %v3405 = vadd.f32 %v3403, %v3404
        %v3406 = vsel %vm1093, %v3360, 0.0
        %v3407 = vadd.f32 %v3405, %v3406
        %v3408 = vsel %vm1093, %v3362, 0.0
        %v3409 = vadd.f32 %v3407, %v3408
        %v3410 = vsel %vm1093, %v3364, 0.0
        %v3411 = vadd.f32 %v3409, %v3410
        %v3412 = vsel %vm1093, %v3366, 0.0
        %v3413 = vadd.f32 %v3411, %v3412
        %v3414 = vsel %vm1093, %v3368, 0.0
        %v3415 = vadd.f32 %v3413, %v3414
        %v3416 = vsel %vm1093, %v3370, 0.0
        %v3417 = vadd.f32 %v3415, %v3416
        %v3418 = vsel %vm1093, %v3372, 0.0
        %v3419 = vadd.f32 %v3417, %v3418
        %3420 = vadd.xlane.f32.xlu0 %v3419
        %v3421 = vpop.xlane.xlu0 %3420
        %v3422 = vrot.slane %v3421, 4
        %v3423 = vadd.f32 %v3421, %v3422
        %v3424 = vrot.slane %v3423, 2
        %v3425 = vadd.f32 %v3423, %v3424
        %v3426 = vrot.slane %v3425, 1
        %v3427 = vadd.f32 %v3425, %v3426
        %s3428 = vtos %v3427
        %3445 = vrot.lane.b32.xlu0 %v3309, 120
        %v3446 = vpop.permute.xlu0 %3445
        %3447 = vrot.lane.b32.xlu0 %v3310, 120
        %v3448 = vpop.permute.xlu0 %3447
        %3449 = vrot.lane.b32.xlu0 %v3311, 120
        %v3450 = vpop.permute.xlu0 %3449
        %3451 = vrot.lane.b32.xlu0 %v3312, 120
        %v3452 = vpop.permute.xlu0 %3451
        %3453 = vrot.lane.b32.xlu0 %v3313, 120
        %v3454 = vpop.permute.xlu0 %3453
        %3455 = vrot.lane.b32.xlu0 %v3314, 120
        %v3456 = vpop.permute.xlu0 %3455
        %3457 = vrot.lane.b32.xlu0 %v3315, 120
        %v3458 = vpop.permute.xlu0 %3457
        %3459 = vrot.lane.b32.xlu0 %v3316, 120
        %v3460 = vpop.permute.xlu0 %3459
        %3461 = vrot.lane.b32.xlu0 %v3317, 120
        %v3462 = vpop.permute.xlu0 %3461
        %3463 = vrot.lane.b32.xlu0 %v3318, 120
        %v3464 = vpop.permute.xlu0 %3463
        %3465 = vrot.lane.b32.xlu0 %v3319, 120
        %v3466 = vpop.permute.xlu0 %3465
        %3467 = vrot.lane.b32.xlu0 %v3320, 120
        %v3468 = vpop.permute.xlu0 %3467
        %3469 = vrot.lane.b32.xlu0 %v3321, 120
        %v3470 = vpop.permute.xlu0 %3469
        %3471 = vrot.lane.b32.xlu0 %v3322, 120
        %v3472 = vpop.permute.xlu0 %3471
        %3473 = vrot.lane.b32.xlu0 %v3323, 120
        %v3474 = vpop.permute.xlu0 %3473
        %3475 = vrot.lane.b32.xlu0 %v3324, 120
        %v3476 = vpop.permute.xlu0 %3475
        %v3493 = vsel %vm1055, %v3446, 0.0
        %v3494 = vsel %vm1055, %v3448, 0.0
        %v3495 = vadd.f32 %v3493, %v3494
        %v3496 = vsel %vm1055, %v3450, 0.0
        %v3497 = vadd.f32 %v3495, %v3496
        %v3498 = vsel %vm1055, %v3452, 0.0
        %v3499 = vadd.f32 %v3497, %v3498
        %v3500 = vsel %vm1055, %v3454, 0.0
        %v3501 = vadd.f32 %v3499, %v3500
        %v3502 = vsel %vm1055, %v3456, 0.0
        %v3503 = vadd.f32 %v3501, %v3502
        %v3504 = vsel %vm1055, %v3458, 0.0
        %v3505 = vadd.f32 %v3503, %v3504
        %v3506 = vsel %vm1055, %v3460, 0.0
        %v3507 = vadd.f32 %v3505, %v3506
        %v3508 = vsel %vm1055, %v3462, 0.0
        %v3509 = vadd.f32 %v3507, %v3508
        %v3510 = vsel %vm1055, %v3464, 0.0
        %v3511 = vadd.f32 %v3509, %v3510
        %v3512 = vsel %vm1055, %v3466, 0.0
        %v3513 = vadd.f32 %v3511, %v3512
        %v3514 = vsel %vm1055, %v3468, 0.0
        %v3515 = vadd.f32 %v3513, %v3514
        %v3516 = vsel %vm1055, %v3470, 0.0
        %v3517 = vadd.f32 %v3515, %v3516
        %v3518 = vsel %vm1055, %v3472, 0.0
        %v3519 = vadd.f32 %v3517, %v3518
        %v3520 = vsel %vm1055, %v3474, 0.0
        %v3521 = vadd.f32 %v3519, %v3520
        %v3522 = vsel %vm1055, %v3476, 0.0
        %v3523 = vadd.f32 %v3521, %v3522
        %3524 = vadd.xlane.f32.xlu0 %v3523
        %v3525 = vpop.xlane.xlu0 %3524
        %v3526 = vrot.slane %v3525, 4
        %v3527 = vadd.f32 %v3525, %v3526
        %v3528 = vrot.slane %v3527, 2
        %v3529 = vadd.f32 %v3527, %v3528
        %v3530 = vrot.slane %v3529, 1
        %v3531 = vadd.f32 %v3529, %v3530
        %s3532 = vtos %v3531
        %3533 = vst [vmem:[%s252] sm:$0xff] 0.0
        %3534 = vst [vmem:[%s252 + $0x8] sm:$0xff] 0.0
        %3535 = vst [vmem:[%s252 + $0x10] sm:$0xff] 0.0
        %3536 = vst [vmem:[%s252 + $0x18] sm:$0xff] 0.0
        %3537 = vst [vmem:[%s252 + $0x20] sm:$0xff] 0.0
        %3538 = vst [vmem:[%s252 + $0x28] sm:$0xff] 0.0
        %3539 = vst [vmem:[%s252 + $0x30] sm:$0xff] 0.0
        %3540 = vst [vmem:[%s252 + $0x38] sm:$0xff] 0.0
        %3541 = vst [vmem:[%s252 + $0x40] sm:$0xff] 0.0
        %3542 = vst [vmem:[%s252 + $0x48] sm:$0xff] 0.0
        %3543 = vst [vmem:[%s252 + $0x50] sm:$0xff] 0.0
        %3544 = vst [vmem:[%s252 + $0x58] sm:$0xff] 0.0
        %3545 = vst [vmem:[%s252 + $0x60] sm:$0xff] 0.0
        %3546 = vst [vmem:[%s252 + $0x68] sm:$0xff] 0.0
        %3547 = vst [vmem:[%s252 + $0x70] sm:$0xff] 0.0
        %3548 = vst [vmem:[%s252 + $0x78] sm:$0xff] 0.0
        %3549 = vst.msk [vmem:[%s252] sm:$0xff] %vm1055, %v673
        %3550 = vst.msk [vmem:[%s252 + $0x8] sm:$0xff] %vm1055, %v676
        %3551 = vst.msk [vmem:[%s252 + $0x10] sm:$0xff] %vm1055, %v681
        %3552 = vst.msk [vmem:[%s252 + $0x18] sm:$0xff] %vm1055, %v684
        %3553 = vst.msk [vmem:[%s252 + $0x20] sm:$0xff] %vm1055, %v689
        %3554 = vst.msk [vmem:[%s252 + $0x28] sm:$0xff] %vm1055, %v692
        %3555 = vst.msk [vmem:[%s252 + $0x30] sm:$0xff] %vm1055, %v697
        %3556 = vst.msk [vmem:[%s252 + $0x38] sm:$0xff] %vm1055, %v700
        %3557 = vst.msk [vmem:[%s252 + $0x40] sm:$0xff] %vm1055, %v705
        %3558 = vst.msk [vmem:[%s252 + $0x48] sm:$0xff] %vm1055, %v708
        %3559 = vst.msk [vmem:[%s252 + $0x50] sm:$0xff] %vm1055, %v713
        %3560 = vst.msk [vmem:[%s252 + $0x58] sm:$0xff] %vm1055, %v716
        %3561 = vst.msk [vmem:[%s252 + $0x60] sm:$0xff] %vm1055, %v721
        %3562 = vst.msk [vmem:[%s252 + $0x68] sm:$0xff] %vm1055, %v724
        %3563 = vst.msk [vmem:[%s252 + $0x70] sm:$0xff] %vm1055, %v729
        %3564 = vst.msk [vmem:[%s252 + $0x78] sm:$0xff] %vm1055, %v732
        %vm3565 = vcmask 130112
        %3566 = vst.msk [vmem:[%s252] sm:$0xff] %vm3565, %v879
        %3567 = vst.msk [vmem:[%s252 + $0x8] sm:$0xff] %vm3565, %v880
        %3568 = vst.msk [vmem:[%s252 + $0x10] sm:$0xff] %vm3565, %v881
        %3569 = vst.msk [vmem:[%s252 + $0x18] sm:$0xff] %vm3565, %v882
        %3570 = vst.msk [vmem:[%s252 + $0x20] sm:$0xff] %vm3565, %v883
        %3571 = vst.msk [vmem:[%s252 + $0x28] sm:$0xff] %vm3565, %v884
        %3572 = vst.msk [vmem:[%s252 + $0x30] sm:$0xff] %vm3565, %v885
        %3573 = vst.msk [vmem:[%s252 + $0x38] sm:$0xff] %vm3565, %v886
        %3574 = vst.msk [vmem:[%s252 + $0x40] sm:$0xff] %vm3565, %v887
        %3575 = vst.msk [vmem:[%s252 + $0x48] sm:$0xff] %vm3565, %v888
        %3576 = vst.msk [vmem:[%s252 + $0x50] sm:$0xff] %vm3565, %v889
        %3577 = vst.msk [vmem:[%s252 + $0x58] sm:$0xff] %vm3565, %v890
        %3578 = vst.msk [vmem:[%s252 + $0x60] sm:$0xff] %vm3565, %v891
        %3579 = vst.msk [vmem:[%s252 + $0x68] sm:$0xff] %vm3565, %v892
        %3580 = vst.msk [vmem:[%s252 + $0x70] sm:$0xff] %vm3565, %v893
        %3581 = vst.msk [vmem:[%s252 + $0x78] sm:$0xff] %vm3565, %v894
        %3598 = vrot.lane.b32.xlu0 %v1039, 16
        %v3599 = vpop.permute.xlu0 %3598
        %3600 = vrot.lane.b32.xlu0 %v1040, 16
        %v3601 = vpop.permute.xlu0 %3600
        %3602 = vrot.lane.b32.xlu0 %v1041, 16
        %v3603 = vpop.permute.xlu0 %3602
        %3604 = vrot.lane.b32.xlu0 %v1042, 16
        %v3605 = vpop.permute.xlu0 %3604
        %3606 = vrot.lane.b32.xlu0 %v1043, 16
        %v3607 = vpop.permute.xlu0 %3606
        %3608 = vrot.lane.b32.xlu0 %v1044, 16
        %v3609 = vpop.permute.xlu0 %3608
        %3610 = vrot.lane.b32.xlu0 %v1045, 16
        %v3611 = vpop.permute.xlu0 %3610
        %3612 = vrot.lane.b32.xlu0 %v1046, 16
        %v3613 = vpop.permute.xlu0 %3612
        %3614 = vrot.lane.b32.xlu0 %v1047, 16
        %v3615 = vpop.permute.xlu0 %3614
        %3616 = vrot.lane.b32.xlu0 %v1048, 16
        %v3617 = vpop.permute.xlu0 %3616
        %3618 = vrot.lane.b32.xlu0 %v1049, 16
        %v3619 = vpop.permute.xlu0 %3618
        %3620 = vrot.lane.b32.xlu0 %v1050, 16
        %v3621 = vpop.permute.xlu0 %3620
        %3622 = vrot.lane.b32.xlu0 %v1051, 16
        %v3623 = vpop.permute.xlu0 %3622
        %3624 = vrot.lane.b32.xlu0 %v1052, 16
        %v3625 = vpop.permute.xlu0 %3624
        %3626 = vrot.lane.b32.xlu0 %v1053, 16
        %v3627 = vpop.permute.xlu0 %3626
        %3628 = vrot.lane.b32.xlu0 %v1054, 16
        %v3629 = vpop.permute.xlu0 %3628
        %vm3646 = vcmask 195712
        %3647 = vst.msk [vmem:[%s252] sm:$0xff] %vm3646, %v3599
        %3648 = vst.msk [vmem:[%s252 + $0x8] sm:$0xff] %vm3646, %v3601
        %3649 = vst.msk [vmem:[%s252 + $0x10] sm:$0xff] %vm3646, %v3603
        %3650 = vst.msk [vmem:[%s252 + $0x18] sm:$0xff] %vm3646, %v3605
        %3651 = vst.msk [vmem:[%s252 + $0x20] sm:$0xff] %vm3646, %v3607
        %3652 = vst.msk [vmem:[%s252 + $0x28] sm:$0xff] %vm3646, %v3609
        %3653 = vst.msk [vmem:[%s252 + $0x30] sm:$0xff] %vm3646, %v3611
        %3654 = vst.msk [vmem:[%s252 + $0x38] sm:$0xff] %vm3646, %v3613
        %3655 = vst.msk [vmem:[%s252 + $0x40] sm:$0xff] %vm3646, %v3615
        %3656 = vst.msk [vmem:[%s252 + $0x48] sm:$0xff] %vm3646, %v3617
        %3657 = vst.msk [vmem:[%s252 + $0x50] sm:$0xff] %vm3646, %v3619
        %3658 = vst.msk [vmem:[%s252 + $0x58] sm:$0xff] %vm3646, %v3621
        %3659 = vst.msk [vmem:[%s252 + $0x60] sm:$0xff] %vm3646, %v3623
        %3660 = vst.msk [vmem:[%s252 + $0x68] sm:$0xff] %vm3646, %v3625
        %3661 = vst.msk [vmem:[%s252 + $0x70] sm:$0xff] %vm3646, %v3627
        %3662 = vst.msk [vmem:[%s252 + $0x78] sm:$0xff] %vm3646, %v3629
        %3679 = vrot.lane.b32.xlu0 %v2877, 104
        %v3680 = vpop.permute.xlu0 %3679
        %3681 = vrot.lane.b32.xlu0 %v2878, 104
        %v3682 = vpop.permute.xlu0 %3681
        %3683 = vrot.lane.b32.xlu0 %v2879, 104
        %v3684 = vpop.permute.xlu0 %3683
        %3685 = vrot.lane.b32.xlu0 %v2880, 104
        %v3686 = vpop.permute.xlu0 %3685
        %3687 = vrot.lane.b32.xlu0 %v2881, 104
        %v3688 = vpop.permute.xlu0 %3687
        %3689 = vrot.lane.b32.xlu0 %v2882, 104
        %v3690 = vpop.permute.xlu0 %3689
        %3691 = vrot.lane.b32.xlu0 %v2883, 104
        %v3692 = vpop.permute.xlu0 %3691
        %3693 = vrot.lane.b32.xlu0 %v2884, 104
        %v3694 = vpop.permute.xlu0 %3693
        %3695 = vrot.lane.b32.xlu0 %v2885, 104
        %v3696 = vpop.permute.xlu0 %3695
        %3697 = vrot.lane.b32.xlu0 %v2886, 104
        %v3698 = vpop.permute.xlu0 %3697
        %3699 = vrot.lane.b32.xlu0 %v2887, 104
        %v3700 = vpop.permute.xlu0 %3699
        %3701 = vrot.lane.b32.xlu0 %v2888, 104
        %v3702 = vpop.permute.xlu0 %3701
        %3703 = vrot.lane.b32.xlu0 %v2889, 104
        %v3704 = vpop.permute.xlu0 %3703
        %3705 = vrot.lane.b32.xlu0 %v2890, 104
        %v3706 = vpop.permute.xlu0 %3705
        %3707 = vrot.lane.b32.xlu0 %v2891, 104
        %v3708 = vpop.permute.xlu0 %3707
        %3709 = vrot.lane.b32.xlu0 %v2892, 104
        %v3710 = vpop.permute.xlu0 %3709
        %vm3727 = vcmask 326848
        %3728 = vst.msk [vmem:[%s252] sm:$0xff] %vm3727, %v3680
        %3729 = vst.msk [vmem:[%s252 + $0x8] sm:$0xff] %vm3727, %v3682
        %3730 = vst.msk [vmem:[%s252 + $0x10] sm:$0xff] %vm3727, %v3684
        %3731 = vst.msk [vmem:[%s252 + $0x18] sm:$0xff] %vm3727, %v3686
        %3732 = vst.msk [vmem:[%s252 + $0x20] sm:$0xff] %vm3727, %v3688
        %3733 = vst.msk [vmem:[%s252 + $0x28] sm:$0xff] %vm3727, %v3690
        %3734 = vst.msk [vmem:[%s252 + $0x30] sm:$0xff] %vm3727, %v3692
        %3735 = vst.msk [vmem:[%s252 + $0x38] sm:$0xff] %vm3727, %v3694
        %3736 = vst.msk [vmem:[%s252 + $0x40] sm:$0xff] %vm3727, %v3696
        %3737 = vst.msk [vmem:[%s252 + $0x48] sm:$0xff] %vm3727, %v3698
        %3738 = vst.msk [vmem:[%s252 + $0x50] sm:$0xff] %vm3727, %v3700
        %3739 = vst.msk [vmem:[%s252 + $0x58] sm:$0xff] %vm3727, %v3702
        %3740 = vst.msk [vmem:[%s252 + $0x60] sm:$0xff] %vm3727, %v3704
        %3741 = vst.msk [vmem:[%s252 + $0x68] sm:$0xff] %vm3727, %v3706
        %3742 = vst.msk [vmem:[%s252 + $0x70] sm:$0xff] %vm3727, %v3708
        %3743 = vst.msk [vmem:[%s252 + $0x78] sm:$0xff] %vm3727, %v3710
        %v3744 = vlaneseq
        %v3745 = vshrl.u32 %v3744, 7
        %v3746 = vlaneseq
        %v3747 = vand.u32 %v3746, 127
        %vm3748 = vcmp.eq.s32.totalorder %v3745, 0
        %vm3749 = vcmp.eq.s32.totalorder %v3747, 0
        %vm3750 = vmand %vm3748, %vm3749
        %v3751 = vstv %s3428
        %v3752 = vsel %vm3750, %v3751, 0.0
        %vm3753 = vcmp.eq.s32.totalorder %v3747, 1
        %vm3754 = vmand %vm3748, %vm3753
        %v3755 = vstv %s3532
        %v3756 = vsel %vm3754, %v3755, %v3752
        %3757 = vst [vmem:[%s257] sm:$0xff] %v3756
        %s3758 = smul.u32 16, %s20
        %p3759 = scmp.lt.s32.totalorder %s3758, 31
        %s3760 = scalar_select %p3759, %s3758, 31
        %s3761 = smul.addr %s3760, 8
        %s3762 = scalar_lea.vmem %s3, %s3761
        %p3763 = scmp.lt.s32.totalorder %s20, 1
        %s3764 = scalar_select %p3763, %s20, 1
        %s3765 = smul.addr %s3764, 8
        %s3766 = scalar_lea.vmem %s4, %s3765
        // Predicated region
        $region45: #{vae_forward.1} parent=31 // pred_check
          %p3767 = pneg %p106
        $region46: #{vae_forward.1} parent=31 // pred_check_branch
          %3769 = sbr.rel (%p3767) target = $region48
        $region47: #{vae_forward.1} parent=31 // pred_region
          %s3770 = smul.u32 16, %s20
        $region48: #{vae_forward.1} parent=31 // pred_fallthru
          _
        // Predicated region
        $region49: #{vae_forward.1} parent=31 // pred_check
          %p3771 = pneg %p132
        $region50: #{vae_forward.1} parent=31 // pred_check_branch
          %3773 = sbr.rel (%p3771) target = $region52
        $region51: #{vae_forward.1} parent=31 // pred_region
          _
        $region52: #{vae_forward.1} parent=31 // pred_fallthru
          _
      $region32: #{vae_forward.1} parent=5 // pred_fallthru
        _
      %p3774 = scmp.le.s32.totalorder 2, %s15
      // Predicated region
      $region53: #{vae_forward.1} parent=5 // pred_check
        %p3775 = pneg %p3774
      $region54: #{vae_forward.1} parent=5 // pred_check_branch
        %3777 = sbr.rel (%p3775) target = $region56
      $region55: #{vae_forward.1} parent=5 // pred_region
        %s3778 = ssub.s32 %s15, 2
        // Predicated region
        $region57: #{vae_forward.1} parent=55 // pred_check
          %p3779 = pneg %p112
        $region58: #{vae_forward.1} parent=55 // pred_check_branch
          %3781 = sbr.rel (%p3779) target = $region60
        $region59: #{vae_forward.1} parent=55 // pred_region
          %s3782 = smul.u32 16, %s21
          %p3783 = scmp.lt.s32.totalorder %s3782, 31
          %s3784 = scalar_select %p3783, %s3782, 31
          %s3785 = smul.addr %s3784, 8
          %s3786 = scalar_lea.vmem %s3, %s3785
        $region60: #{vae_forward.1} parent=55 // pred_fallthru
          _
        // Predicated region
        $region61: #{vae_forward.1} parent=55 // pred_check
          %p3787 = pneg %p138
        $region62: #{vae_forward.1} parent=55 // pred_check_branch
          %3789 = sbr.rel (%p3787) target = $region64
        $region63: #{vae_forward.1} parent=55 // pred_region
          %p3790 = scmp.lt.s32.totalorder %s21, 1
          %s3791 = scalar_select %p3790, %s21, 1
          %s3792 = smul.addr %s3791, 8
          %s3793 = scalar_lea.vmem %s4, %s3792
        $region64: #{vae_forward.1} parent=55 // pred_fallthru
          _
      $region56: #{vae_forward.1} parent=5 // pred_fallthru
        _
    $region6: #{vae_forward.1} parent=1 // loop_footer
      %s19 = sadd.s32 1, %s15
    $region7: #{vae_forward.1} parent=1 // loop_footer_branch
      %14 = sbr.rel target = $region3
    $region8: #{vae_forward.1} parent=1 // loop_exit
      _
    %3794 = vsyncpa [#allocation3], 1
    %s3795 = scalar_lea.sflag [#allocation3], 1
    %3796 = vsyncpa %s3795, 1
    %3797 = vsyncpa [#allocation5], 1

</llo_original>
